<compile_context>
chip_gen: v7x
topology: tpu7x:2x2x1
jax: 0.10.0
libtpu: 0.0.40
codegen_flags: <defaults>
</compile_context>

<pallas_src>
import functools

import jax
import jax.numpy as jnp
from jax import lax
from jax.experimental import pallas as pl
from jax.experimental.pallas import tpu as pltpu


def _spatial_attention_kernel(x_ref, w_ref, mask_ref, o_ref, *, W, K, C_CHUNK):
    # x_ref   : (Bt, C, H*W)   lane-dense input block (VMEM)
    # w_ref   : (2*K*K,)       conv weights, flattened (ci, ki, kj) row-major (SMEM)
    # mask_ref: (K, H*W)       0/1 column-validity masks, one per kj offset (VMEM)
    # o_ref   : (Bt, C, H*W)   lane-dense output block (VMEM)
    Bt, C, HW = x_ref.shape
    P = K // 2
    f32 = jnp.float32

    # ---- channel-wise mean / max, chunked over C (bounds live ranges) ------
    s = jnp.zeros((Bt, HW), f32)
    m = jnp.full((Bt, HW), -jnp.inf, f32)
    c0 = 0
    while c0 < C:
        cc = min(C_CHUNK, C - c0)
        xv = x_ref[:, c0:c0 + cc, :].astype(f32)          # (Bt, cc, HW)
        s = s + jnp.sum(xv, axis=1)
        m = jnp.maximum(m, jnp.max(xv, axis=1))
        c0 += cc
    x_avg = s * (1.0 / C)                                  # (Bt, HW)
    x_max = m                                              # (Bt, HW)

    # ---- KxK "same" conv (2->1 ch, no bias) in flat row-major coordinates --
    # out[p] += w[ci,ki,kj] * map[p + (ki-P)*W + (kj-P)]
    # Row over/underflow lands in the zero pad of the flat axis; column
    # over/underflow (which would wrap into a neighbouring row) is zeroed by
    # the per-kj column mask.
    PAD = P * W + P
    z = jnp.zeros((Bt, PAD), f32)
    pad_avg = jnp.concatenate([z, x_avg, z], axis=1)       # (Bt, HW + 2*PAD)
    pad_max = jnp.concatenate([z, x_max, z], axis=1)

    cmask = [mask_ref[kj:kj + 1, :] for kj in range(K)]    # K x (1, HW), hoisted

    acc = jnp.zeros((Bt, HW), f32)
    for ci, pad_m in enumerate((pad_avg, pad_max)):        # channel 0 = avg (cat order)
        for ki in range(K):
            row_start = PAD + (ki - P) * W
            for kj in range(K):
                wt = w_ref[ci * K * K + ki * K + kj]       # scalar from SMEM
                a = row_start + (kj - P)
                term = pad_m[:, a:a + HW]
                acc = acc + wt * (term * cmask[kj])

    att = jax.nn.sigmoid(acc)                              # (Bt, HW), f32

    # ---- rescale x by the attention map, chunked over C --------------------
    c0 = 0
    while c0 < C:
        cc = min(C_CHUNK, C - c0)
        xv = x_ref[:, c0:c0 + cc, :].astype(f32)
        o_ref[:, c0:c0 + cc, :] = (xv * att[:, None, :]).astype(o_ref.dtype)
        c0 += cc


def spatial_attention(x, w):
    """x: (B, C, H, W). w: (1, 2, K, K) conv weight (no bias), K odd."""
    B, C, H, W = x.shape
    assert w.shape[0] == 1 and w.shape[1] == 2 and w.shape[2] == w.shape[3]
    K = w.shape[2]
    P = K // 2
    HW = H * W

    # Lane-dense layout for the heavy x stream (last dim = H*W).
    x_flat = x.reshape(B, C, HW)
    w_flat = w.reshape(-1).astype(jnp.float32)             # (2*K*K,) SMEM scalars

    # Per-kj column validity masks (precomputed on host; avoids in-kernel iota/mod).
    col = jnp.arange(HW, dtype=jnp.int32) % W
    col_mask = jnp.stack(
        [((col + (kj - P) >= 0) & (col + (kj - P) < W)).astype(jnp.float32)
         for kj in range(K)],
        axis=0,
    )                                                      # (K, HW), 0/1 f32

    itemsize = x.dtype.itemsize
    per_batch_bytes = C * HW * itemsize

    # Generation-dependent VMEM budgets (v5e/v6e: 128 MiB physical; v7x: 64 MiB).
    MiB = 1024 * 1024
    try:
        vmem_cap = int(getattr(pltpu.get_tpu_info(), "vmem_capacity_bytes", 64 * MiB))
    except Exception:  # be conservative if the query is unavailable
        vmem_cap = 64 * MiB
    if vmem_cap >= 100 * MiB:
        vmem_limit, block_budget = 96 * MiB, 12 * MiB      # v5e / v6e
    else:
        vmem_limit, block_budget = 48 * MiB, 6 * MiB       # v7x

    Bt = max(1, min(B, block_budget // max(per_batch_bytes, 1)))
    if B >= 2:
        # >= 2 grid steps so v7x's two TensorCores both get work under "parallel".
        Bt = min(Bt, pl.cdiv(B, 2))
    grid = (pl.cdiv(B, Bt),)                               # ragged last block is OK

    C_CHUNK = max(1, min(C, 8))

    # Explicit VMEM accounting: 2x(in) + 2x(out) double buffering + f32 maps /
    # padded maps / one upcast C-chunk + the column masks.
    block_bytes = Bt * per_batch_bytes
    f32_extra = (12 * Bt * HW + 2 * Bt * C_CHUNK * HW + 2 * K * HW) * 4
    if 4 * block_bytes + f32_extra > vmem_limit:
        # TODO(synk): tile over C / H*W for blocks that do not fit a single pass.
        raise NotImplementedError(
            f"spatial_attention: block ({block_bytes} B) too large for VMEM limit "
            f"({vmem_limit} B); needs additional C/H*W tiling.")

    cost = pl.CostEstimate(
        flops=int(B * HW * (3 * C + 6 * K * K)),           # reduce + stencil + rescale
        transcendentals=int(B * HW),                       # sigmoid
        bytes_accessed=int(2 * B * C * HW * itemsize + 4 * K * HW + 4 * 2 * K * K),
    )

    kernel = functools.partial(_spatial_attention_kernel, W=W, K=K, C_CHUNK=C_CHUNK)

    # NOTE: if the caller never reuses x, input_output_aliases={0: 0} would let
    # XLA reuse x's HBM buffer for the output.
    out_flat = pl.pallas_call(
        kernel,
        out_shape=jax.ShapeDtypeStruct((B, C, HW), x.dtype),
        grid_spec=pltpu.PrefetchScalarGridSpec(
            num_scalar_prefetch=0,
            grid=grid,
            in_specs=[
                pl.BlockSpec((Bt, C, HW), lambda b: (b, 0, 0)),          # x (lane-dense)
                pl.BlockSpec(memory_space=pltpu.MemorySpace.SMEM),       # conv weights
                pl.BlockSpec((K, HW), lambda b: (0, 0)),                 # column masks
            ],
            out_specs=pl.BlockSpec((Bt, C, HW), lambda b: (b, 0, 0)),
        ),
        compiler_params=pltpu.CompilerParams(
            dimension_semantics=("parallel",),
            vmem_limit_bytes=vmem_limit,
        ),
        cost_estimate=cost,
    )(x_flat, w_flat, col_mask)

    return out_flat.reshape(B, C, H, W)


def _reference(x, w):
    # Pure-JAX reference mirroring the PyTorch forward.
    x_avg = jnp.mean(x, axis=1, keepdims=True)                  # (B,1,H,W)
    x_max = jnp.max(x, axis=1, keepdims=True)                   # (B,1,H,W)
    xc = jnp.concatenate([x_avg, x_max], axis=1)                # (B,2,H,W)
    conv = lax.conv_general_dilated(
        xc, w, window_strides=(1, 1), padding="SAME",
        dimension_numbers=("NCHW", "OIHW", "NCHW"))             # (B,1,H,W)
    att = jax.nn.sigmoid(conv)
    return att * x


if __name__ == "__main__":
    # Small shapes consistent with the module (kernel_size=7).
    B, C, H, W = 2, 4, 16, 16
    K = 7

    key = jax.random.PRNGKey(0)
    kx, kw = jax.random.split(key)
    x = jax.random.normal(kx, (B, C, H, W), dtype=jnp.float32)
    w = jax.random.normal(kw, (1, 2, K, K), dtype=jnp.float32) * (2 * K * K) ** -0.5

    out = jax.block_until_ready(spatial_attention(x, w))
    ref = _reference(x, w)

    assert out.shape == (B, C, H, W)
    max_err = float(jnp.max(jnp.abs(out - ref)))
    assert jnp.allclose(out, ref, atol=1e-5, rtol=1e-4), \
        f"mismatch vs reference (max abs err {max_err})"

    print("KERNEL_OK")
</pallas_src>

<mosaic_0001>
module attributes {stable_mosaic.version = 11 : i64} {
  func.func @_spatial_attention_kernel(%arg0: i32, %arg1: memref<1x4x256xf32, #tpu.memory_space<vmem>>, %arg2: memref<98xf32, #tpu.memory_space<smem>>, %arg3: memref<7x256xf32, #tpu.memory_space<vmem>>, %arg4: memref<1x4x256xf32, #tpu.memory_space<vmem>>) attributes {dimension_semantics = [#tpu.dimension_semantics<parallel>], iteration_bounds = array<i64: 2>, scalar_prefetch = 0 : i64, scratch_operands = 0 : i64, tpu.core_type = #tpu.core_type<tc>, window_params = [{transform_indices = @transform_0, window_bounds = array<i64: 1, 4, 256>}, {transform_indices = @transform_1, window_bounds = array<i64: 98>}, {pipeline_mode = #tpu.pipeline_mode<synchronous>, transform_indices = @transform_2, window_bounds = array<i64: 7, 256>}, {transform_indices = @transform_3, window_bounds = array<i64: 1, 4, 256>}]} {
    %cst = arith.constant 0.000000e+00 : f32
    %0 = vector.broadcast %cst : f32 to vector<1x256xf32>
    %cst_0 = arith.constant 0xFF800000 : f32
    %1 = vector.broadcast %cst_0 : f32 to vector<1x256xf32>
    %c0 = arith.constant 0 : index
    %c0_1 = arith.constant 0 : index
    %c0_2 = arith.constant 0 : index
    %2 = vector.load %arg1[%c0, %c0_1, %c0_2] : memref<1x4x256xf32, #tpu.memory_space<vmem>>, vector<1x4x256xf32>
    %cst_3 = arith.constant dense<0.000000e+00> : vector<1x256xf32>
    %3 = vector.multi_reduction <add>, %2, %cst_3 [1] : vector<1x4x256xf32> to vector<1x256xf32>
    %4 = arith.addf %0, %3 : vector<1x256xf32>
    %cst_4 = arith.constant dense<0xFF800000> : vector<1x256xf32>
    %5 = vector.multi_reduction <maximumf>, %2, %cst_4 [1] : vector<1x4x256xf32> to vector<1x256xf32>
    %6 = arith.maximumf %1, %5 : vector<1x256xf32>
    %cst_5 = arith.constant 2.500000e-01 : f32
    %7 = vector.broadcast %cst_5 : f32 to vector<1x256xf32>
    %8 = arith.mulf %4, %7 : vector<1x256xf32>
    %cst_6 = arith.constant 0.000000e+00 : f32
    %9 = vector.broadcast %cst_6 : f32 to vector<1x51xf32>
    %10 = tpu.concatenate %9, %8, %9 in 1 : vector<1x51xf32>, vector<1x256xf32>, vector<1x51xf32> -> vector<1x358xf32>
    %11 = tpu.concatenate %9, %6, %9 in 1 : vector<1x51xf32>, vector<1x256xf32>, vector<1x51xf32> -> vector<1x358xf32>
    %c0_7 = arith.constant 0 : index
    %c0_8 = arith.constant 0 : index
    %12 = vector.load %arg3[%c0_7, %c0_8] : memref<7x256xf32, #tpu.memory_space<vmem>>, vector<1x256xf32>
    %c1 = arith.constant 1 : index
    %c0_9 = arith.constant 0 : index
    %13 = vector.load %arg3[%c1, %c0_9] : memref<7x256xf32, #tpu.memory_space<vmem>>, vector<1x256xf32>
    %c2 = arith.constant 2 : index
    %c0_10 = arith.constant 0 : index
    %14 = vector.load %arg3[%c2, %c0_10] : memref<7x256xf32, #tpu.memory_space<vmem>>, vector<1x256xf32>
    %c3 = arith.constant 3 : index
    %c0_11 = arith.constant 0 : index
    %15 = vector.load %arg3[%c3, %c0_11] : memref<7x256xf32, #tpu.memory_space<vmem>>, vector<1x256xf32>
    %c4 = arith.constant 4 : index
    %c0_12 = arith.constant 0 : index
    %16 = vector.load %arg3[%c4, %c0_12] : memref<7x256xf32, #tpu.memory_space<vmem>>, vector<1x256xf32>
    %c5 = arith.constant 5 : index
    %c0_13 = arith.constant 0 : index
    %17 = vector.load %arg3[%c5, %c0_13] : memref<7x256xf32, #tpu.memory_space<vmem>>, vector<1x256xf32>
    %c6 = arith.constant 6 : index
    %c0_14 = arith.constant 0 : index
    %18 = vector.load %arg3[%c6, %c0_14] : memref<7x256xf32, #tpu.memory_space<vmem>>, vector<1x256xf32>
    %cst_15 = arith.constant 0.000000e+00 : f32
    %19 = vector.broadcast %cst_15 : f32 to vector<1x256xf32>
    %c0_16 = arith.constant 0 : index
    %20 = memref.load %arg2[%c0_16] : memref<98xf32, #tpu.memory_space<smem>>
    %21 = vector.extract_strided_slice %10 {offsets = [0, 0], sizes = [1, 256], strides = [1, 1]} : vector<1x358xf32> to vector<1x256xf32>
    %22 = arith.mulf %21, %12 : vector<1x256xf32>
    %23 = vector.broadcast %20 : f32 to vector<1x256xf32>
    %24 = arith.mulf %23, %22 : vector<1x256xf32>
    %25 = arith.addf %19, %24 : vector<1x256xf32>
    %c1_17 = arith.constant 1 : index
    %26 = memref.load %arg2[%c1_17] : memref<98xf32, #tpu.memory_space<smem>>
    %27 = vector.extract_strided_slice %10 {offsets = [0, 1], sizes = [1, 256], strides = [1, 1]} : vector<1x358xf32> to vector<1x256xf32>
    %28 = arith.mulf %27, %13 : vector<1x256xf32>
    %29 = vector.broadcast %26 : f32 to vector<1x256xf32>
    %30 = arith.mulf %29, %28 : vector<1x256xf32>
    %31 = arith.addf %25, %30 : vector<1x256xf32>
    %c2_18 = arith.constant 2 : index
    %32 = memref.load %arg2[%c2_18] : memref<98xf32, #tpu.memory_space<smem>>
    %33 = vector.extract_strided_slice %10 {offsets = [0, 2], sizes = [1, 256], strides = [1, 1]} : vector<1x358xf32> to vector<1x256xf32>
    %34 = arith.mulf %33, %14 : vector<1x256xf32>
    %35 = vector.broadcast %32 : f32 to vector<1x256xf32>
    %36 = arith.mulf %35, %34 : vector<1x256xf32>
    %37 = arith.addf %31, %36 : vector<1x256xf32>
    %c3_19 = arith.constant 3 : index
    %38 = memref.load %arg2[%c3_19] : memref<98xf32, #tpu.memory_space<smem>>
    %39 = vector.extract_strided_slice %10 {offsets = [0, 3], sizes = [1, 256], strides = [1, 1]} : vector<1x358xf32> to vector<1x256xf32>
    %40 = arith.mulf %39, %15 : vector<1x256xf32>
    %41 = vector.broadcast %38 : f32 to vector<1x256xf32>
    %42 = arith.mulf %41, %40 : vector<1x256xf32>
    %43 = arith.addf %37, %42 : vector<1x256xf32>
    %c4_20 = arith.constant 4 : index
    %44 = memref.load %arg2[%c4_20] : memref<98xf32, #tpu.memory_space<smem>>
    %45 = vector.extract_strided_slice %10 {offsets = [0, 4], sizes = [1, 256], strides = [1, 1]} : vector<1x358xf32> to vector<1x256xf32>
    %46 = arith.mulf %45, %16 : vector<1x256xf32>
    %47 = vector.broadcast %44 : f32 to vector<1x256xf32>
    %48 = arith.mulf %47, %46 : vector<1x256xf32>
    %49 = arith.addf %43, %48 : vector<1x256xf32>
    %c5_21 = arith.constant 5 : index
    %50 = memref.load %arg2[%c5_21] : memref<98xf32, #tpu.memory_space<smem>>
    %51 = vector.extract_strided_slice %10 {offsets = [0, 5], sizes = [1, 256], strides = [1, 1]} : vector<1x358xf32> to vector<1x256xf32>
    %52 = arith.mulf %51, %17 : vector<1x256xf32>
    %53 = vector.broadcast %50 : f32 to vector<1x256xf32>
    %54 = arith.mulf %53, %52 : vector<1x256xf32>
    %55 = arith.addf %49, %54 : vector<1x256xf32>
    %c6_22 = arith.constant 6 : index
    %56 = memref.load %arg2[%c6_22] : memref<98xf32, #tpu.memory_space<smem>>
    %57 = vector.extract_strided_slice %10 {offsets = [0, 6], sizes = [1, 256], strides = [1, 1]} : vector<1x358xf32> to vector<1x256xf32>
    %58 = arith.mulf %57, %18 : vector<1x256xf32>
    %59 = vector.broadcast %56 : f32 to vector<1x256xf32>
    %60 = arith.mulf %59, %58 : vector<1x256xf32>
    %61 = arith.addf %55, %60 : vector<1x256xf32>
    %c7 = arith.constant 7 : index
    %62 = memref.load %arg2[%c7] : memref<98xf32, #tpu.memory_space<smem>>
    %63 = vector.extract_strided_slice %10 {offsets = [0, 16], sizes = [1, 256], strides = [1, 1]} : vector<1x358xf32> to vector<1x256xf32>
    %64 = arith.mulf %63, %12 : vector<1x256xf32>
    %65 = vector.broadcast %62 : f32 to vector<1x256xf32>
    %66 = arith.mulf %65, %64 : vector<1x256xf32>
    %67 = arith.addf %61, %66 : vector<1x256xf32>
    %c8 = arith.constant 8 : index
    %68 = memref.load %arg2[%c8] : memref<98xf32, #tpu.memory_space<smem>>
    %69 = vector.extract_strided_slice %10 {offsets = [0, 17], sizes = [1, 256], strides = [1, 1]} : vector<1x358xf32> to vector<1x256xf32>
    %70 = arith.mulf %69, %13 : vector<1x256xf32>
    %71 = vector.broadcast %68 : f32 to vector<1x256xf32>
    %72 = arith.mulf %71, %70 : vector<1x256xf32>
    %73 = arith.addf %67, %72 : vector<1x256xf32>
    %c9 = arith.constant 9 : index
    %74 = memref.load %arg2[%c9] : memref<98xf32, #tpu.memory_space<smem>>
    %75 = vector.extract_strided_slice %10 {offsets = [0, 18], sizes = [1, 256], strides = [1, 1]} : vector<1x358xf32> to vector<1x256xf32>
    %76 = arith.mulf %75, %14 : vector<1x256xf32>
    %77 = vector.broadcast %74 : f32 to vector<1x256xf32>
    %78 = arith.mulf %77, %76 : vector<1x256xf32>
    %79 = arith.addf %73, %78 : vector<1x256xf32>
    %c10 = arith.constant 10 : index
    %80 = memref.load %arg2[%c10] : memref<98xf32, #tpu.memory_space<smem>>
    %81 = vector.extract_strided_slice %10 {offsets = [0, 19], sizes = [1, 256], strides = [1, 1]} : vector<1x358xf32> to vector<1x256xf32>
    %82 = arith.mulf %81, %15 : vector<1x256xf32>
    %83 = vector.broadcast %80 : f32 to vector<1x256xf32>
    %84 = arith.mulf %83, %82 : vector<1x256xf32>
    %85 = arith.addf %79, %84 : vector<1x256xf32>
    %c11 = arith.constant 11 : index
    %86 = memref.load %arg2[%c11] : memref<98xf32, #tpu.memory_space<smem>>
    %87 = vector.extract_strided_slice %10 {offsets = [0, 20], sizes = [1, 256], strides = [1, 1]} : vector<1x358xf32> to vector<1x256xf32>
    %88 = arith.mulf %87, %16 : vector<1x256xf32>
    %89 = vector.broadcast %86 : f32 to vector<1x256xf32>
    %90 = arith.mulf %89, %88 : vector<1x256xf32>
    %91 = arith.addf %85, %90 : vector<1x256xf32>
    %c12 = arith.constant 12 : index
    %92 = memref.load %arg2[%c12] : memref<98xf32, #tpu.memory_space<smem>>
    %93 = vector.extract_strided_slice %10 {offsets = [0, 21], sizes = [1, 256], strides = [1, 1]} : vector<1x358xf32> to vector<1x256xf32>
    %94 = arith.mulf %93, %17 : vector<1x256xf32>
    %95 = vector.broadcast %92 : f32 to vector<1x256xf32>
    %96 = arith.mulf %95, %94 : vector<1x256xf32>
    %97 = arith.addf %91, %96 : vector<1x256xf32>
    %c13 = arith.constant 13 : index
    %98 = memref.load %arg2[%c13] : memref<98xf32, #tpu.memory_space<smem>>
    %99 = vector.extract_strided_slice %10 {offsets = [0, 22], sizes = [1, 256], strides = [1, 1]} : vector<1x358xf32> to vector<1x256xf32>
    %100 = arith.mulf %99, %18 : vector<1x256xf32>
    %101 = vector.broadcast %98 : f32 to vector<1x256xf32>
    %102 = arith.mulf %101, %100 : vector<1x256xf32>
    %103 = arith.addf %97, %102 : vector<1x256xf32>
    %c14 = arith.constant 14 : index
    %104 = memref.load %arg2[%c14] : memref<98xf32, #tpu.memory_space<smem>>
    %105 = vector.extract_strided_slice %10 {offsets = [0, 32], sizes = [1, 256], strides = [1, 1]} : vector<1x358xf32> to vector<1x256xf32>
    %106 = arith.mulf %105, %12 : vector<1x256xf32>
    %107 = vector.broadcast %104 : f32 to vector<1x256xf32>
    %108 = arith.mulf %107, %106 : vector<1x256xf32>
    %109 = arith.addf %103, %108 : vector<1x256xf32>
    %c15 = arith.constant 15 : index
    %110 = memref.load %arg2[%c15] : memref<98xf32, #tpu.memory_space<smem>>
    %111 = vector.extract_strided_slice %10 {offsets = [0, 33], sizes = [1, 256], strides = [1, 1]} : vector<1x358xf32> to vector<1x256xf32>
    %112 = arith.mulf %111, %13 : vector<1x256xf32>
    %113 = vector.broadcast %110 : f32 to vector<1x256xf32>
    %114 = arith.mulf %113, %112 : vector<1x256xf32>
    %115 = arith.addf %109, %114 : vector<1x256xf32>
    %c16 = arith.constant 16 : index
    %116 = memref.load %arg2[%c16] : memref<98xf32, #tpu.memory_space<smem>>
    %117 = vector.extract_strided_slice %10 {offsets = [0, 34], sizes = [1, 256], strides = [1, 1]} : vector<1x358xf32> to vector<1x256xf32>
    %118 = arith.mulf %117, %14 : vector<1x256xf32>
    %119 = vector.broadcast %116 : f32 to vector<1x256xf32>
    %120 = arith.mulf %119, %118 : vector<1x256xf32>
    %121 = arith.addf %115, %120 : vector<1x256xf32>
    %c17 = arith.constant 17 : index
    %122 = memref.load %arg2[%c17] : memref<98xf32, #tpu.memory_space<smem>>
    %123 = vector.extract_strided_slice %10 {offsets = [0, 35], sizes = [1, 256], strides = [1, 1]} : vector<1x358xf32> to vector<1x256xf32>
    %124 = arith.mulf %123, %15 : vector<1x256xf32>
    %125 = vector.broadcast %122 : f32 to vector<1x256xf32>
    %126 = arith.mulf %125, %124 : vector<1x256xf32>
    %127 = arith.addf %121, %126 : vector<1x256xf32>
    %c18 = arith.constant 18 : index
    %128 = memref.load %arg2[%c18] : memref<98xf32, #tpu.memory_space<smem>>
    %129 = vector.extract_strided_slice %10 {offsets = [0, 36], sizes = [1, 256], strides = [1, 1]} : vector<1x358xf32> to vector<1x256xf32>
    %130 = arith.mulf %129, %16 : vector<1x256xf32>
    %131 = vector.broadcast %128 : f32 to vector<1x256xf32>
    %132 = arith.mulf %131, %130 : vector<1x256xf32>
    %133 = arith.addf %127, %132 : vector<1x256xf32>
    %c19 = arith.constant 19 : index
    %134 = memref.load %arg2[%c19] : memref<98xf32, #tpu.memory_space<smem>>
    %135 = vector.extract_strided_slice %10 {offsets = [0, 37], sizes = [1, 256], strides = [1, 1]} : vector<1x358xf32> to vector<1x256xf32>
    %136 = arith.mulf %135, %17 : vector<1x256xf32>
    %137 = vector.broadcast %134 : f32 to vector<1x256xf32>
    %138 = arith.mulf %137, %136 : vector<1x256xf32>
    %139 = arith.addf %133, %138 : vector<1x256xf32>
    %c20 = arith.constant 20 : index
    %140 = memref.load %arg2[%c20] : memref<98xf32, #tpu.memory_space<smem>>
    %141 = vector.extract_strided_slice %10 {offsets = [0, 38], sizes = [1, 256], strides = [1, 1]} : vector<1x358xf32> to vector<1x256xf32>
    %142 = arith.mulf %141, %18 : vector<1x256xf32>
    %143 = vector.broadcast %140 : f32 to vector<1x256xf32>
    %144 = arith.mulf %143, %142 : vector<1x256xf32>
    %145 = arith.addf %139, %144 : vector<1x256xf32>
    %c21 = arith.constant 21 : index
    %146 = memref.load %arg2[%c21] : memref<98xf32, #tpu.memory_space<smem>>
    %147 = vector.extract_strided_slice %10 {offsets = [0, 48], sizes = [1, 256], strides = [1, 1]} : vector<1x358xf32> to vector<1x256xf32>
    %148 = arith.mulf %147, %12 : vector<1x256xf32>
    %149 = vector.broadcast %146 : f32 to vector<1x256xf32>
    %150 = arith.mulf %149, %148 : vector<1x256xf32>
    %151 = arith.addf %145, %150 : vector<1x256xf32>
    %c22 = arith.constant 22 : index
    %152 = memref.load %arg2[%c22] : memref<98xf32, #tpu.memory_space<smem>>
    %153 = vector.extract_strided_slice %10 {offsets = [0, 49], sizes = [1, 256], strides = [1, 1]} : vector<1x358xf32> to vector<1x256xf32>
    %154 = arith.mulf %153, %13 : vector<1x256xf32>
    %155 = vector.broadcast %152 : f32 to vector<1x256xf32>
    %156 = arith.mulf %155, %154 : vector<1x256xf32>
    %157 = arith.addf %151, %156 : vector<1x256xf32>
    %c23 = arith.constant 23 : index
    %158 = memref.load %arg2[%c23] : memref<98xf32, #tpu.memory_space<smem>>
    %159 = vector.extract_strided_slice %10 {offsets = [0, 50], sizes = [1, 256], strides = [1, 1]} : vector<1x358xf32> to vector<1x256xf32>
    %160 = arith.mulf %159, %14 : vector<1x256xf32>
    %161 = vector.broadcast %158 : f32 to vector<1x256xf32>
    %162 = arith.mulf %161, %160 : vector<1x256xf32>
    %163 = arith.addf %157, %162 : vector<1x256xf32>
    %c24 = arith.constant 24 : index
    %164 = memref.load %arg2[%c24] : memref<98xf32, #tpu.memory_space<smem>>
    %165 = vector.extract_strided_slice %10 {offsets = [0, 51], sizes = [1, 256], strides = [1, 1]} : vector<1x358xf32> to vector<1x256xf32>
    %166 = arith.mulf %165, %15 : vector<1x256xf32>
    %167 = vector.broadcast %164 : f32 to vector<1x256xf32>
    %168 = arith.mulf %167, %166 : vector<1x256xf32>
    %169 = arith.addf %163, %168 : vector<1x256xf32>
    %c25 = arith.constant 25 : index
    %170 = memref.load %arg2[%c25] : memref<98xf32, #tpu.memory_space<smem>>
    %171 = vector.extract_strided_slice %10 {offsets = [0, 52], sizes = [1, 256], strides = [1, 1]} : vector<1x358xf32> to vector<1x256xf32>
    %172 = arith.mulf %171, %16 : vector<1x256xf32>
    %173 = vector.broadcast %170 : f32 to vector<1x256xf32>
    %174 = arith.mulf %173, %172 : vector<1x256xf32>
    %175 = arith.addf %169, %174 : vector<1x256xf32>
    %c26 = arith.constant 26 : index
    %176 = memref.load %arg2[%c26] : memref<98xf32, #tpu.memory_space<smem>>
    %177 = vector.extract_strided_slice %10 {offsets = [0, 53], sizes = [1, 256], strides = [1, 1]} : vector<1x358xf32> to vector<1x256xf32>
    %178 = arith.mulf %177, %17 : vector<1x256xf32>
    %179 = vector.broadcast %176 : f32 to vector<1x256xf32>
    %180 = arith.mulf %179, %178 : vector<1x256xf32>
    %181 = arith.addf %175, %180 : vector<1x256xf32>
    %c27 = arith.constant 27 : index
    %182 = memref.load %arg2[%c27] : memref<98xf32, #tpu.memory_space<smem>>
    %183 = vector.extract_strided_slice %10 {offsets = [0, 54], sizes = [1, 256], strides = [1, 1]} : vector<1x358xf32> to vector<1x256xf32>
    %184 = arith.mulf %183, %18 : vector<1x256xf32>
    %185 = vector.broadcast %182 : f32 to vector<1x256xf32>
    %186 = arith.mulf %185, %184 : vector<1x256xf32>
    %187 = arith.addf %181, %186 : vector<1x256xf32>
    %c28 = arith.constant 28 : index
    %188 = memref.load %arg2[%c28] : memref<98xf32, #tpu.memory_space<smem>>
    %189 = vector.extract_strided_slice %10 {offsets = [0, 64], sizes = [1, 256], strides = [1, 1]} : vector<1x358xf32> to vector<1x256xf32>
    %190 = arith.mulf %189, %12 : vector<1x256xf32>
    %191 = vector.broadcast %188 : f32 to vector<1x256xf32>
    %192 = arith.mulf %191, %190 : vector<1x256xf32>
    %193 = arith.addf %187, %192 : vector<1x256xf32>
    %c29 = arith.constant 29 : index
    %194 = memref.load %arg2[%c29] : memref<98xf32, #tpu.memory_space<smem>>
    %195 = vector.extract_strided_slice %10 {offsets = [0, 65], sizes = [1, 256], strides = [1, 1]} : vector<1x358xf32> to vector<1x256xf32>
    %196 = arith.mulf %195, %13 : vector<1x256xf32>
    %197 = vector.broadcast %194 : f32 to vector<1x256xf32>
    %198 = arith.mulf %197, %196 : vector<1x256xf32>
    %199 = arith.addf %193, %198 : vector<1x256xf32>
    %c30 = arith.constant 30 : index
    %200 = memref.load %arg2[%c30] : memref<98xf32, #tpu.memory_space<smem>>
    %201 = vector.extract_strided_slice %10 {offsets = [0, 66], sizes = [1, 256], strides = [1, 1]} : vector<1x358xf32> to vector<1x256xf32>
    %202 = arith.mulf %201, %14 : vector<1x256xf32>
    %203 = vector.broadcast %200 : f32 to vector<1x256xf32>
    %204 = arith.mulf %203, %202 : vector<1x256xf32>
    %205 = arith.addf %199, %204 : vector<1x256xf32>
    %c31 = arith.constant 31 : index
    %206 = memref.load %arg2[%c31] : memref<98xf32, #tpu.memory_space<smem>>
    %207 = vector.extract_strided_slice %10 {offsets = [0, 67], sizes = [1, 256], strides = [1, 1]} : vector<1x358xf32> to vector<1x256xf32>
    %208 = arith.mulf %207, %15 : vector<1x256xf32>
    %209 = vector.broadcast %206 : f32 to vector<1x256xf32>
    %210 = arith.mulf %209, %208 : vector<1x256xf32>
    %211 = arith.addf %205, %210 : vector<1x256xf32>
    %c32 = arith.constant 32 : index
    %212 = memref.load %arg2[%c32] : memref<98xf32, #tpu.memory_space<smem>>
    %213 = vector.extract_strided_slice %10 {offsets = [0, 68], sizes = [1, 256], strides = [1, 1]} : vector<1x358xf32> to vector<1x256xf32>
    %214 = arith.mulf %213, %16 : vector<1x256xf32>
    %215 = vector.broadcast %212 : f32 to vector<1x256xf32>
    %216 = arith.mulf %215, %214 : vector<1x256xf32>
    %217 = arith.addf %211, %216 : vector<1x256xf32>
    %c33 = arith.constant 33 : index
    %218 = memref.load %arg2[%c33] : memref<98xf32, #tpu.memory_space<smem>>
    %219 = vector.extract_strided_slice %10 {offsets = [0, 69], sizes = [1, 256], strides = [1, 1]} : vector<1x358xf32> to vector<1x256xf32>
    %220 = arith.mulf %219, %17 : vector<1x256xf32>
    %221 = vector.broadcast %218 : f32 to vector<1x256xf32>
    %222 = arith.mulf %221, %220 : vector<1x256xf32>
    %223 = arith.addf %217, %222 : vector<1x256xf32>
    %c34 = arith.constant 34 : index
    %224 = memref.load %arg2[%c34] : memref<98xf32, #tpu.memory_space<smem>>
    %225 = vector.extract_strided_slice %10 {offsets = [0, 70], sizes = [1, 256], strides = [1, 1]} : vector<1x358xf32> to vector<1x256xf32>
    %226 = arith.mulf %225, %18 : vector<1x256xf32>
    %227 = vector.broadcast %224 : f32 to vector<1x256xf32>
    %228 = arith.mulf %227, %226 : vector<1x256xf32>
    %229 = arith.addf %223, %228 : vector<1x256xf32>
    %c35 = arith.constant 35 : index
    %230 = memref.load %arg2[%c35] : memref<98xf32, #tpu.memory_space<smem>>
    %231 = vector.extract_strided_slice %10 {offsets = [0, 80], sizes = [1, 256], strides = [1, 1]} : vector<1x358xf32> to vector<1x256xf32>
    %232 = arith.mulf %231, %12 : vector<1x256xf32>
    %233 = vector.broadcast %230 : f32 to vector<1x256xf32>
    %234 = arith.mulf %233, %232 : vector<1x256xf32>
    %235 = arith.addf %229, %234 : vector<1x256xf32>
    %c36 = arith.constant 36 : index
    %236 = memref.load %arg2[%c36] : memref<98xf32, #tpu.memory_space<smem>>
    %237 = vector.extract_strided_slice %10 {offsets = [0, 81], sizes = [1, 256], strides = [1, 1]} : vector<1x358xf32> to vector<1x256xf32>
    %238 = arith.mulf %237, %13 : vector<1x256xf32>
    %239 = vector.broadcast %236 : f32 to vector<1x256xf32>
    %240 = arith.mulf %239, %238 : vector<1x256xf32>
    %241 = arith.addf %235, %240 : vector<1x256xf32>
    %c37 = arith.constant 37 : index
    %242 = memref.load %arg2[%c37] : memref<98xf32, #tpu.memory_space<smem>>
    %243 = vector.extract_strided_slice %10 {offsets = [0, 82], sizes = [1, 256], strides = [1, 1]} : vector<1x358xf32> to vector<1x256xf32>
    %244 = arith.mulf %243, %14 : vector<1x256xf32>
    %245 = vector.broadcast %242 : f32 to vector<1x256xf32>
    %246 = arith.mulf %245, %244 : vector<1x256xf32>
    %247 = arith.addf %241, %246 : vector<1x256xf32>
    %c38 = arith.constant 38 : index
    %248 = memref.load %arg2[%c38] : memref<98xf32, #tpu.memory_space<smem>>
    %249 = vector.extract_strided_slice %10 {offsets = [0, 83], sizes = [1, 256], strides = [1, 1]} : vector<1x358xf32> to vector<1x256xf32>
    %250 = arith.mulf %249, %15 : vector<1x256xf32>
    %251 = vector.broadcast %248 : f32 to vector<1x256xf32>
    %252 = arith.mulf %251, %250 : vector<1x256xf32>
    %253 = arith.addf %247, %252 : vector<1x256xf32>
    %c39 = arith.constant 39 : index
    %254 = memref.load %arg2[%c39] : memref<98xf32, #tpu.memory_space<smem>>
    %255 = vector.extract_strided_slice %10 {offsets = [0, 84], sizes = [1, 256], strides = [1, 1]} : vector<1x358xf32> to vector<1x256xf32>
    %256 = arith.mulf %255, %16 : vector<1x256xf32>
    %257 = vector.broadcast %254 : f32 to vector<1x256xf32>
    %258 = arith.mulf %257, %256 : vector<1x256xf32>
    %259 = arith.addf %253, %258 : vector<1x256xf32>
    %c40 = arith.constant 40 : index
    %260 = memref.load %arg2[%c40] : memref<98xf32, #tpu.memory_space<smem>>
    %261 = vector.extract_strided_slice %10 {offsets = [0, 85], sizes = [1, 256], strides = [1, 1]} : vector<1x358xf32> to vector<1x256xf32>
    %262 = arith.mulf %261, %17 : vector<1x256xf32>
    %263 = vector.broadcast %260 : f32 to vector<1x256xf32>
    %264 = arith.mulf %263, %262 : vector<1x256xf32>
    %265 = arith.addf %259, %264 : vector<1x256xf32>
    %c41 = arith.constant 41 : index
    %266 = memref.load %arg2[%c41] : memref<98xf32, #tpu.memory_space<smem>>
    %267 = vector.extract_strided_slice %10 {offsets = [0, 86], sizes = [1, 256], strides = [1, 1]} : vector<1x358xf32> to vector<1x256xf32>
    %268 = arith.mulf %267, %18 : vector<1x256xf32>
    %269 = vector.broadcast %266 : f32 to vector<1x256xf32>
    %270 = arith.mulf %269, %268 : vector<1x256xf32>
    %271 = arith.addf %265, %270 : vector<1x256xf32>
    %c42 = arith.constant 42 : index
    %272 = memref.load %arg2[%c42] : memref<98xf32, #tpu.memory_space<smem>>
    %273 = vector.extract_strided_slice %10 {offsets = [0, 96], sizes = [1, 256], strides = [1, 1]} : vector<1x358xf32> to vector<1x256xf32>
    %274 = arith.mulf %273, %12 : vector<1x256xf32>
    %275 = vector.broadcast %272 : f32 to vector<1x256xf32>
    %276 = arith.mulf %275, %274 : vector<1x256xf32>
    %277 = arith.addf %271, %276 : vector<1x256xf32>
    %c43 = arith.constant 43 : index
    %278 = memref.load %arg2[%c43] : memref<98xf32, #tpu.memory_space<smem>>
    %279 = vector.extract_strided_slice %10 {offsets = [0, 97], sizes = [1, 256], strides = [1, 1]} : vector<1x358xf32> to vector<1x256xf32>
    %280 = arith.mulf %279, %13 : vector<1x256xf32>
    %281 = vector.broadcast %278 : f32 to vector<1x256xf32>
    %282 = arith.mulf %281, %280 : vector<1x256xf32>
    %283 = arith.addf %277, %282 : vector<1x256xf32>
    %c44 = arith.constant 44 : index
    %284 = memref.load %arg2[%c44] : memref<98xf32, #tpu.memory_space<smem>>
    %285 = vector.extract_strided_slice %10 {offsets = [0, 98], sizes = [1, 256], strides = [1, 1]} : vector<1x358xf32> to vector<1x256xf32>
    %286 = arith.mulf %285, %14 : vector<1x256xf32>
    %287 = vector.broadcast %284 : f32 to vector<1x256xf32>
    %288 = arith.mulf %287, %286 : vector<1x256xf32>
    %289 = arith.addf %283, %288 : vector<1x256xf32>
    %c45 = arith.constant 45 : index
    %290 = memref.load %arg2[%c45] : memref<98xf32, #tpu.memory_space<smem>>
    %291 = vector.extract_strided_slice %10 {offsets = [0, 99], sizes = [1, 256], strides = [1, 1]} : vector<1x358xf32> to vector<1x256xf32>
    %292 = arith.mulf %291, %15 : vector<1x256xf32>
    %293 = vector.broadcast %290 : f32 to vector<1x256xf32>
    %294 = arith.mulf %293, %292 : vector<1x256xf32>
    %295 = arith.addf %289, %294 : vector<1x256xf32>
    %c46 = arith.constant 46 : index
    %296 = memref.load %arg2[%c46] : memref<98xf32, #tpu.memory_space<smem>>
    %297 = vector.extract_strided_slice %10 {offsets = [0, 100], sizes = [1, 256], strides = [1, 1]} : vector<1x358xf32> to vector<1x256xf32>
    %298 = arith.mulf %297, %16 : vector<1x256xf32>
    %299 = vector.broadcast %296 : f32 to vector<1x256xf32>
    %300 = arith.mulf %299, %298 : vector<1x256xf32>
    %301 = arith.addf %295, %300 : vector<1x256xf32>
    %c47 = arith.constant 47 : index
    %302 = memref.load %arg2[%c47] : memref<98xf32, #tpu.memory_space<smem>>
    %303 = vector.extract_strided_slice %10 {offsets = [0, 101], sizes = [1, 256], strides = [1, 1]} : vector<1x358xf32> to vector<1x256xf32>
    %304 = arith.mulf %303, %17 : vector<1x256xf32>
    %305 = vector.broadcast %302 : f32 to vector<1x256xf32>
    %306 = arith.mulf %305, %304 : vector<1x256xf32>
    %307 = arith.addf %301, %306 : vector<1x256xf32>
    %c48 = arith.constant 48 : index
    %308 = memref.load %arg2[%c48] : memref<98xf32, #tpu.memory_space<smem>>
    %309 = vector.extract_strided_slice %10 {offsets = [0, 102], sizes = [1, 256], strides = [1, 1]} : vector<1x358xf32> to vector<1x256xf32>
    %310 = arith.mulf %309, %18 : vector<1x256xf32>
    %311 = vector.broadcast %308 : f32 to vector<1x256xf32>
    %312 = arith.mulf %311, %310 : vector<1x256xf32>
    %313 = arith.addf %307, %312 : vector<1x256xf32>
    %c49 = arith.constant 49 : index
    %314 = memref.load %arg2[%c49] : memref<98xf32, #tpu.memory_space<smem>>
    %315 = vector.extract_strided_slice %11 {offsets = [0, 0], sizes = [1, 256], strides = [1, 1]} : vector<1x358xf32> to vector<1x256xf32>
    %316 = arith.mulf %315, %12 : vector<1x256xf32>
    %317 = vector.broadcast %314 : f32 to vector<1x256xf32>
    %318 = arith.mulf %317, %316 : vector<1x256xf32>
    %319 = arith.addf %313, %318 : vector<1x256xf32>
    %c50 = arith.constant 50 : index
    %320 = memref.load %arg2[%c50] : memref<98xf32, #tpu.memory_space<smem>>
    %321 = vector.extract_strided_slice %11 {offsets = [0, 1], sizes = [1, 256], strides = [1, 1]} : vector<1x358xf32> to vector<1x256xf32>
    %322 = arith.mulf %321, %13 : vector<1x256xf32>
    %323 = vector.broadcast %320 : f32 to vector<1x256xf32>
    %324 = arith.mulf %323, %322 : vector<1x256xf32>
    %325 = arith.addf %319, %324 : vector<1x256xf32>
    %c51 = arith.constant 51 : index
    %326 = memref.load %arg2[%c51] : memref<98xf32, #tpu.memory_space<smem>>
    %327 = vector.extract_strided_slice %11 {offsets = [0, 2], sizes = [1, 256], strides = [1, 1]} : vector<1x358xf32> to vector<1x256xf32>
    %328 = arith.mulf %327, %14 : vector<1x256xf32>
    %329 = vector.broadcast %326 : f32 to vector<1x256xf32>
    %330 = arith.mulf %329, %328 : vector<1x256xf32>
    %331 = arith.addf %325, %330 : vector<1x256xf32>
    %c52 = arith.constant 52 : index
    %332 = memref.load %arg2[%c52] : memref<98xf32, #tpu.memory_space<smem>>
    %333 = vector.extract_strided_slice %11 {offsets = [0, 3], sizes = [1, 256], strides = [1, 1]} : vector<1x358xf32> to vector<1x256xf32>
    %334 = arith.mulf %333, %15 : vector<1x256xf32>
    %335 = vector.broadcast %332 : f32 to vector<1x256xf32>
    %336 = arith.mulf %335, %334 : vector<1x256xf32>
    %337 = arith.addf %331, %336 : vector<1x256xf32>
    %c53 = arith.constant 53 : index
    %338 = memref.load %arg2[%c53] : memref<98xf32, #tpu.memory_space<smem>>
    %339 = vector.extract_strided_slice %11 {offsets = [0, 4], sizes = [1, 256], strides = [1, 1]} : vector<1x358xf32> to vector<1x256xf32>
    %340 = arith.mulf %339, %16 : vector<1x256xf32>
    %341 = vector.broadcast %338 : f32 to vector<1x256xf32>
    %342 = arith.mulf %341, %340 : vector<1x256xf32>
    %343 = arith.addf %337, %342 : vector<1x256xf32>
    %c54 = arith.constant 54 : index
    %344 = memref.load %arg2[%c54] : memref<98xf32, #tpu.memory_space<smem>>
    %345 = vector.extract_strided_slice %11 {offsets = [0, 5], sizes = [1, 256], strides = [1, 1]} : vector<1x358xf32> to vector<1x256xf32>
    %346 = arith.mulf %345, %17 : vector<1x256xf32>
    %347 = vector.broadcast %344 : f32 to vector<1x256xf32>
    %348 = arith.mulf %347, %346 : vector<1x256xf32>
    %349 = arith.addf %343, %348 : vector<1x256xf32>
    %c55 = arith.constant 55 : index
    %350 = memref.load %arg2[%c55] : memref<98xf32, #tpu.memory_space<smem>>
    %351 = vector.extract_strided_slice %11 {offsets = [0, 6], sizes = [1, 256], strides = [1, 1]} : vector<1x358xf32> to vector<1x256xf32>
    %352 = arith.mulf %351, %18 : vector<1x256xf32>
    %353 = vector.broadcast %350 : f32 to vector<1x256xf32>
    %354 = arith.mulf %353, %352 : vector<1x256xf32>
    %355 = arith.addf %349, %354 : vector<1x256xf32>
    %c56 = arith.constant 56 : index
    %356 = memref.load %arg2[%c56] : memref<98xf32, #tpu.memory_space<smem>>
    %357 = vector.extract_strided_slice %11 {offsets = [0, 16], sizes = [1, 256], strides = [1, 1]} : vector<1x358xf32> to vector<1x256xf32>
    %358 = arith.mulf %357, %12 : vector<1x256xf32>
    %359 = vector.broadcast %356 : f32 to vector<1x256xf32>
    %360 = arith.mulf %359, %358 : vector<1x256xf32>
    %361 = arith.addf %355, %360 : vector<1x256xf32>
    %c57 = arith.constant 57 : index
    %362 = memref.load %arg2[%c57] : memref<98xf32, #tpu.memory_space<smem>>
    %363 = vector.extract_strided_slice %11 {offsets = [0, 17], sizes = [1, 256], strides = [1, 1]} : vector<1x358xf32> to vector<1x256xf32>
    %364 = arith.mulf %363, %13 : vector<1x256xf32>
    %365 = vector.broadcast %362 : f32 to vector<1x256xf32>
    %366 = arith.mulf %365, %364 : vector<1x256xf32>
    %367 = arith.addf %361, %366 : vector<1x256xf32>
    %c58 = arith.constant 58 : index
    %368 = memref.load %arg2[%c58] : memref<98xf32, #tpu.memory_space<smem>>
    %369 = vector.extract_strided_slice %11 {offsets = [0, 18], sizes = [1, 256], strides = [1, 1]} : vector<1x358xf32> to vector<1x256xf32>
    %370 = arith.mulf %369, %14 : vector<1x256xf32>
    %371 = vector.broadcast %368 : f32 to vector<1x256xf32>
    %372 = arith.mulf %371, %370 : vector<1x256xf32>
    %373 = arith.addf %367, %372 : vector<1x256xf32>
    %c59 = arith.constant 59 : index
    %374 = memref.load %arg2[%c59] : memref<98xf32, #tpu.memory_space<smem>>
    %375 = vector.extract_strided_slice %11 {offsets = [0, 19], sizes = [1, 256], strides = [1, 1]} : vector<1x358xf32> to vector<1x256xf32>
    %376 = arith.mulf %375, %15 : vector<1x256xf32>
    %377 = vector.broadcast %374 : f32 to vector<1x256xf32>
    %378 = arith.mulf %377, %376 : vector<1x256xf32>
    %379 = arith.addf %373, %378 : vector<1x256xf32>
    %c60 = arith.constant 60 : index
    %380 = memref.load %arg2[%c60] : memref<98xf32, #tpu.memory_space<smem>>
    %381 = vector.extract_strided_slice %11 {offsets = [0, 20], sizes = [1, 256], strides = [1, 1]} : vector<1x358xf32> to vector<1x256xf32>
    %382 = arith.mulf %381, %16 : vector<1x256xf32>
    %383 = vector.broadcast %380 : f32 to vector<1x256xf32>
    %384 = arith.mulf %383, %382 : vector<1x256xf32>
    %385 = arith.addf %379, %384 : vector<1x256xf32>
    %c61 = arith.constant 61 : index
    %386 = memref.load %arg2[%c61] : memref<98xf32, #tpu.memory_space<smem>>
    %387 = vector.extract_strided_slice %11 {offsets = [0, 21], sizes = [1, 256], strides = [1, 1]} : vector<1x358xf32> to vector<1x256xf32>
    %388 = arith.mulf %387, %17 : vector<1x256xf32>
    %389 = vector.broadcast %386 : f32 to vector<1x256xf32>
    %390 = arith.mulf %389, %388 : vector<1x256xf32>
    %391 = arith.addf %385, %390 : vector<1x256xf32>
    %c62 = arith.constant 62 : index
    %392 = memref.load %arg2[%c62] : memref<98xf32, #tpu.memory_space<smem>>
    %393 = vector.extract_strided_slice %11 {offsets = [0, 22], sizes = [1, 256], strides = [1, 1]} : vector<1x358xf32> to vector<1x256xf32>
    %394 = arith.mulf %393, %18 : vector<1x256xf32>
    %395 = vector.broadcast %392 : f32 to vector<1x256xf32>
    %396 = arith.mulf %395, %394 : vector<1x256xf32>
    %397 = arith.addf %391, %396 : vector<1x256xf32>
    %c63 = arith.constant 63 : index
    %398 = memref.load %arg2[%c63] : memref<98xf32, #tpu.memory_space<smem>>
    %399 = vector.extract_strided_slice %11 {offsets = [0, 32], sizes = [1, 256], strides = [1, 1]} : vector<1x358xf32> to vector<1x256xf32>
    %400 = arith.mulf %399, %12 : vector<1x256xf32>
    %401 = vector.broadcast %398 : f32 to vector<1x256xf32>
    %402 = arith.mulf %401, %400 : vector<1x256xf32>
    %403 = arith.addf %397, %402 : vector<1x256xf32>
    %c64 = arith.constant 64 : index
    %404 = memref.load %arg2[%c64] : memref<98xf32, #tpu.memory_space<smem>>
    %405 = vector.extract_strided_slice %11 {offsets = [0, 33], sizes = [1, 256], strides = [1, 1]} : vector<1x358xf32> to vector<1x256xf32>
    %406 = arith.mulf %405, %13 : vector<1x256xf32>
    %407 = vector.broadcast %404 : f32 to vector<1x256xf32>
    %408 = arith.mulf %407, %406 : vector<1x256xf32>
    %409 = arith.addf %403, %408 : vector<1x256xf32>
    %c65 = arith.constant 65 : index
    %410 = memref.load %arg2[%c65] : memref<98xf32, #tpu.memory_space<smem>>
    %411 = vector.extract_strided_slice %11 {offsets = [0, 34], sizes = [1, 256], strides = [1, 1]} : vector<1x358xf32> to vector<1x256xf32>
    %412 = arith.mulf %411, %14 : vector<1x256xf32>
    %413 = vector.broadcast %410 : f32 to vector<1x256xf32>
    %414 = arith.mulf %413, %412 : vector<1x256xf32>
    %415 = arith.addf %409, %414 : vector<1x256xf32>
    %c66 = arith.constant 66 : index
    %416 = memref.load %arg2[%c66] : memref<98xf32, #tpu.memory_space<smem>>
    %417 = vector.extract_strided_slice %11 {offsets = [0, 35], sizes = [1, 256], strides = [1, 1]} : vector<1x358xf32> to vector<1x256xf32>
    %418 = arith.mulf %417, %15 : vector<1x256xf32>
    %419 = vector.broadcast %416 : f32 to vector<1x256xf32>
    %420 = arith.mulf %419, %418 : vector<1x256xf32>
    %421 = arith.addf %415, %420 : vector<1x256xf32>
    %c67 = arith.constant 67 : index
    %422 = memref.load %arg2[%c67] : memref<98xf32, #tpu.memory_space<smem>>
    %423 = vector.extract_strided_slice %11 {offsets = [0, 36], sizes = [1, 256], strides = [1, 1]} : vector<1x358xf32> to vector<1x256xf32>
    %424 = arith.mulf %423, %16 : vector<1x256xf32>
    %425 = vector.broadcast %422 : f32 to vector<1x256xf32>
    %426 = arith.mulf %425, %424 : vector<1x256xf32>
    %427 = arith.addf %421, %426 : vector<1x256xf32>
    %c68 = arith.constant 68 : index
    %428 = memref.load %arg2[%c68] : memref<98xf32, #tpu.memory_space<smem>>
    %429 = vector.extract_strided_slice %11 {offsets = [0, 37], sizes = [1, 256], strides = [1, 1]} : vector<1x358xf32> to vector<1x256xf32>
    %430 = arith.mulf %429, %17 : vector<1x256xf32>
    %431 = vector.broadcast %428 : f32 to vector<1x256xf32>
    %432 = arith.mulf %431, %430 : vector<1x256xf32>
    %433 = arith.addf %427, %432 : vector<1x256xf32>
    %c69 = arith.constant 69 : index
    %434 = memref.load %arg2[%c69] : memref<98xf32, #tpu.memory_space<smem>>
    %435 = vector.extract_strided_slice %11 {offsets = [0, 38], sizes = [1, 256], strides = [1, 1]} : vector<1x358xf32> to vector<1x256xf32>
    %436 = arith.mulf %435, %18 : vector<1x256xf32>
    %437 = vector.broadcast %434 : f32 to vector<1x256xf32>
    %438 = arith.mulf %437, %436 : vector<1x256xf32>
    %439 = arith.addf %433, %438 : vector<1x256xf32>
    %c70 = arith.constant 70 : index
    %440 = memref.load %arg2[%c70] : memref<98xf32, #tpu.memory_space<smem>>
    %441 = vector.extract_strided_slice %11 {offsets = [0, 48], sizes = [1, 256], strides = [1, 1]} : vector<1x358xf32> to vector<1x256xf32>
    %442 = arith.mulf %441, %12 : vector<1x256xf32>
    %443 = vector.broadcast %440 : f32 to vector<1x256xf32>
    %444 = arith.mulf %443, %442 : vector<1x256xf32>
    %445 = arith.addf %439, %444 : vector<1x256xf32>
    %c71 = arith.constant 71 : index
    %446 = memref.load %arg2[%c71] : memref<98xf32, #tpu.memory_space<smem>>
    %447 = vector.extract_strided_slice %11 {offsets = [0, 49], sizes = [1, 256], strides = [1, 1]} : vector<1x358xf32> to vector<1x256xf32>
    %448 = arith.mulf %447, %13 : vector<1x256xf32>
    %449 = vector.broadcast %446 : f32 to vector<1x256xf32>
    %450 = arith.mulf %449, %448 : vector<1x256xf32>
    %451 = arith.addf %445, %450 : vector<1x256xf32>
    %c72 = arith.constant 72 : index
    %452 = memref.load %arg2[%c72] : memref<98xf32, #tpu.memory_space<smem>>
    %453 = vector.extract_strided_slice %11 {offsets = [0, 50], sizes = [1, 256], strides = [1, 1]} : vector<1x358xf32> to vector<1x256xf32>
    %454 = arith.mulf %453, %14 : vector<1x256xf32>
    %455 = vector.broadcast %452 : f32 to vector<1x256xf32>
    %456 = arith.mulf %455, %454 : vector<1x256xf32>
    %457 = arith.addf %451, %456 : vector<1x256xf32>
    %c73 = arith.constant 73 : index
    %458 = memref.load %arg2[%c73] : memref<98xf32, #tpu.memory_space<smem>>
    %459 = vector.extract_strided_slice %11 {offsets = [0, 51], sizes = [1, 256], strides = [1, 1]} : vector<1x358xf32> to vector<1x256xf32>
    %460 = arith.mulf %459, %15 : vector<1x256xf32>
    %461 = vector.broadcast %458 : f32 to vector<1x256xf32>
    %462 = arith.mulf %461, %460 : vector<1x256xf32>
    %463 = arith.addf %457, %462 : vector<1x256xf32>
    %c74 = arith.constant 74 : index
    %464 = memref.load %arg2[%c74] : memref<98xf32, #tpu.memory_space<smem>>
    %465 = vector.extract_strided_slice %11 {offsets = [0, 52], sizes = [1, 256], strides = [1, 1]} : vector<1x358xf32> to vector<1x256xf32>
    %466 = arith.mulf %465, %16 : vector<1x256xf32>
    %467 = vector.broadcast %464 : f32 to vector<1x256xf32>
    %468 = arith.mulf %467, %466 : vector<1x256xf32>
    %469 = arith.addf %463, %468 : vector<1x256xf32>
    %c75 = arith.constant 75 : index
    %470 = memref.load %arg2[%c75] : memref<98xf32, #tpu.memory_space<smem>>
    %471 = vector.extract_strided_slice %11 {offsets = [0, 53], sizes = [1, 256], strides = [1, 1]} : vector<1x358xf32> to vector<1x256xf32>
    %472 = arith.mulf %471, %17 : vector<1x256xf32>
    %473 = vector.broadcast %470 : f32 to vector<1x256xf32>
    %474 = arith.mulf %473, %472 : vector<1x256xf32>
    %475 = arith.addf %469, %474 : vector<1x256xf32>
    %c76 = arith.constant 76 : index
    %476 = memref.load %arg2[%c76] : memref<98xf32, #tpu.memory_space<smem>>
    %477 = vector.extract_strided_slice %11 {offsets = [0, 54], sizes = [1, 256], strides = [1, 1]} : vector<1x358xf32> to vector<1x256xf32>
    %478 = arith.mulf %477, %18 : vector<1x256xf32>
    %479 = vector.broadcast %476 : f32 to vector<1x256xf32>
    %480 = arith.mulf %479, %478 : vector<1x256xf32>
    %481 = arith.addf %475, %480 : vector<1x256xf32>
    %c77 = arith.constant 77 : index
    %482 = memref.load %arg2[%c77] : memref<98xf32, #tpu.memory_space<smem>>
    %483 = vector.extract_strided_slice %11 {offsets = [0, 64], sizes = [1, 256], strides = [1, 1]} : vector<1x358xf32> to vector<1x256xf32>
    %484 = arith.mulf %483, %12 : vector<1x256xf32>
    %485 = vector.broadcast %482 : f32 to vector<1x256xf32>
    %486 = arith.mulf %485, %484 : vector<1x256xf32>
    %487 = arith.addf %481, %486 : vector<1x256xf32>
    %c78 = arith.constant 78 : index
    %488 = memref.load %arg2[%c78] : memref<98xf32, #tpu.memory_space<smem>>
    %489 = vector.extract_strided_slice %11 {offsets = [0, 65], sizes = [1, 256], strides = [1, 1]} : vector<1x358xf32> to vector<1x256xf32>
    %490 = arith.mulf %489, %13 : vector<1x256xf32>
    %491 = vector.broadcast %488 : f32 to vector<1x256xf32>
    %492 = arith.mulf %491, %490 : vector<1x256xf32>
    %493 = arith.addf %487, %492 : vector<1x256xf32>
    %c79 = arith.constant 79 : index
    %494 = memref.load %arg2[%c79] : memref<98xf32, #tpu.memory_space<smem>>
    %495 = vector.extract_strided_slice %11 {offsets = [0, 66], sizes = [1, 256], strides = [1, 1]} : vector<1x358xf32> to vector<1x256xf32>
    %496 = arith.mulf %495, %14 : vector<1x256xf32>
    %497 = vector.broadcast %494 : f32 to vector<1x256xf32>
    %498 = arith.mulf %497, %496 : vector<1x256xf32>
    %499 = arith.addf %493, %498 : vector<1x256xf32>
    %c80 = arith.constant 80 : index
    %500 = memref.load %arg2[%c80] : memref<98xf32, #tpu.memory_space<smem>>
    %501 = vector.extract_strided_slice %11 {offsets = [0, 67], sizes = [1, 256], strides = [1, 1]} : vector<1x358xf32> to vector<1x256xf32>
    %502 = arith.mulf %501, %15 : vector<1x256xf32>
    %503 = vector.broadcast %500 : f32 to vector<1x256xf32>
    %504 = arith.mulf %503, %502 : vector<1x256xf32>
    %505 = arith.addf %499, %504 : vector<1x256xf32>
    %c81 = arith.constant 81 : index
    %506 = memref.load %arg2[%c81] : memref<98xf32, #tpu.memory_space<smem>>
    %507 = vector.extract_strided_slice %11 {offsets = [0, 68], sizes = [1, 256], strides = [1, 1]} : vector<1x358xf32> to vector<1x256xf32>
    %508 = arith.mulf %507, %16 : vector<1x256xf32>
    %509 = vector.broadcast %506 : f32 to vector<1x256xf32>
    %510 = arith.mulf %509, %508 : vector<1x256xf32>
    %511 = arith.addf %505, %510 : vector<1x256xf32>
    %c82 = arith.constant 82 : index
    %512 = memref.load %arg2[%c82] : memref<98xf32, #tpu.memory_space<smem>>
    %513 = vector.extract_strided_slice %11 {offsets = [0, 69], sizes = [1, 256], strides = [1, 1]} : vector<1x358xf32> to vector<1x256xf32>
    %514 = arith.mulf %513, %17 : vector<1x256xf32>
    %515 = vector.broadcast %512 : f32 to vector<1x256xf32>
    %516 = arith.mulf %515, %514 : vector<1x256xf32>
    %517 = arith.addf %511, %516 : vector<1x256xf32>
    %c83 = arith.constant 83 : index
    %518 = memref.load %arg2[%c83] : memref<98xf32, #tpu.memory_space<smem>>
    %519 = vector.extract_strided_slice %11 {offsets = [0, 70], sizes = [1, 256], strides = [1, 1]} : vector<1x358xf32> to vector<1x256xf32>
    %520 = arith.mulf %519, %18 : vector<1x256xf32>
    %521 = vector.broadcast %518 : f32 to vector<1x256xf32>
    %522 = arith.mulf %521, %520 : vector<1x256xf32>
    %523 = arith.addf %517, %522 : vector<1x256xf32>
    %c84 = arith.constant 84 : index
    %524 = memref.load %arg2[%c84] : memref<98xf32, #tpu.memory_space<smem>>
    %525 = vector.extract_strided_slice %11 {offsets = [0, 80], sizes = [1, 256], strides = [1, 1]} : vector<1x358xf32> to vector<1x256xf32>
    %526 = arith.mulf %525, %12 : vector<1x256xf32>
    %527 = vector.broadcast %524 : f32 to vector<1x256xf32>
    %528 = arith.mulf %527, %526 : vector<1x256xf32>
    %529 = arith.addf %523, %528 : vector<1x256xf32>
    %c85 = arith.constant 85 : index
    %530 = memref.load %arg2[%c85] : memref<98xf32, #tpu.memory_space<smem>>
    %531 = vector.extract_strided_slice %11 {offsets = [0, 81], sizes = [1, 256], strides = [1, 1]} : vector<1x358xf32> to vector<1x256xf32>
    %532 = arith.mulf %531, %13 : vector<1x256xf32>
    %533 = vector.broadcast %530 : f32 to vector<1x256xf32>
    %534 = arith.mulf %533, %532 : vector<1x256xf32>
    %535 = arith.addf %529, %534 : vector<1x256xf32>
    %c86 = arith.constant 86 : index
    %536 = memref.load %arg2[%c86] : memref<98xf32, #tpu.memory_space<smem>>
    %537 = vector.extract_strided_slice %11 {offsets = [0, 82], sizes = [1, 256], strides = [1, 1]} : vector<1x358xf32> to vector<1x256xf32>
    %538 = arith.mulf %537, %14 : vector<1x256xf32>
    %539 = vector.broadcast %536 : f32 to vector<1x256xf32>
    %540 = arith.mulf %539, %538 : vector<1x256xf32>
    %541 = arith.addf %535, %540 : vector<1x256xf32>
    %c87 = arith.constant 87 : index
    %542 = memref.load %arg2[%c87] : memref<98xf32, #tpu.memory_space<smem>>
    %543 = vector.extract_strided_slice %11 {offsets = [0, 83], sizes = [1, 256], strides = [1, 1]} : vector<1x358xf32> to vector<1x256xf32>
    %544 = arith.mulf %543, %15 : vector<1x256xf32>
    %545 = vector.broadcast %542 : f32 to vector<1x256xf32>
    %546 = arith.mulf %545, %544 : vector<1x256xf32>
    %547 = arith.addf %541, %546 : vector<1x256xf32>
    %c88 = arith.constant 88 : index
    %548 = memref.load %arg2[%c88] : memref<98xf32, #tpu.memory_space<smem>>
    %549 = vector.extract_strided_slice %11 {offsets = [0, 84], sizes = [1, 256], strides = [1, 1]} : vector<1x358xf32> to vector<1x256xf32>
    %550 = arith.mulf %549, %16 : vector<1x256xf32>
    %551 = vector.broadcast %548 : f32 to vector<1x256xf32>
    %552 = arith.mulf %551, %550 : vector<1x256xf32>
    %553 = arith.addf %547, %552 : vector<1x256xf32>
    %c89 = arith.constant 89 : index
    %554 = memref.load %arg2[%c89] : memref<98xf32, #tpu.memory_space<smem>>
    %555 = vector.extract_strided_slice %11 {offsets = [0, 85], sizes = [1, 256], strides = [1, 1]} : vector<1x358xf32> to vector<1x256xf32>
    %556 = arith.mulf %555, %17 : vector<1x256xf32>
    %557 = vector.broadcast %554 : f32 to vector<1x256xf32>
    %558 = arith.mulf %557, %556 : vector<1x256xf32>
    %559 = arith.addf %553, %558 : vector<1x256xf32>
    %c90 = arith.constant 90 : index
    %560 = memref.load %arg2[%c90] : memref<98xf32, #tpu.memory_space<smem>>
    %561 = vector.extract_strided_slice %11 {offsets = [0, 86], sizes = [1, 256], strides = [1, 1]} : vector<1x358xf32> to vector<1x256xf32>
    %562 = arith.mulf %561, %18 : vector<1x256xf32>
    %563 = vector.broadcast %560 : f32 to vector<1x256xf32>
    %564 = arith.mulf %563, %562 : vector<1x256xf32>
    %565 = arith.addf %559, %564 : vector<1x256xf32>
    %c91 = arith.constant 91 : index
    %566 = memref.load %arg2[%c91] : memref<98xf32, #tpu.memory_space<smem>>
    %567 = vector.extract_strided_slice %11 {offsets = [0, 96], sizes = [1, 256], strides = [1, 1]} : vector<1x358xf32> to vector<1x256xf32>
    %568 = arith.mulf %567, %12 : vector<1x256xf32>
    %569 = vector.broadcast %566 : f32 to vector<1x256xf32>
    %570 = arith.mulf %569, %568 : vector<1x256xf32>
    %571 = arith.addf %565, %570 : vector<1x256xf32>
    %c92 = arith.constant 92 : index
    %572 = memref.load %arg2[%c92] : memref<98xf32, #tpu.memory_space<smem>>
    %573 = vector.extract_strided_slice %11 {offsets = [0, 97], sizes = [1, 256], strides = [1, 1]} : vector<1x358xf32> to vector<1x256xf32>
    %574 = arith.mulf %573, %13 : vector<1x256xf32>
    %575 = vector.broadcast %572 : f32 to vector<1x256xf32>
    %576 = arith.mulf %575, %574 : vector<1x256xf32>
    %577 = arith.addf %571, %576 : vector<1x256xf32>
    %c93 = arith.constant 93 : index
    %578 = memref.load %arg2[%c93] : memref<98xf32, #tpu.memory_space<smem>>
    %579 = vector.extract_strided_slice %11 {offsets = [0, 98], sizes = [1, 256], strides = [1, 1]} : vector<1x358xf32> to vector<1x256xf32>
    %580 = arith.mulf %579, %14 : vector<1x256xf32>
    %581 = vector.broadcast %578 : f32 to vector<1x256xf32>
    %582 = arith.mulf %581, %580 : vector<1x256xf32>
    %583 = arith.addf %577, %582 : vector<1x256xf32>
    %c94 = arith.constant 94 : index
    %584 = memref.load %arg2[%c94] : memref<98xf32, #tpu.memory_space<smem>>
    %585 = vector.extract_strided_slice %11 {offsets = [0, 99], sizes = [1, 256], strides = [1, 1]} : vector<1x358xf32> to vector<1x256xf32>
    %586 = arith.mulf %585, %15 : vector<1x256xf32>
    %587 = vector.broadcast %584 : f32 to vector<1x256xf32>
    %588 = arith.mulf %587, %586 : vector<1x256xf32>
    %589 = arith.addf %583, %588 : vector<1x256xf32>
    %c95 = arith.constant 95 : index
    %590 = memref.load %arg2[%c95] : memref<98xf32, #tpu.memory_space<smem>>
    %591 = vector.extract_strided_slice %11 {offsets = [0, 100], sizes = [1, 256], strides = [1, 1]} : vector<1x358xf32> to vector<1x256xf32>
    %592 = arith.mulf %591, %16 : vector<1x256xf32>
    %593 = vector.broadcast %590 : f32 to vector<1x256xf32>
    %594 = arith.mulf %593, %592 : vector<1x256xf32>
    %595 = arith.addf %589, %594 : vector<1x256xf32>
    %c96 = arith.constant 96 : index
    %596 = memref.load %arg2[%c96] : memref<98xf32, #tpu.memory_space<smem>>
    %597 = vector.extract_strided_slice %11 {offsets = [0, 101], sizes = [1, 256], strides = [1, 1]} : vector<1x358xf32> to vector<1x256xf32>
    %598 = arith.mulf %597, %17 : vector<1x256xf32>
    %599 = vector.broadcast %596 : f32 to vector<1x256xf32>
    %600 = arith.mulf %599, %598 : vector<1x256xf32>
    %601 = arith.addf %595, %600 : vector<1x256xf32>
    %c97 = arith.constant 97 : index
    %602 = memref.load %arg2[%c97] : memref<98xf32, #tpu.memory_space<smem>>
    %603 = vector.extract_strided_slice %11 {offsets = [0, 102], sizes = [1, 256], strides = [1, 1]} : vector<1x358xf32> to vector<1x256xf32>
    %604 = arith.mulf %603, %18 : vector<1x256xf32>
    %605 = vector.broadcast %602 : f32 to vector<1x256xf32>
    %606 = arith.mulf %605, %604 : vector<1x256xf32>
    %607 = arith.addf %601, %606 : vector<1x256xf32>
    %608 = arith.negf %607 : vector<1x256xf32>
    %609 = math.exp %608 : vector<1x256xf32>
    %cst_23 = arith.constant 1.000000e+00 : f32
    %610 = vector.broadcast %cst_23 : f32 to vector<1x256xf32>
    %611 = arith.addf %610, %609 : vector<1x256xf32>
    %612 = arith.divf %610, %611 : vector<1x256xf32>
    %c0_24 = arith.constant 0 : index
    %c0_25 = arith.constant 0 : index
    %c0_26 = arith.constant 0 : index
    %613 = vector.load %arg1[%c0_24, %c0_25, %c0_26] : memref<1x4x256xf32, #tpu.memory_space<vmem>>, vector<1x4x256xf32>
    %614 = vector.shape_cast %612 : vector<1x256xf32> to vector<1x1x256xf32>
    %615 = vector.broadcast %614 : vector<1x1x256xf32> to vector<1x4x256xf32>
    %616 = arith.mulf %613, %615 : vector<1x4x256xf32>
    %c0_27 = arith.constant 0 : index
    %c0_28 = arith.constant 0 : index
    %c0_29 = arith.constant 0 : index
    %617 = vector.load %arg4[%c0_27, %c0_28, %c0_29] : memref<1x4x256xf32, #tpu.memory_space<vmem>>, vector<1x4x256xf32>
    tpu.vector_store %arg4[%c0_27, %c0_28, %c0_29], %616 {strides = array<i32>} : memref<1x4x256xf32, #tpu.memory_space<vmem>>, vector<1x4x256xf32>,
    return
  }
  func.func @transform_0(%arg0: i32) -> (i32, i32, i32) {
    %c0_i32 = arith.constant 0 : i32
    %c0_i32_0 = arith.constant 0 : i32
    %c0_i32_1 = arith.constant 0 : i32
    return %arg0, %c0_i32, %c0_i32_0 : i32, i32, i32
  }
  func.func @transform_1(%arg0: i32) -> i32 {
    %c0_i32 = arith.constant 0 : i32
    %c0_i32_0 = arith.constant 0 : i32
    return %c0_i32 : i32
  }
  func.func @transform_2(%arg0: i32) -> (i32, i32) {
    %c0_i32 = arith.constant 0 : i32
    %c0_i32_0 = arith.constant 0 : i32
    %c0_i32_1 = arith.constant 0 : i32
    return %c0_i32, %c0_i32_0 : i32, i32
  }
  func.func @transform_3(%arg0: i32) -> (i32, i32, i32) {
    %c0_i32 = arith.constant 0 : i32
    %c0_i32_0 = arith.constant 0 : i32
    %c0_i32_1 = arith.constant 0 : i32
    return %arg0, %c0_i32, %c0_i32_0 : i32, i32, i32
  }
}

</mosaic_0001>

<llo_original>
// kernel: tpu_custom_call.1
$region0: #{tpu_custom_call.1}
  #allocation0 [shape = 'u32[]', space=smem, size = 0x4, offset = 0x4, fixed_abs, tag = 'smem constant byte address 0x4 - core index']
  #allocation1 [shape = 'u32[144,128]{1,0:T(1,128)}', space=vmem, size = 0x12000, scoped, tag = 'internal scratch']
  %s0 = inlined_call_operand.hbm [shape: f32[2,4,256], index: 0, kind: input, shape index: {}]
  %s1 = inlined_call_operand.vmem [shape: f32[98], index: 1, kind: input, shape index: {}]
  %s2 = inlined_call_operand.hbm [shape: f32[7,256], index: 2, kind: input, shape index: {}]
  %s3 = inlined_call_operand.hbm [shape: f32[2,4,256], index: 3, kind: output, shape index: {}]
  %s4 = sld [smem:[#allocation0]]
  $region57: #{tpu_custom_call.1} parent=0
    _
  %s6 = ssub.s32 1, %s4
  %s7 = scalar_select 0, %s6, %s4
  $region1: #{tpu_custom_call.1} parent=0
    #allocation2 [shape = 'u8[8192]{0}', space=vmem, size = 0x2000, scoped, tag = 'input window, operand 0']
    #allocation3 [shape = 's32[2]{0}', space=sflag, size = 0x8, scoped, tag = 'scoped memory for tpu_custom_call.1']
    #allocation4 [shape = 's32[2]{0}', space=sflag, size = 0x8, scoped, tag = 'scoped memory for tpu_custom_call.1']
    #allocation5 [shape = 's32[2]{0}', space=sflag, size = 0x8, scoped, tag = 'scoped memory for tpu_custom_call.1']
    #allocation6 [shape = 'u8[512]{0}', space=smem, size = 0x200, scoped, tag = 'input window, operand 1, single buffered']
    #allocation7 [shape = 'u8[8192]{0}', space=vmem, size = 0x2000, scoped, tag = 'input window, operand 2, single buffered']
    #allocation8 [shape = 's32[1]{0}', space=sflag, size = 0x4, scoped, tag = 'scoped memory for tpu_custom_call.1']
    #allocation9 [shape = 'u8[8192]{0}', space=vmem, size = 0x2000, scoped, tag = 'output window, operand 0']
    %8 = vsyncpa [#allocation3], 0
    %s9 = scalar_lea.sflag [#allocation3], 1
    %10 = vsyncpa %s9, 0
    %11 = vsyncpa [#allocation5], 0
    %12 = vsyncpa [#allocation8], 0
    %13 = vsyncpa [#allocation4], 0
    %s14 = scalar_lea.sflag [#allocation4], 1
    %15 = vsyncpa %s14, 0
    loop: start=0, step=1, limit=4
    $region2: #{tpu_custom_call.1} parent=1 // loop_pre_header
      _
    $region3: #{tpu_custom_call.1} parent=1 // loop_header
      %s17 = sphi 0, %s21
      %p18 = scmp.ge.s32.totalorder %s17, 4
      %s27 = sphi 0, %s29
      %s30 = sphi 0, %s27
      %s31 = sphi 0, %s30
      %s47 = sphi 0, %s31
      %s51 = sphi 0, %s51
      %s53 = sphi 0, %s51
      %s54 = sphi 0, %s53
      %s68 = sphi 0, %s54
      %s72 = sphi 0, %s72
      %s74 = sphi 0, %s72
      %s75 = sphi 0, %s74
      %s89 = sphi 0, %s75
      %s95 = sphi 0, %s97
      %s98 = sphi 0, %s95
      %s99 = sphi 0, %s98
      %s115 = sphi 0, %s99
    $region4: #{tpu_custom_call.1} parent=1 // loop_header_branch
      %20 = sbr.rel (%p18) target = $region8
    $region5: #{tpu_custom_call.1} parent=1 // loop_body
      %s22 = ssub.s32 %s17, 1
      %s23 = ssub.s32 %s17, 2
      %s24 = sadd.s32 %s17, 1
      %s25 = ssub.s32 %s17, %s24
      %p26 = scmp.eq.s32.totalorder %s25, 0
      %s28 = sadd.s32 %s27, 1
      %s29 = scalar_select %p26, %s27, %s28
      %p32 = pneg %p26
      %p33 = scmp.eq.s32.totalorder %s17, 1
      %p34 = por %p32, %p33
      %p35 = scmp.ne.s32.totalorder %s27, %s30
      %p36 = scmp.eq.s32.totalorder %s17, 0
      %p37 = por %p35, %p36
      %p38 = scmp.ne.s32.totalorder %s27, %s30
      %p39 = scmp.eq.s32.totalorder %s22, 1
      %p40 = por %p38, %p39
      %p41 = scmp.ne.s32.totalorder %s30, %s31
      %p42 = scmp.eq.s32.totalorder %s22, 0
      %p43 = por %p41, %p42
      %p44 = scmp.ne.s32.totalorder %s30, %s31
      %p45 = scmp.eq.s32.totalorder %s23, 1
      %p46 = por %p44, %p45
      %p48 = scmp.ne.s32.totalorder %s31, %s47
      %p49 = scmp.eq.s32.totalorder %s23, 0
      %p50 = por %p48, %p49
      %s52 = sadd.s32 %s51, 1
      %p55 = scmp.eq.s32.totalorder %s17, 1
      %p56 = scmp.ne.s32.totalorder %s51, %s53
      %p57 = scmp.eq.s32.totalorder %s17, 0
      %p58 = por %p56, %p57
      %p59 = scmp.ne.s32.totalorder %s51, %s53
      %p60 = scmp.eq.s32.totalorder %s22, 1
      %p61 = por %p59, %p60
      %p62 = scmp.ne.s32.totalorder %s53, %s54
      %p63 = scmp.eq.s32.totalorder %s22, 0
      %p64 = por %p62, %p63
      %p65 = scmp.ne.s32.totalorder %s53, %s54
      %p66 = scmp.eq.s32.totalorder %s23, 1
      %p67 = por %p65, %p66
      %p69 = scmp.ne.s32.totalorder %s54, %s68
      %p70 = scmp.eq.s32.totalorder %s23, 0
      %p71 = por %p69, %p70
      %s73 = sadd.s32 %s72, 1
      %p76 = scmp.eq.s32.totalorder %s17, 1
      %p77 = scmp.ne.s32.totalorder %s72, %s74
      %p78 = scmp.eq.s32.totalorder %s17, 0
      %p79 = por %p77, %p78
      %p80 = scmp.ne.s32.totalorder %s72, %s74
      %p81 = scmp.eq.s32.totalorder %s22, 1
      %p82 = por %p80, %p81
      %p83 = scmp.ne.s32.totalorder %s74, %s75
      %p84 = scmp.eq.s32.totalorder %s22, 0
      %p85 = por %p83, %p84
      %p86 = scmp.ne.s32.totalorder %s74, %s75
      %p87 = scmp.eq.s32.totalorder %s23, 1
      %p88 = por %p86, %p87
      %p90 = scmp.ne.s32.totalorder %s75, %s89
      %p91 = scmp.eq.s32.totalorder %s23, 0
      %p92 = por %p90, %p91
      %s93 = ssub.s32 %s17, %s24
      %p94 = scmp.eq.s32.totalorder %s93, 0
      %s96 = sadd.s32 %s95, 1
      %s97 = scalar_select %p94, %s95, %s96
      %p100 = pneg %p94
      %p101 = scmp.eq.s32.totalorder %s17, 1
      %p102 = por %p100, %p101
      %p103 = scmp.ne.s32.totalorder %s95, %s98
      %p104 = scmp.eq.s32.totalorder %s17, 0
      %p105 = por %p103, %p104
      %p106 = scmp.ne.s32.totalorder %s95, %s98
      %p107 = scmp.eq.s32.totalorder %s22, 1
      %p108 = por %p106, %p107
      %p109 = scmp.ne.s32.totalorder %s98, %s99
      %p110 = scmp.eq.s32.totalorder %s22, 0
      %p111 = por %p109, %p110
      %p112 = scmp.ne.s32.totalorder %s98, %s99
      %p113 = scmp.eq.s32.totalorder %s23, 1
      %p114 = por %p112, %p113
      %p116 = scmp.ne.s32.totalorder %s99, %s115
      %p117 = scmp.eq.s32.totalorder %s23, 0
      %p118 = por %p116, %p117
      %p119 = scmp.le.s32.totalorder 1, %s17
      %p120 = scmp.lt.s32.totalorder %s17, 3
      %p121 = pnand %p119, %p120
      %p122 = pneg %p121
      // Predicated region
      $region9: #{tpu_custom_call.1} parent=5 // pred_check
        _
      $region10: #{tpu_custom_call.1} parent=5 // pred_check_branch
        %124 = sbr.rel (%p121) target = $region12
      $region11: #{tpu_custom_call.1} parent=5 // pred_region
        %s125 = ssub.s32 %s17, 1
        // Predicated region
        $region13: #{tpu_custom_call.1} parent=11 // pred_check
          %p126 = pneg %p64
        $region14: #{tpu_custom_call.1} parent=11 // pred_check_branch
          %128 = sbr.rel (%p126) target = $region16
        $region15: #{tpu_custom_call.1} parent=11 // pred_region
          %s130 = ssub.s32 16, 16
          %131 = vsyncadd [#allocation5], %s130
          %s133 = sshll.u32 %s1, 4
          %s134 = int_to_ptr.vmem [resolvable:$true] %s133
          %136 = dma.vmem_to_smem %s134, 16, [#allocation6], [#allocation5]
        $region16: #{tpu_custom_call.1} parent=11 // pred_fallthru
          _
        // Predicated region
        $region17: #{tpu_custom_call.1} parent=11 // pred_check
          %p137 = pneg %p85
        $region18: #{tpu_custom_call.1} parent=11 // pred_check_branch
          %139 = sbr.rel (%p137) target = $region20
        $region19: #{tpu_custom_call.1} parent=11 // pred_region
          %s141 = ssub.s32 256, 256
          %142 = vsyncadd [#allocation8], %s141
          %s144 = sshll.u32 [#allocation7], 4
          %s145 = int_to_ptr.vmem [resolvable:$true] %s144
          %147 = dma.hbm_to_vmem [thread:$0]  %s2, 256, %s145, [#allocation8]
        $region20: #{tpu_custom_call.1} parent=11 // pred_fallthru
          _
      $region12: #{tpu_custom_call.1} parent=5 // pred_fallthru
        _
      %p148 = scmp.lt.s32.totalorder %s17, 2
      // Predicated region
      $region21: #{tpu_custom_call.1} parent=5 // pred_check
        %p149 = pneg %p148
      $region22: #{tpu_custom_call.1} parent=5 // pred_check_branch
        %151 = sbr.rel (%p149) target = $region24
      $region23: #{tpu_custom_call.1} parent=5 // pred_region
        // Predicated region
        $region25: #{tpu_custom_call.1} parent=23 // pred_check
          %p152 = pneg %p37
        $region26: #{tpu_custom_call.1} parent=23 // pred_check_branch
          %154 = sbr.rel (%p152) target = $region28
        $region27: #{tpu_custom_call.1} parent=23 // pred_region
          %s155 = sand.u32 %s27, 1
          %s156 = scalar_lea.sflag [#allocation3], %s155
          %s157 = sand.u32 %s27, 1
          %s158 = smul.addr %s157, 8
          %s159 = scalar_lea.vmem [#allocation2], %s158
          %s161 = ssub.s32 128, 128
          %162 = vsyncadd %s156, %s161
          %s163 = smul.addr %s17, 2
          %s164 = smul.addr %s163, 64
          %s165 = scalar_lea.hbm %s0, %s164
          %s167 = sshll.u32 %s159, 4
          %s168 = int_to_ptr.vmem [resolvable:$true] %s167
          %170 = dma.hbm_to_vmem [thread:$0]  %s165, 128, %s168, %s156
        $region28: #{tpu_custom_call.1} parent=23 // pred_fallthru
          _
      $region24: #{tpu_custom_call.1} parent=5 // pred_fallthru
        _
      %p171 = scmp.le.s32.totalorder 1, %s17
      %p172 = scmp.lt.s32.totalorder %s17, 3
      %p173 = pnand %p171, %p172
      %p174 = pneg %p173
      // Predicated region
      $region29: #{tpu_custom_call.1} parent=5 // pred_check
        _
      $region30: #{tpu_custom_call.1} parent=5 // pred_check_branch
        %176 = sbr.rel (%p173) target = $region32
      $region31: #{tpu_custom_call.1} parent=5 // pred_region
        %s177 = ssub.s32 %s17, 1
        %s178 = sand.u32 %s30, 1
        %s179 = scalar_lea.sflag [#allocation3], %s178
        %s180 = sand.u32 %s30, 1
        %s181 = smul.addr %s180, 8
        %s182 = scalar_lea.vmem [#allocation2], %s181
        // Predicated region
        $region33: #{tpu_custom_call.1} parent=31 // pred_check
          %p183 = pneg %p43
        $region34: #{tpu_custom_call.1} parent=31 // pred_check_branch
          %185 = sbr.rel (%p183) target = $region36
        $region35: #{tpu_custom_call.1} parent=31 // pred_region
          %186 = dma.done %s179, 128
        $region36: #{tpu_custom_call.1} parent=31 // pred_fallthru
          _
        // Predicated region
        $region37: #{tpu_custom_call.1} parent=31 // pred_check
          %p187 = pneg %p64
        $region38: #{tpu_custom_call.1} parent=31 // pred_check_branch
          %189 = sbr.rel (%p187) target = $region40
        $region39: #{tpu_custom_call.1} parent=31 // pred_region
          %190 = dma.done [#allocation5], 16
        $region40: #{tpu_custom_call.1} parent=31 // pred_fallthru
          _
        // Predicated region
        $region41: #{tpu_custom_call.1} parent=31 // pred_check
          %p191 = pneg %p85
        $region42: #{tpu_custom_call.1} parent=31 // pred_check_branch
          %193 = sbr.rel (%p191) target = $region44
        $region43: #{tpu_custom_call.1} parent=31 // pred_region
          %194 = dma.done [#allocation8], 256
        $region44: #{tpu_custom_call.1} parent=31 // pred_fallthru
          _
        %195 = sfence
        %s196 = sand.u32 %s30, 1
        %s197 = scalar_lea.sflag [#allocation3], %s196
        %s198 = sand.u32 %s30, 1
        %s199 = smul.addr %s198, 8
        %s200 = scalar_lea.vmem [#allocation2], %s199
        %p201 = pneg %p43
        %p202 = pneg %p40
        %p203 = pneg %p64
        %p204 = pneg %p61
        %p205 = pneg %p85
        %p206 = pneg %p82
        %p207 = pneg %p111
        %p208 = pneg %p108
        %s209 = sand.u32 %s98, 1
        %s210 = scalar_lea.sflag [#allocation4], %s209
        %s211 = sand.u32 %s98, 1
        %s212 = smul.addr %s211, 8
        %s213 = scalar_lea.vmem [#allocation9], %s212
        %v214 = vld [vmem:[%s182] sm:$0xff]
        %v216 = vcombine.high %v214, %v214
        %vm218 = vcmask 1043456
        %v219 = vsel %vm218, %v214, 0.0
        %v220 = vrot.slane %v219, 4
        %v221 = vadd.f32 %v219, %v220
        %v222 = vrot.slane %v221, 2
        %v223 = vadd.f32 %v221, %v222
        %v224 = vrot.slane %v223, 1
        %v225 = vadd.f32 %v223, %v224
        %v226 = vsel %vm218, %v216, 0.0
        %v227 = vrot.slane %v226, 4
        %v228 = vadd.f32 %v226, %v227
        %v229 = vrot.slane %v228, 2
        %v230 = vadd.f32 %v228, %v229
        %v231 = vrot.slane %v230, 1
        %v232 = vadd.f32 %v230, %v231
        %v233 = vadd.f32 %v225, 0.0
        %v234 = vadd.f32 %v232, 0.0
        %v235 = vsel %vm218, %v214, -inf
        %v236 = vrot.slane %v235, 4
        %v237 = vmax.f32 %v235, %v236
        %v238 = vrot.slane %v237, 2
        %v239 = vmax.f32 %v237, %v238
        %v240 = vrot.slane %v239, 1
        %v241 = vmax.f32 %v239, %v240
        %v242 = vsel %vm218, %v216, -inf
        %v243 = vrot.slane %v242, 4
        %v244 = vmax.f32 %v242, %v243
        %v245 = vrot.slane %v244, 2
        %v246 = vmax.f32 %v244, %v245
        %v247 = vrot.slane %v246, 1
        %v248 = vmax.f32 %v246, %v247
        %v249 = vmul.f32 %v233, 0.25
        %v250 = vmul.f32 %v234, 0.25
        %253 = vrot.lane.b32.xlu0 %v249, 51
        %v254 = vpop.permute.xlu0 %253
        %255 = vrot.lane.b32.xlu0 %v250, 51
        %v256 = vpop.permute.xlu0 %255
        %vm257 = vcmask 416768
        %v258 = vsel %vm257, %v254, %v256
        %v262 = vsel %vm257, 0.0, %v254
        %v263 = vsel %vm257, %v256, 0.0
        %266 = vrot.lane.b32.xlu0 %v241, 51
        %v267 = vpop.permute.xlu0 %266
        %268 = vrot.lane.b32.xlu0 %v248, 51
        %v269 = vpop.permute.xlu0 %268
        %v270 = vsel %vm257, %v267, %v269
        %v274 = vsel %vm257, 0.0, %v267
        %v275 = vsel %vm257, %v269, 0.0
        %v276 = vld [vmem:[#allocation7] ss:$8 sm:$0x3]
        %s277 = scalar_lea.vmem [#allocation7], 1
        %v278 = vld [vmem:[%s277] ss:$8 sm:$0x3]
        %s279 = scalar_lea.vmem [#allocation7], 2
        %v280 = vld [vmem:[%s279] ss:$8 sm:$0x3]
        %s281 = scalar_lea.vmem [#allocation7], 3
        %v282 = vld [vmem:[%s281] ss:$8 sm:$0x3]
        %s283 = scalar_lea.vmem [#allocation7], 4
        %v284 = vld [vmem:[%s283] ss:$8 sm:$0x3]
        %s285 = scalar_lea.vmem [#allocation7], 5
        %v286 = vld [vmem:[%s285] ss:$8 sm:$0x3]
        %s287 = scalar_lea.vmem [#allocation7], 6
        %v288 = vld [vmem:[%s287] ss:$8 sm:$0x3]
        %s289 = sld [smem:[#allocation6]]
        %v291 = vlaneseq
        %v292 = vshrl.u32 %v291, 7
        %v293 = vsub.s32 0, %v292
        %v294 = vrot.slane %v276, %v293
        %v295 = vlaneseq
        %v296 = vshrl.u32 %v295, 7
        %v297 = vsub.s32 1, %v296
        %v298 = vrot.slane %v276, %v297
        %v301 = vmul.f32 %v262, %v294
        %v302 = vmul.f32 %v258, %v298
        %v303 = vstv %s289
        %v304 = vmul.f32 %v303, %v301
        %v305 = vmul.f32 %v303, %v302
        %v306 = vadd.f32 %v304, 0.0
        %v307 = vadd.f32 %v305, 0.0
        %s308 = sld [smem:[#allocation6 + $0x1]]
        %v310 = vlaneseq
        %v311 = vshrl.u32 %v310, 7
        %v312 = vsub.s32 0, %v311
        %v313 = vrot.slane %v278, %v312
        %v314 = vlaneseq
        %v315 = vshrl.u32 %v314, 7
        %v316 = vsub.s32 1, %v315
        %v317 = vrot.slane %v278, %v316
        %318 = vrot.lane.b32.xlu0 %v313, 1
        %v319 = vpop.permute.xlu0 %318
        %320 = vrot.lane.b32.xlu0 %v317, 1
        %v321 = vpop.permute.xlu0 %320
        %vm322 = vcmask 7168
        %v323 = vsel %vm322, %v319, %v321
        %v327 = vmul.f32 %v262, %v319
        %v328 = vmul.f32 %v258, %v323
        %v329 = vmul.f32 %v263, %v321
        %v330 = vstv %s308
        %v331 = vmul.f32 %v330, %v327
        %v332 = vmul.f32 %v330, %v328
        %v333 = vmul.f32 %v330, %v329
        %337 = vrot.lane.b32.xlu0 %v331, 127
        %v338 = vpop.permute.xlu0 %337
        %339 = vrot.lane.b32.xlu0 %v332, 127
        %v340 = vpop.permute.xlu0 %339
        %341 = vrot.lane.b32.xlu0 %v333, 127
        %v342 = vpop.permute.xlu0 %341
        %vm343 = vcmask 1039360
        %v344 = vsel %vm343, %v338, %v340
        %v345 = vsel %vm343, %v340, %v342
        %v348 = vadd.f32 %v306, %v344
        %v349 = vadd.f32 %v307, %v345
        %s350 = sld [smem:[#allocation6 + $0x2]]
        %v352 = vlaneseq
        %v353 = vshrl.u32 %v352, 7
        %v354 = vsub.s32 0, %v353
        %v355 = vrot.slane %v280, %v354
        %v356 = vlaneseq
        %v357 = vshrl.u32 %v356, 7
        %v358 = vsub.s32 1, %v357
        %v359 = vrot.slane %v280, %v358
        %360 = vrot.lane.b32.xlu0 %v355, 2
        %v361 = vpop.permute.xlu0 %360
        %362 = vrot.lane.b32.xlu0 %v359, 2
        %v363 = vpop.permute.xlu0 %362
        %vm364 = vcmask 15360
        %v365 = vsel %vm364, %v361, %v363
        %v369 = vmul.f32 %v262, %v361
        %v370 = vmul.f32 %v258, %v365
        %v371 = vmul.f32 %v263, %v363
        %v372 = vstv %s350
        %v373 = vmul.f32 %v372, %v369
        %v374 = vmul.f32 %v372, %v370
        %v375 = vmul.f32 %v372, %v371
        %379 = vrot.lane.b32.xlu0 %v373, 126
        %v380 = vpop.permute.xlu0 %379
        %381 = vrot.lane.b32.xlu0 %v374, 126
        %v382 = vpop.permute.xlu0 %381
        %383 = vrot.lane.b32.xlu0 %v375, 126
        %v384 = vpop.permute.xlu0 %383
        %vm385 = vcmask 1031168
        %v386 = vsel %vm385, %v380, %v382
        %v387 = vsel %vm385, %v382, %v384
        %v390 = vadd.f32 %v348, %v386
        %v391 = vadd.f32 %v349, %v387
        %s392 = sld [smem:[#allocation6 + $0x3]]
        %v394 = vlaneseq
        %v395 = vshrl.u32 %v394, 7
        %v396 = vsub.s32 0, %v395
        %v397 = vrot.slane %v282, %v396
        %v398 = vlaneseq
        %v399 = vshrl.u32 %v398, 7
        %v400 = vsub.s32 1, %v399
        %v401 = vrot.slane %v282, %v400
        %402 = vrot.lane.b32.xlu0 %v397, 3
        %v403 = vpop.permute.xlu0 %402
        %404 = vrot.lane.b32.xlu0 %v401, 3
        %v405 = vpop.permute.xlu0 %404
        %vm406 = vcmask 23552
        %v407 = vsel %vm406, %v403, %v405
        %v411 = vmul.f32 %v262, %v403
        %v412 = vmul.f32 %v258, %v407
        %v413 = vmul.f32 %v263, %v405
        %v414 = vstv %s392
        %v415 = vmul.f32 %v414, %v411
        %v416 = vmul.f32 %v414, %v412
        %v417 = vmul.f32 %v414, %v413
        %421 = vrot.lane.b32.xlu0 %v415, 125
        %v422 = vpop.permute.xlu0 %421
        %423 = vrot.lane.b32.xlu0 %v416, 125
        %v424 = vpop.permute.xlu0 %423
        %425 = vrot.lane.b32.xlu0 %v417, 125
        %v426 = vpop.permute.xlu0 %425
        %vm427 = vcmask 1022976
        %v428 = vsel %vm427, %v422, %v424
        %v429 = vsel %vm427, %v424, %v426
        %v432 = vadd.f32 %v390, %v428
        %v433 = vadd.f32 %v391, %v429
        %s434 = sld [smem:[#allocation6 + $0x4]]
        %v436 = vlaneseq
        %v437 = vshrl.u32 %v436, 7
        %v438 = vsub.s32 0, %v437
        %v439 = vrot.slane %v284, %v438
        %v440 = vlaneseq
        %v441 = vshrl.u32 %v440, 7
        %v442 = vsub.s32 1, %v441
        %v443 = vrot.slane %v284, %v442
        %444 = vrot.lane.b32.xlu0 %v439, 4
        %v445 = vpop.permute.xlu0 %444
        %446 = vrot.lane.b32.xlu0 %v443, 4
        %v447 = vpop.permute.xlu0 %446
        %vm448 = vcmask 31744
        %v449 = vsel %vm448, %v445, %v447
        %v453 = vmul.f32 %v262, %v445
        %v454 = vmul.f32 %v258, %v449
        %v455 = vmul.f32 %v263, %v447
        %v456 = vstv %s434
        %v457 = vmul.f32 %v456, %v453
        %v458 = vmul.f32 %v456, %v454
        %v459 = vmul.f32 %v456, %v455
        %463 = vrot.lane.b32.xlu0 %v457, 124
        %v464 = vpop.permute.xlu0 %463
        %465 = vrot.lane.b32.xlu0 %v458, 124
        %v466 = vpop.permute.xlu0 %465
        %467 = vrot.lane.b32.xlu0 %v459, 124
        %v468 = vpop.permute.xlu0 %467
        %vm469 = vcmask 1014784
        %v470 = vsel %vm469, %v464, %v466
        %v471 = vsel %vm469, %v466, %v468
        %v474 = vadd.f32 %v432, %v470
        %v475 = vadd.f32 %v433, %v471
        %s476 = sld [smem:[#allocation6 + $0x5]]
        %v478 = vlaneseq
        %v479 = vshrl.u32 %v478, 7
        %v480 = vsub.s32 0, %v479
        %v481 = vrot.slane %v286, %v480
        %v482 = vlaneseq
        %v483 = vshrl.u32 %v482, 7
        %v484 = vsub.s32 1, %v483
        %v485 = vrot.slane %v286, %v484
        %486 = vrot.lane.b32.xlu0 %v481, 5
        %v487 = vpop.permute.xlu0 %486
        %488 = vrot.lane.b32.xlu0 %v485, 5
        %v489 = vpop.permute.xlu0 %488
        %vm490 = vcmask 39936
        %v491 = vsel %vm490, %v487, %v489
        %v495 = vmul.f32 %v262, %v487
        %v496 = vmul.f32 %v258, %v491
        %v497 = vmul.f32 %v263, %v489
        %v498 = vstv %s476
        %v499 = vmul.f32 %v498, %v495
        %v500 = vmul.f32 %v498, %v496
        %v501 = vmul.f32 %v498, %v497
        %505 = vrot.lane.b32.xlu0 %v499, 123
        %v506 = vpop.permute.xlu0 %505
        %507 = vrot.lane.b32.xlu0 %v500, 123
        %v508 = vpop.permute.xlu0 %507
        %509 = vrot.lane.b32.xlu0 %v501, 123
        %v510 = vpop.permute.xlu0 %509
        %vm511 = vcmask 1006592
        %v512 = vsel %vm511, %v506, %v508
        %v513 = vsel %vm511, %v508, %v510
        %v516 = vadd.f32 %v474, %v512
        %v517 = vadd.f32 %v475, %v513
        %s518 = sld [smem:[#allocation6 + $0x6]]
        %v520 = vlaneseq
        %v521 = vshrl.u32 %v520, 7
        %v522 = vsub.s32 0, %v521
        %v523 = vrot.slane %v288, %v522
        %v524 = vlaneseq
        %v525 = vshrl.u32 %v524, 7
        %v526 = vsub.s32 1, %v525
        %v527 = vrot.slane %v288, %v526
        %528 = vrot.lane.b32.xlu0 %v523, 6
        %v529 = vpop.permute.xlu0 %528
        %530 = vrot.lane.b32.xlu0 %v527, 6
        %v531 = vpop.permute.xlu0 %530
        %vm532 = vcmask 48128
        %v533 = vsel %vm532, %v529, %v531
        %v537 = vmul.f32 %v262, %v529
        %v538 = vmul.f32 %v258, %v533
        %v539 = vmul.f32 %v263, %v531
        %v540 = vstv %s518
        %v541 = vmul.f32 %v540, %v537
        %v542 = vmul.f32 %v540, %v538
        %v543 = vmul.f32 %v540, %v539
        %547 = vrot.lane.b32.xlu0 %v541, 122
        %v548 = vpop.permute.xlu0 %547
        %549 = vrot.lane.b32.xlu0 %v542, 122
        %v550 = vpop.permute.xlu0 %549
        %551 = vrot.lane.b32.xlu0 %v543, 122
        %v552 = vpop.permute.xlu0 %551
        %vm553 = vcmask 998400
        %v554 = vsel %vm553, %v548, %v550
        %v555 = vsel %vm553, %v550, %v552
        %v558 = vadd.f32 %v516, %v554
        %v559 = vadd.f32 %v517, %v555
        %s560 = sld [smem:[#allocation6 + $0x7]]
        %561 = vrot.lane.b32.xlu0 %v294, 16
        %v562 = vpop.permute.xlu0 %561
        %563 = vrot.lane.b32.xlu0 %v298, 16
        %v564 = vpop.permute.xlu0 %563
        %vm565 = vcmask 130048
        %v566 = vsel %vm565, %v562, %v564
        %v570 = vmul.f32 %v262, %v562
        %v571 = vmul.f32 %v258, %v566
        %v572 = vmul.f32 %v263, %v564
        %v573 = vstv %s560
        %v574 = vmul.f32 %v573, %v570
        %v575 = vmul.f32 %v573, %v571
        %v576 = vmul.f32 %v573, %v572
        %580 = vrot.lane.b32.xlu0 %v574, 112
        %v581 = vpop.permute.xlu0 %580
        %582 = vrot.lane.b32.xlu0 %v575, 112
        %v583 = vpop.permute.xlu0 %582
        %584 = vrot.lane.b32.xlu0 %v576, 112
        %v585 = vpop.permute.xlu0 %584
        %vm586 = vcmask 916480
        %v587 = vsel %vm586, %v581, %v583
        %v588 = vsel %vm586, %v583, %v585
        %v591 = vadd.f32 %v558, %v587
        %v592 = vadd.f32 %v559, %v588
        %s593 = sld [smem:[#allocation6 + $0x8]]
        %594 = vrot.lane.b32.xlu0 %v313, 17
        %v595 = vpop.permute.xlu0 %594
        %596 = vrot.lane.b32.xlu0 %v317, 17
        %v597 = vpop.permute.xlu0 %596
        %vm598 = vcmask 138240
        %v599 = vsel %vm598, %v595, %v597
        %v603 = vmul.f32 %v262, %v595
        %v604 = vmul.f32 %v258, %v599
        %v605 = vmul.f32 %v263, %v597
        %v606 = vstv %s593
        %v607 = vmul.f32 %v606, %v603
        %v608 = vmul.f32 %v606, %v604
        %v609 = vmul.f32 %v606, %v605
        %613 = vrot.lane.b32.xlu0 %v607, 111
        %v614 = vpop.permute.xlu0 %613
        %615 = vrot.lane.b32.xlu0 %v608, 111
        %v616 = vpop.permute.xlu0 %615
        %617 = vrot.lane.b32.xlu0 %v609, 111
        %v618 = vpop.permute.xlu0 %617
        %vm619 = vcmask 908288
        %v620 = vsel %vm619, %v614, %v616
        %v621 = vsel %vm619, %v616, %v618
        %v624 = vadd.f32 %v591, %v620
        %v625 = vadd.f32 %v592, %v621
        %s626 = sld [smem:[#allocation6 + $0x9]]
        %627 = vrot.lane.b32.xlu0 %v355, 18
        %v628 = vpop.permute.xlu0 %627
        %629 = vrot.lane.b32.xlu0 %v359, 18
        %v630 = vpop.permute.xlu0 %629
        %vm631 = vcmask 146432
        %v632 = vsel %vm631, %v628, %v630
        %v636 = vmul.f32 %v262, %v628
        %v637 = vmul.f32 %v258, %v632
        %v638 = vmul.f32 %v263, %v630
        %v639 = vstv %s626
        %v640 = vmul.f32 %v639, %v636
        %v641 = vmul.f32 %v639, %v637
        %v642 = vmul.f32 %v639, %v638
        %646 = vrot.lane.b32.xlu0 %v640, 110
        %v647 = vpop.permute.xlu0 %646
        %648 = vrot.lane.b32.xlu0 %v641, 110
        %v649 = vpop.permute.xlu0 %648
        %650 = vrot.lane.b32.xlu0 %v642, 110
        %v651 = vpop.permute.xlu0 %650
        %vm652 = vcmask 900096
        %v653 = vsel %vm652, %v647, %v649
        %v654 = vsel %vm652, %v649, %v651
        %v657 = vadd.f32 %v624, %v653
        %v658 = vadd.f32 %v625, %v654
        %s659 = sld [smem:[#allocation6 + $0xa]]
        %660 = vrot.lane.b32.xlu0 %v397, 19
        %v661 = vpop.permute.xlu0 %660
        %662 = vrot.lane.b32.xlu0 %v401, 19
        %v663 = vpop.permute.xlu0 %662
        %vm664 = vcmask 154624
        %v665 = vsel %vm664, %v661, %v663
        %v669 = vmul.f32 %v262, %v661
        %v670 = vmul.f32 %v258, %v665
        %v671 = vmul.f32 %v263, %v663
        %v672 = vstv %s659
        %v673 = vmul.f32 %v672, %v669
        %v674 = vmul.f32 %v672, %v670
        %v675 = vmul.f32 %v672, %v671
        %679 = vrot.lane.b32.xlu0 %v673, 109
        %v680 = vpop.permute.xlu0 %679
        %681 = vrot.lane.b32.xlu0 %v674, 109
        %v682 = vpop.permute.xlu0 %681
        %683 = vrot.lane.b32.xlu0 %v675, 109
        %v684 = vpop.permute.xlu0 %683
        %vm685 = vcmask 891904
        %v686 = vsel %vm685, %v680, %v682
        %v687 = vsel %vm685, %v682, %v684
        %v690 = vadd.f32 %v657, %v686
        %v691 = vadd.f32 %v658, %v687
        %s692 = sld [smem:[#allocation6 + $0xb]]
        %693 = vrot.lane.b32.xlu0 %v439, 20
        %v694 = vpop.permute.xlu0 %693
        %695 = vrot.lane.b32.xlu0 %v443, 20
        %v696 = vpop.permute.xlu0 %695
        %vm697 = vcmask 162816
        %v698 = vsel %vm697, %v694, %v696
        %v702 = vmul.f32 %v262, %v694
        %v703 = vmul.f32 %v258, %v698
        %v704 = vmul.f32 %v263, %v696
        %v705 = vstv %s692
        %v706 = vmul.f32 %v705, %v702
        %v707 = vmul.f32 %v705, %v703
        %v708 = vmul.f32 %v705, %v704
        %712 = vrot.lane.b32.xlu0 %v706, 108
        %v713 = vpop.permute.xlu0 %712
        %714 = vrot.lane.b32.xlu0 %v707, 108
        %v715 = vpop.permute.xlu0 %714
        %716 = vrot.lane.b32.xlu0 %v708, 108
        %v717 = vpop.permute.xlu0 %716
        %vm718 = vcmask 883712
        %v719 = vsel %vm718, %v713, %v715
        %v720 = vsel %vm718, %v715, %v717
        %v723 = vadd.f32 %v690, %v719
        %v724 = vadd.f32 %v691, %v720
        %s725 = sld [smem:[#allocation6 + $0xc]]
        %726 = vrot.lane.b32.xlu0 %v481, 21
        %v727 = vpop.permute.xlu0 %726
        %728 = vrot.lane.b32.xlu0 %v485, 21
        %v729 = vpop.permute.xlu0 %728
        %vm730 = vcmask 171008
        %v731 = vsel %vm730, %v727, %v729
        %v735 = vmul.f32 %v262, %v727
        %v736 = vmul.f32 %v258, %v731
        %v737 = vmul.f32 %v263, %v729
        %v738 = vstv %s725
        %v739 = vmul.f32 %v738, %v735
        %v740 = vmul.f32 %v738, %v736
        %v741 = vmul.f32 %v738, %v737
        %745 = vrot.lane.b32.xlu0 %v739, 107
        %v746 = vpop.permute.xlu0 %745
        %747 = vrot.lane.b32.xlu0 %v740, 107
        %v748 = vpop.permute.xlu0 %747
        %749 = vrot.lane.b32.xlu0 %v741, 107
        %v750 = vpop.permute.xlu0 %749
        %vm751 = vcmask 875520
        %v752 = vsel %vm751, %v746, %v748
        %v753 = vsel %vm751, %v748, %v750
        %v756 = vadd.f32 %v723, %v752
        %v757 = vadd.f32 %v724, %v753
        %s758 = sld [smem:[#allocation6 + $0xd]]
        %759 = vrot.lane.b32.xlu0 %v523, 22
        %v760 = vpop.permute.xlu0 %759
        %761 = vrot.lane.b32.xlu0 %v527, 22
        %v762 = vpop.permute.xlu0 %761
        %vm763 = vcmask 179200
        %v764 = vsel %vm763, %v760, %v762
        %v768 = vmul.f32 %v262, %v760
        %v769 = vmul.f32 %v258, %v764
        %v770 = vmul.f32 %v263, %v762
        %v771 = vstv %s758
        %v772 = vmul.f32 %v771, %v768
        %v773 = vmul.f32 %v771, %v769
        %v774 = vmul.f32 %v771, %v770
        %778 = vrot.lane.b32.xlu0 %v772, 106
        %v779 = vpop.permute.xlu0 %778
        %780 = vrot.lane.b32.xlu0 %v773, 106
        %v781 = vpop.permute.xlu0 %780
        %782 = vrot.lane.b32.xlu0 %v774, 106
        %v783 = vpop.permute.xlu0 %782
        %vm784 = vcmask 867328
        %v785 = vsel %vm784, %v779, %v781
        %v786 = vsel %vm784, %v781, %v783
        %v789 = vadd.f32 %v756, %v785
        %v790 = vadd.f32 %v757, %v786
        %s791 = sld [smem:[#allocation6 + $0xe]]
        %792 = vrot.lane.b32.xlu0 %v294, 32
        %v793 = vpop.permute.xlu0 %792
        %794 = vrot.lane.b32.xlu0 %v298, 32
        %v795 = vpop.permute.xlu0 %794
        %vm796 = vcmask 261120
        %v797 = vsel %vm796, %v793, %v795
        %v801 = vmul.f32 %v262, %v793
        %v802 = vmul.f32 %v258, %v797
        %v803 = vmul.f32 %v263, %v795
        %v804 = vstv %s791
        %v805 = vmul.f32 %v804, %v801
        %v806 = vmul.f32 %v804, %v802
        %v807 = vmul.f32 %v804, %v803
        %811 = vrot.lane.b32.xlu0 %v805, 96
        %v812 = vpop.permute.xlu0 %811
        %813 = vrot.lane.b32.xlu0 %v806, 96
        %v814 = vpop.permute.xlu0 %813
        %815 = vrot.lane.b32.xlu0 %v807, 96
        %v816 = vpop.permute.xlu0 %815
        %vm817 = vcmask 785408
        %v818 = vsel %vm817, %v812, %v814
        %v819 = vsel %vm817, %v814, %v816
        %v822 = vadd.f32 %v789, %v818
        %v823 = vadd.f32 %v790, %v819
        %s824 = sld [smem:[#allocation6 + $0xf]]
        %825 = vrot.lane.b32.xlu0 %v313, 33
        %v826 = vpop.permute.xlu0 %825
        %827 = vrot.lane.b32.xlu0 %v317, 33
        %v828 = vpop.permute.xlu0 %827
        %vm829 = vcmask 269312
        %v830 = vsel %vm829, %v826, %v828
        %v834 = vmul.f32 %v262, %v826
        %v835 = vmul.f32 %v258, %v830
        %v836 = vmul.f32 %v263, %v828
        %v837 = vstv %s824
        %v838 = vmul.f32 %v837, %v834
        %v839 = vmul.f32 %v837, %v835
        %v840 = vmul.f32 %v837, %v836
        %844 = vrot.lane.b32.xlu0 %v838, 95
        %v845 = vpop.permute.xlu0 %844
        %846 = vrot.lane.b32.xlu0 %v839, 95
        %v847 = vpop.permute.xlu0 %846
        %848 = vrot.lane.b32.xlu0 %v840, 95
        %v849 = vpop.permute.xlu0 %848
        %vm850 = vcmask 777216
        %v851 = vsel %vm850, %v845, %v847
        %v852 = vsel %vm850, %v847, %v849
        %v855 = vadd.f32 %v822, %v851
        %v856 = vadd.f32 %v823, %v852
        %s857 = sld [smem:[#allocation6 + $0x10]]
        %858 = vrot.lane.b32.xlu0 %v355, 34
        %v859 = vpop.permute.xlu0 %858
        %860 = vrot.lane.b32.xlu0 %v359, 34
        %v861 = vpop.permute.xlu0 %860
        %vm862 = vcmask 277504
        %v863 = vsel %vm862, %v859, %v861
        %v867 = vmul.f32 %v262, %v859
        %v868 = vmul.f32 %v258, %v863
        %v869 = vmul.f32 %v263, %v861
        %v870 = vstv %s857
        %v871 = vmul.f32 %v870, %v867
        %v872 = vmul.f32 %v870, %v868
        %v873 = vmul.f32 %v870, %v869
        %877 = vrot.lane.b32.xlu0 %v871, 94
        %v878 = vpop.permute.xlu0 %877
        %879 = vrot.lane.b32.xlu0 %v872, 94
        %v880 = vpop.permute.xlu0 %879
        %881 = vrot.lane.b32.xlu0 %v873, 94
        %v882 = vpop.permute.xlu0 %881
        %vm883 = vcmask 769024
        %v884 = vsel %vm883, %v878, %v880
        %v885 = vsel %vm883, %v880, %v882
        %v888 = vadd.f32 %v855, %v884
        %v889 = vadd.f32 %v856, %v885
        %s890 = sld [smem:[#allocation6 + $0x11]]
        %891 = vrot.lane.b32.xlu0 %v397, 35
        %v892 = vpop.permute.xlu0 %891
        %893 = vrot.lane.b32.xlu0 %v401, 35
        %v894 = vpop.permute.xlu0 %893
        %vm895 = vcmask 285696
        %v896 = vsel %vm895, %v892, %v894
        %v900 = vmul.f32 %v262, %v892
        %v901 = vmul.f32 %v258, %v896
        %v902 = vmul.f32 %v263, %v894
        %v903 = vstv %s890
        %v904 = vmul.f32 %v903, %v900
        %v905 = vmul.f32 %v903, %v901
        %v906 = vmul.f32 %v903, %v902
        %910 = vrot.lane.b32.xlu0 %v904, 93
        %v911 = vpop.permute.xlu0 %910
        %912 = vrot.lane.b32.xlu0 %v905, 93
        %v913 = vpop.permute.xlu0 %912
        %914 = vrot.lane.b32.xlu0 %v906, 93
        %v915 = vpop.permute.xlu0 %914
        %vm916 = vcmask 760832
        %v917 = vsel %vm916, %v911, %v913
        %v918 = vsel %vm916, %v913, %v915
        %v921 = vadd.f32 %v888, %v917
        %v922 = vadd.f32 %v889, %v918
        %s923 = sld [smem:[#allocation6 + $0x12]]
        %924 = vrot.lane.b32.xlu0 %v439, 36
        %v925 = vpop.permute.xlu0 %924
        %926 = vrot.lane.b32.xlu0 %v443, 36
        %v927 = vpop.permute.xlu0 %926
        %vm928 = vcmask 293888
        %v929 = vsel %vm928, %v925, %v927
        %v933 = vmul.f32 %v262, %v925
        %v934 = vmul.f32 %v258, %v929
        %v935 = vmul.f32 %v263, %v927
        %v936 = vstv %s923
        %v937 = vmul.f32 %v936, %v933
        %v938 = vmul.f32 %v936, %v934
        %v939 = vmul.f32 %v936, %v935
        %943 = vrot.lane.b32.xlu0 %v937, 92
        %v944 = vpop.permute.xlu0 %943
        %945 = vrot.lane.b32.xlu0 %v938, 92
        %v946 = vpop.permute.xlu0 %945
        %947 = vrot.lane.b32.xlu0 %v939, 92
        %v948 = vpop.permute.xlu0 %947
        %vm949 = vcmask 752640
        %v950 = vsel %vm949, %v944, %v946
        %v951 = vsel %vm949, %v946, %v948
        %v954 = vadd.f32 %v921, %v950
        %v955 = vadd.f32 %v922, %v951
        %s956 = sld [smem:[#allocation6 + $0x13]]
        %957 = vrot.lane.b32.xlu0 %v481, 37
        %v958 = vpop.permute.xlu0 %957
        %959 = vrot.lane.b32.xlu0 %v485, 37
        %v960 = vpop.permute.xlu0 %959
        %vm961 = vcmask 302080
        %v962 = vsel %vm961, %v958, %v960
        %v966 = vmul.f32 %v262, %v958
        %v967 = vmul.f32 %v258, %v962
        %v968 = vmul.f32 %v263, %v960
        %v969 = vstv %s956
        %v970 = vmul.f32 %v969, %v966
        %v971 = vmul.f32 %v969, %v967
        %v972 = vmul.f32 %v969, %v968
        %976 = vrot.lane.b32.xlu0 %v970, 91
        %v977 = vpop.permute.xlu0 %976
        %978 = vrot.lane.b32.xlu0 %v971, 91
        %v979 = vpop.permute.xlu0 %978
        %980 = vrot.lane.b32.xlu0 %v972, 91
        %v981 = vpop.permute.xlu0 %980
        %vm982 = vcmask 744448
        %v983 = vsel %vm982, %v977, %v979
        %v984 = vsel %vm982, %v979, %v981
        %v987 = vadd.f32 %v954, %v983
        %v988 = vadd.f32 %v955, %v984
        %s989 = sld [smem:[#allocation6 + $0x14]]
        %990 = vrot.lane.b32.xlu0 %v523, 38
        %v991 = vpop.permute.xlu0 %990
        %992 = vrot.lane.b32.xlu0 %v527, 38
        %v993 = vpop.permute.xlu0 %992
        %vm994 = vcmask 310272
        %v995 = vsel %vm994, %v991, %v993
        %v999 = vmul.f32 %v262, %v991
        %v1000 = vmul.f32 %v258, %v995
        %v1001 = vmul.f32 %v263, %v993
        %v1002 = vstv %s989
        %v1003 = vmul.f32 %v1002, %v999
        %v1004 = vmul.f32 %v1002, %v1000
        %v1005 = vmul.f32 %v1002, %v1001
        %1009 = vrot.lane.b32.xlu0 %v1003, 90
        %v1010 = vpop.permute.xlu0 %1009
        %1011 = vrot.lane.b32.xlu0 %v1004, 90
        %v1012 = vpop.permute.xlu0 %1011
        %1013 = vrot.lane.b32.xlu0 %v1005, 90
        %v1014 = vpop.permute.xlu0 %1013
        %vm1015 = vcmask 736256
        %v1016 = vsel %vm1015, %v1010, %v1012
        %v1017 = vsel %vm1015, %v1012, %v1014
        %v1020 = vadd.f32 %v987, %v1016
        %v1021 = vadd.f32 %v988, %v1017
        %s1022 = sld [smem:[#allocation6 + $0x15]]
        %1023 = vrot.lane.b32.xlu0 %v294, 48
        %v1024 = vpop.permute.xlu0 %1023
        %1025 = vrot.lane.b32.xlu0 %v298, 48
        %v1026 = vpop.permute.xlu0 %1025
        %vm1027 = vcmask 392192
        %v1028 = vsel %vm1027, %v1024, %v1026
        %v1032 = vmul.f32 %v262, %v1024
        %v1033 = vmul.f32 %v258, %v1028
        %v1034 = vmul.f32 %v263, %v1026
        %v1035 = vstv %s1022
        %v1036 = vmul.f32 %v1035, %v1032
        %v1037 = vmul.f32 %v1035, %v1033
        %v1038 = vmul.f32 %v1035, %v1034
        %1042 = vrot.lane.b32.xlu0 %v1036, 80
        %v1043 = vpop.permute.xlu0 %1042
        %1044 = vrot.lane.b32.xlu0 %v1037, 80
        %v1045 = vpop.permute.xlu0 %1044
        %1046 = vrot.lane.b32.xlu0 %v1038, 80
        %v1047 = vpop.permute.xlu0 %1046
        %vm1048 = vcmask 654336
        %v1049 = vsel %vm1048, %v1043, %v1045
        %v1050 = vsel %vm1048, %v1045, %v1047
        %v1053 = vadd.f32 %v1020, %v1049
        %v1054 = vadd.f32 %v1021, %v1050
        %s1055 = sld [smem:[#allocation6 + $0x16]]
        %1056 = vrot.lane.b32.xlu0 %v313, 49
        %v1057 = vpop.permute.xlu0 %1056
        %1058 = vrot.lane.b32.xlu0 %v317, 49
        %v1059 = vpop.permute.xlu0 %1058
        %vm1060 = vcmask 400384
        %v1061 = vsel %vm1060, %v1057, %v1059
        %v1065 = vmul.f32 %v262, %v1057
        %v1066 = vmul.f32 %v258, %v1061
        %v1067 = vmul.f32 %v263, %v1059
        %v1068 = vstv %s1055
        %v1069 = vmul.f32 %v1068, %v1065
        %v1070 = vmul.f32 %v1068, %v1066
        %v1071 = vmul.f32 %v1068, %v1067
        %1075 = vrot.lane.b32.xlu0 %v1069, 79
        %v1076 = vpop.permute.xlu0 %1075
        %1077 = vrot.lane.b32.xlu0 %v1070, 79
        %v1078 = vpop.permute.xlu0 %1077
        %1079 = vrot.lane.b32.xlu0 %v1071, 79
        %v1080 = vpop.permute.xlu0 %1079
        %vm1081 = vcmask 646144
        %v1082 = vsel %vm1081, %v1076, %v1078
        %v1083 = vsel %vm1081, %v1078, %v1080
        %v1086 = vadd.f32 %v1053, %v1082
        %v1087 = vadd.f32 %v1054, %v1083
        %s1088 = sld [smem:[#allocation6 + $0x17]]
        %1089 = vrot.lane.b32.xlu0 %v355, 50
        %v1090 = vpop.permute.xlu0 %1089
        %1091 = vrot.lane.b32.xlu0 %v359, 50
        %v1092 = vpop.permute.xlu0 %1091
        %vm1093 = vcmask 408576
        %v1094 = vsel %vm1093, %v1090, %v1092
        %v1098 = vmul.f32 %v262, %v1090
        %v1099 = vmul.f32 %v258, %v1094
        %v1100 = vmul.f32 %v263, %v1092
        %v1101 = vstv %s1088
        %v1102 = vmul.f32 %v1101, %v1098
        %v1103 = vmul.f32 %v1101, %v1099
        %v1104 = vmul.f32 %v1101, %v1100
        %1108 = vrot.lane.b32.xlu0 %v1102, 78
        %v1109 = vpop.permute.xlu0 %1108
        %1110 = vrot.lane.b32.xlu0 %v1103, 78
        %v1111 = vpop.permute.xlu0 %1110
        %1112 = vrot.lane.b32.xlu0 %v1104, 78
        %v1113 = vpop.permute.xlu0 %1112
        %vm1114 = vcmask 637952
        %v1115 = vsel %vm1114, %v1109, %v1111
        %v1116 = vsel %vm1114, %v1111, %v1113
        %v1119 = vadd.f32 %v1086, %v1115
        %v1120 = vadd.f32 %v1087, %v1116
        %s1121 = sld [smem:[#allocation6 + $0x18]]
        %1122 = vrot.lane.b32.xlu0 %v397, 51
        %v1123 = vpop.permute.xlu0 %1122
        %1124 = vrot.lane.b32.xlu0 %v401, 51
        %v1125 = vpop.permute.xlu0 %1124
        %v1126 = vsel %vm257, %v1123, %v1125
        %v1130 = vmul.f32 %v262, %v1123
        %v1131 = vmul.f32 %v258, %v1126
        %v1132 = vmul.f32 %v263, %v1125
        %v1133 = vstv %s1121
        %v1134 = vmul.f32 %v1133, %v1130
        %v1135 = vmul.f32 %v1133, %v1131
        %v1136 = vmul.f32 %v1133, %v1132
        %1140 = vrot.lane.b32.xlu0 %v1134, 77
        %v1141 = vpop.permute.xlu0 %1140
        %1142 = vrot.lane.b32.xlu0 %v1135, 77
        %v1143 = vpop.permute.xlu0 %1142
        %1144 = vrot.lane.b32.xlu0 %v1136, 77
        %v1145 = vpop.permute.xlu0 %1144
        %vm1146 = vcmask 629760
        %v1147 = vsel %vm1146, %v1141, %v1143
        %v1148 = vsel %vm1146, %v1143, %v1145
        %v1151 = vadd.f32 %v1119, %v1147
        %v1152 = vadd.f32 %v1120, %v1148
        %s1153 = sld [smem:[#allocation6 + $0x19]]
        %1154 = vrot.lane.b32.xlu0 %v439, 52
        %v1155 = vpop.permute.xlu0 %1154
        %1156 = vrot.lane.b32.xlu0 %v443, 52
        %v1157 = vpop.permute.xlu0 %1156
        %vm1158 = vcmask 424960
        %v1159 = vsel %vm1158, %v1155, %v1157
        %v1163 = vmul.f32 %v262, %v1155
        %v1164 = vmul.f32 %v258, %v1159
        %v1165 = vmul.f32 %v263, %v1157
        %v1166 = vstv %s1153
        %v1167 = vmul.f32 %v1166, %v1163
        %v1168 = vmul.f32 %v1166, %v1164
        %v1169 = vmul.f32 %v1166, %v1165
        %1173 = vrot.lane.b32.xlu0 %v1167, 76
        %v1174 = vpop.permute.xlu0 %1173
        %1175 = vrot.lane.b32.xlu0 %v1168, 76
        %v1176 = vpop.permute.xlu0 %1175
        %1177 = vrot.lane.b32.xlu0 %v1169, 76
        %v1178 = vpop.permute.xlu0 %1177
        %vm1179 = vcmask 621568
        %v1180 = vsel %vm1179, %v1174, %v1176
        %v1181 = vsel %vm1179, %v1176, %v1178
        %v1184 = vadd.f32 %v1151, %v1180
        %v1185 = vadd.f32 %v1152, %v1181
        %s1186 = sld [smem:[#allocation6 + $0x1a]]
        %1187 = vrot.lane.b32.xlu0 %v481, 53
        %v1188 = vpop.permute.xlu0 %1187
        %1189 = vrot.lane.b32.xlu0 %v485, 53
        %v1190 = vpop.permute.xlu0 %1189
        %vm1191 = vcmask 433152
        %v1192 = vsel %vm1191, %v1188, %v1190
        %v1196 = vmul.f32 %v262, %v1188
        %v1197 = vmul.f32 %v258, %v1192
        %v1198 = vmul.f32 %v263, %v1190
        %v1199 = vstv %s1186
        %v1200 = vmul.f32 %v1199, %v1196
        %v1201 = vmul.f32 %v1199, %v1197
        %v1202 = vmul.f32 %v1199, %v1198
        %1206 = vrot.lane.b32.xlu0 %v1200, 75
        %v1207 = vpop.permute.xlu0 %1206
        %1208 = vrot.lane.b32.xlu0 %v1201, 75
        %v1209 = vpop.permute.xlu0 %1208
        %1210 = vrot.lane.b32.xlu0 %v1202, 75
        %v1211 = vpop.permute.xlu0 %1210
        %vm1212 = vcmask 613376
        %v1213 = vsel %vm1212, %v1207, %v1209
        %v1214 = vsel %vm1212, %v1209, %v1211
        %v1217 = vadd.f32 %v1184, %v1213
        %v1218 = vadd.f32 %v1185, %v1214
        %s1219 = sld [smem:[#allocation6 + $0x1b]]
        %1220 = vrot.lane.b32.xlu0 %v523, 54
        %v1221 = vpop.permute.xlu0 %1220
        %1222 = vrot.lane.b32.xlu0 %v527, 54
        %v1223 = vpop.permute.xlu0 %1222
        %vm1224 = vcmask 441344
        %v1225 = vsel %vm1224, %v1221, %v1223
        %v1229 = vmul.f32 %v262, %v1221
        %v1230 = vmul.f32 %v258, %v1225
        %v1231 = vmul.f32 %v263, %v1223
        %v1232 = vstv %s1219
        %v1233 = vmul.f32 %v1232, %v1229
        %v1234 = vmul.f32 %v1232, %v1230
        %v1235 = vmul.f32 %v1232, %v1231
        %1239 = vrot.lane.b32.xlu0 %v1233, 74
        %v1240 = vpop.permute.xlu0 %1239
        %1241 = vrot.lane.b32.xlu0 %v1234, 74
        %v1242 = vpop.permute.xlu0 %1241
        %1243 = vrot.lane.b32.xlu0 %v1235, 74
        %v1244 = vpop.permute.xlu0 %1243
        %vm1245 = vcmask 605184
        %v1246 = vsel %vm1245, %v1240, %v1242
        %v1247 = vsel %vm1245, %v1242, %v1244
        %v1250 = vadd.f32 %v1217, %v1246
        %v1251 = vadd.f32 %v1218, %v1247
        %s1252 = sld [smem:[#allocation6 + $0x1c]]
        %1253 = vrot.lane.b32.xlu0 %v294, 64
        %v1254 = vpop.permute.xlu0 %1253
        %1255 = vrot.lane.b32.xlu0 %v298, 64
        %v1256 = vpop.permute.xlu0 %1255
        %vm1257 = vcmask 523264
        %v1258 = vsel %vm1257, %v1254, %v1256
        %v1262 = vmul.f32 %v262, %v1254
        %v1263 = vmul.f32 %v258, %v1258
        %v1264 = vmul.f32 %v263, %v1256
        %v1265 = vstv %s1252
        %v1266 = vmul.f32 %v1265, %v1262
        %v1267 = vmul.f32 %v1265, %v1263
        %v1268 = vmul.f32 %v1265, %v1264
        %1272 = vrot.lane.b32.xlu0 %v1266, 64
        %v1273 = vpop.permute.xlu0 %1272
        %1274 = vrot.lane.b32.xlu0 %v1267, 64
        %v1275 = vpop.permute.xlu0 %1274
        %1276 = vrot.lane.b32.xlu0 %v1268, 64
        %v1277 = vpop.permute.xlu0 %1276
        %v1278 = vsel %vm1257, %v1273, %v1275
        %v1279 = vsel %vm1257, %v1275, %v1277
        %v1282 = vadd.f32 %v1250, %v1278
        %v1283 = vadd.f32 %v1251, %v1279
        %s1284 = sld [smem:[#allocation6 + $0x1d]]
        %1285 = vrot.lane.b32.xlu0 %v313, 65
        %v1286 = vpop.permute.xlu0 %1285
        %1287 = vrot.lane.b32.xlu0 %v317, 65
        %v1288 = vpop.permute.xlu0 %1287
        %vm1289 = vcmask 531456
        %v1290 = vsel %vm1289, %v1286, %v1288
        %v1294 = vmul.f32 %v262, %v1286
        %v1295 = vmul.f32 %v258, %v1290
        %v1296 = vmul.f32 %v263, %v1288
        %v1297 = vstv %s1284
        %v1298 = vmul.f32 %v1297, %v1294
        %v1299 = vmul.f32 %v1297, %v1295
        %v1300 = vmul.f32 %v1297, %v1296
        %1304 = vrot.lane.b32.xlu0 %v1298, 63
        %v1305 = vpop.permute.xlu0 %1304
        %1306 = vrot.lane.b32.xlu0 %v1299, 63
        %v1307 = vpop.permute.xlu0 %1306
        %1308 = vrot.lane.b32.xlu0 %v1300, 63
        %v1309 = vpop.permute.xlu0 %1308
        %vm1310 = vcmask 515072
        %v1311 = vsel %vm1310, %v1305, %v1307
        %v1312 = vsel %vm1310, %v1307, %v1309
        %v1315 = vadd.f32 %v1282, %v1311
        %v1316 = vadd.f32 %v1283, %v1312
        %s1317 = sld [smem:[#allocation6 + $0x1e]]
        %1318 = vrot.lane.b32.xlu0 %v355, 66
        %v1319 = vpop.permute.xlu0 %1318
        %1320 = vrot.lane.b32.xlu0 %v359, 66
        %v1321 = vpop.permute.xlu0 %1320
        %vm1322 = vcmask 539648
        %v1323 = vsel %vm1322, %v1319, %v1321
        %v1327 = vmul.f32 %v262, %v1319
        %v1328 = vmul.f32 %v258, %v1323
        %v1329 = vmul.f32 %v263, %v1321
        %v1330 = vstv %s1317
        %v1331 = vmul.f32 %v1330, %v1327
        %v1332 = vmul.f32 %v1330, %v1328
        %v1333 = vmul.f32 %v1330, %v1329
        %1337 = vrot.lane.b32.xlu0 %v1331, 62
        %v1338 = vpop.permute.xlu0 %1337
        %1339 = vrot.lane.b32.xlu0 %v1332, 62
        %v1340 = vpop.permute.xlu0 %1339
        %1341 = vrot.lane.b32.xlu0 %v1333, 62
        %v1342 = vpop.permute.xlu0 %1341
        %vm1343 = vcmask 506880
        %v1344 = vsel %vm1343, %v1338, %v1340
        %v1345 = vsel %vm1343, %v1340, %v1342
        %v1348 = vadd.f32 %v1315, %v1344
        %v1349 = vadd.f32 %v1316, %v1345
        %s1350 = sld [smem:[#allocation6 + $0x1f]]
        %1351 = vrot.lane.b32.xlu0 %v397, 67
        %v1352 = vpop.permute.xlu0 %1351
        %1353 = vrot.lane.b32.xlu0 %v401, 67
        %v1354 = vpop.permute.xlu0 %1353
        %vm1355 = vcmask 547840
        %v1356 = vsel %vm1355, %v1352, %v1354
        %v1360 = vmul.f32 %v262, %v1352
        %v1361 = vmul.f32 %v258, %v1356
        %v1362 = vmul.f32 %v263, %v1354
        %v1363 = vstv %s1350
        %v1364 = vmul.f32 %v1363, %v1360
        %v1365 = vmul.f32 %v1363, %v1361
        %v1366 = vmul.f32 %v1363, %v1362
        %1370 = vrot.lane.b32.xlu0 %v1364, 61
        %v1371 = vpop.permute.xlu0 %1370
        %1372 = vrot.lane.b32.xlu0 %v1365, 61
        %v1373 = vpop.permute.xlu0 %1372
        %1374 = vrot.lane.b32.xlu0 %v1366, 61
        %v1375 = vpop.permute.xlu0 %1374
        %vm1376 = vcmask 498688
        %v1377 = vsel %vm1376, %v1371, %v1373
        %v1378 = vsel %vm1376, %v1373, %v1375
        %v1381 = vadd.f32 %v1348, %v1377
        %v1382 = vadd.f32 %v1349, %v1378
        %s1383 = sld [smem:[#allocation6 + $0x20]]
        %1384 = vrot.lane.b32.xlu0 %v439, 68
        %v1385 = vpop.permute.xlu0 %1384
        %1386 = vrot.lane.b32.xlu0 %v443, 68
        %v1387 = vpop.permute.xlu0 %1386
        %vm1388 = vcmask 556032
        %v1389 = vsel %vm1388, %v1385, %v1387
        %v1393 = vmul.f32 %v262, %v1385
        %v1394 = vmul.f32 %v258, %v1389
        %v1395 = vmul.f32 %v263, %v1387
        %v1396 = vstv %s1383
        %v1397 = vmul.f32 %v1396, %v1393
        %v1398 = vmul.f32 %v1396, %v1394
        %v1399 = vmul.f32 %v1396, %v1395
        %1403 = vrot.lane.b32.xlu0 %v1397, 60
        %v1404 = vpop.permute.xlu0 %1403
        %1405 = vrot.lane.b32.xlu0 %v1398, 60
        %v1406 = vpop.permute.xlu0 %1405
        %1407 = vrot.lane.b32.xlu0 %v1399, 60
        %v1408 = vpop.permute.xlu0 %1407
        %vm1409 = vcmask 490496
        %v1410 = vsel %vm1409, %v1404, %v1406
        %v1411 = vsel %vm1409, %v1406, %v1408
        %v1414 = vadd.f32 %v1381, %v1410
        %v1415 = vadd.f32 %v1382, %v1411
        %s1416 = sld [smem:[#allocation6 + $0x21]]
        %1417 = vrot.lane.b32.xlu0 %v481, 69
        %v1418 = vpop.permute.xlu0 %1417
        %1419 = vrot.lane.b32.xlu0 %v485, 69
        %v1420 = vpop.permute.xlu0 %1419
        %vm1421 = vcmask 564224
        %v1422 = vsel %vm1421, %v1418, %v1420
        %v1426 = vmul.f32 %v262, %v1418
        %v1427 = vmul.f32 %v258, %v1422
        %v1428 = vmul.f32 %v263, %v1420
        %v1429 = vstv %s1416
        %v1430 = vmul.f32 %v1429, %v1426
        %v1431 = vmul.f32 %v1429, %v1427
        %v1432 = vmul.f32 %v1429, %v1428
        %1436 = vrot.lane.b32.xlu0 %v1430, 59
        %v1437 = vpop.permute.xlu0 %1436
        %1438 = vrot.lane.b32.xlu0 %v1431, 59
        %v1439 = vpop.permute.xlu0 %1438
        %1440 = vrot.lane.b32.xlu0 %v1432, 59
        %v1441 = vpop.permute.xlu0 %1440
        %vm1442 = vcmask 482304
        %v1443 = vsel %vm1442, %v1437, %v1439
        %v1444 = vsel %vm1442, %v1439, %v1441
        %v1447 = vadd.f32 %v1414, %v1443
        %v1448 = vadd.f32 %v1415, %v1444
        %s1449 = sld [smem:[#allocation6 + $0x22]]
        %1450 = vrot.lane.b32.xlu0 %v523, 70
        %v1451 = vpop.permute.xlu0 %1450
        %1452 = vrot.lane.b32.xlu0 %v527, 70
        %v1453 = vpop.permute.xlu0 %1452
        %vm1454 = vcmask 572416
        %v1455 = vsel %vm1454, %v1451, %v1453
        %v1459 = vmul.f32 %v262, %v1451
        %v1460 = vmul.f32 %v258, %v1455
        %v1461 = vmul.f32 %v263, %v1453
        %v1462 = vstv %s1449
        %v1463 = vmul.f32 %v1462, %v1459
        %v1464 = vmul.f32 %v1462, %v1460
        %v1465 = vmul.f32 %v1462, %v1461
        %1469 = vrot.lane.b32.xlu0 %v1463, 58
        %v1470 = vpop.permute.xlu0 %1469
        %1471 = vrot.lane.b32.xlu0 %v1464, 58
        %v1472 = vpop.permute.xlu0 %1471
        %1473 = vrot.lane.b32.xlu0 %v1465, 58
        %v1474 = vpop.permute.xlu0 %1473
        %vm1475 = vcmask 474112
        %v1476 = vsel %vm1475, %v1470, %v1472
        %v1477 = vsel %vm1475, %v1472, %v1474
        %v1480 = vadd.f32 %v1447, %v1476
        %v1481 = vadd.f32 %v1448, %v1477
        %s1482 = sld [smem:[#allocation6 + $0x23]]
        %1483 = vrot.lane.b32.xlu0 %v294, 80
        %v1484 = vpop.permute.xlu0 %1483
        %1485 = vrot.lane.b32.xlu0 %v298, 80
        %v1486 = vpop.permute.xlu0 %1485
        %v1487 = vsel %vm1048, %v1484, %v1486
        %v1491 = vmul.f32 %v262, %v1484
        %v1492 = vmul.f32 %v258, %v1487
        %v1493 = vmul.f32 %v263, %v1486
        %v1494 = vstv %s1482
        %v1495 = vmul.f32 %v1494, %v1491
        %v1496 = vmul.f32 %v1494, %v1492
        %v1497 = vmul.f32 %v1494, %v1493
        %1501 = vrot.lane.b32.xlu0 %v1495, 48
        %v1502 = vpop.permute.xlu0 %1501
        %1503 = vrot.lane.b32.xlu0 %v1496, 48
        %v1504 = vpop.permute.xlu0 %1503
        %1505 = vrot.lane.b32.xlu0 %v1497, 48
        %v1506 = vpop.permute.xlu0 %1505
        %v1507 = vsel %vm1027, %v1502, %v1504
        %v1508 = vsel %vm1027, %v1504, %v1506
        %v1511 = vadd.f32 %v1480, %v1507
        %v1512 = vadd.f32 %v1481, %v1508
        %s1513 = sld [smem:[#allocation6 + $0x24]]
        %1514 = vrot.lane.b32.xlu0 %v313, 81
        %v1515 = vpop.permute.xlu0 %1514
        %1516 = vrot.lane.b32.xlu0 %v317, 81
        %v1517 = vpop.permute.xlu0 %1516
        %vm1518 = vcmask 662528
        %v1519 = vsel %vm1518, %v1515, %v1517
        %v1523 = vmul.f32 %v262, %v1515
        %v1524 = vmul.f32 %v258, %v1519
        %v1525 = vmul.f32 %v263, %v1517
        %v1526 = vstv %s1513
        %v1527 = vmul.f32 %v1526, %v1523
        %v1528 = vmul.f32 %v1526, %v1524
        %v1529 = vmul.f32 %v1526, %v1525
        %1533 = vrot.lane.b32.xlu0 %v1527, 47
        %v1534 = vpop.permute.xlu0 %1533
        %1535 = vrot.lane.b32.xlu0 %v1528, 47
        %v1536 = vpop.permute.xlu0 %1535
        %1537 = vrot.lane.b32.xlu0 %v1529, 47
        %v1538 = vpop.permute.xlu0 %1537
        %vm1539 = vcmask 384000
        %v1540 = vsel %vm1539, %v1534, %v1536
        %v1541 = vsel %vm1539, %v1536, %v1538
        %v1544 = vadd.f32 %v1511, %v1540
        %v1545 = vadd.f32 %v1512, %v1541
        %s1546 = sld [smem:[#allocation6 + $0x25]]
        %1547 = vrot.lane.b32.xlu0 %v355, 82
        %v1548 = vpop.permute.xlu0 %1547
        %1549 = vrot.lane.b32.xlu0 %v359, 82
        %v1550 = vpop.permute.xlu0 %1549
        %vm1551 = vcmask 670720
        %v1552 = vsel %vm1551, %v1548, %v1550
        %v1556 = vmul.f32 %v262, %v1548
        %v1557 = vmul.f32 %v258, %v1552
        %v1558 = vmul.f32 %v263, %v1550
        %v1559 = vstv %s1546
        %v1560 = vmul.f32 %v1559, %v1556
        %v1561 = vmul.f32 %v1559, %v1557
        %v1562 = vmul.f32 %v1559, %v1558
        %1566 = vrot.lane.b32.xlu0 %v1560, 46
        %v1567 = vpop.permute.xlu0 %1566
        %1568 = vrot.lane.b32.xlu0 %v1561, 46
        %v1569 = vpop.permute.xlu0 %1568
        %1570 = vrot.lane.b32.xlu0 %v1562, 46
        %v1571 = vpop.permute.xlu0 %1570
        %vm1572 = vcmask 375808
        %v1573 = vsel %vm1572, %v1567, %v1569
        %v1574 = vsel %vm1572, %v1569, %v1571
        %v1577 = vadd.f32 %v1544, %v1573
        %v1578 = vadd.f32 %v1545, %v1574
        %s1579 = sld [smem:[#allocation6 + $0x26]]
        %1580 = vrot.lane.b32.xlu0 %v397, 83
        %v1581 = vpop.permute.xlu0 %1580
        %1582 = vrot.lane.b32.xlu0 %v401, 83
        %v1583 = vpop.permute.xlu0 %1582
        %vm1584 = vcmask 678912
        %v1585 = vsel %vm1584, %v1581, %v1583
        %v1589 = vmul.f32 %v262, %v1581
        %v1590 = vmul.f32 %v258, %v1585
        %v1591 = vmul.f32 %v263, %v1583
        %v1592 = vstv %s1579
        %v1593 = vmul.f32 %v1592, %v1589
        %v1594 = vmul.f32 %v1592, %v1590
        %v1595 = vmul.f32 %v1592, %v1591
        %1599 = vrot.lane.b32.xlu0 %v1593, 45
        %v1600 = vpop.permute.xlu0 %1599
        %1601 = vrot.lane.b32.xlu0 %v1594, 45
        %v1602 = vpop.permute.xlu0 %1601
        %1603 = vrot.lane.b32.xlu0 %v1595, 45
        %v1604 = vpop.permute.xlu0 %1603
        %vm1605 = vcmask 367616
        %v1606 = vsel %vm1605, %v1600, %v1602
        %v1607 = vsel %vm1605, %v1602, %v1604
        %v1610 = vadd.f32 %v1577, %v1606
        %v1611 = vadd.f32 %v1578, %v1607
        %s1612 = sld [smem:[#allocation6 + $0x27]]
        %1613 = vrot.lane.b32.xlu0 %v439, 84
        %v1614 = vpop.permute.xlu0 %1613
        %1615 = vrot.lane.b32.xlu0 %v443, 84
        %v1616 = vpop.permute.xlu0 %1615
        %vm1617 = vcmask 687104
        %v1618 = vsel %vm1617, %v1614, %v1616
        %v1622 = vmul.f32 %v262, %v1614
        %v1623 = vmul.f32 %v258, %v1618
        %v1624 = vmul.f32 %v263, %v1616
        %v1625 = vstv %s1612
        %v1626 = vmul.f32 %v1625, %v1622
        %v1627 = vmul.f32 %v1625, %v1623
        %v1628 = vmul.f32 %v1625, %v1624
        %1632 = vrot.lane.b32.xlu0 %v1626, 44
        %v1633 = vpop.permute.xlu0 %1632
        %1634 = vrot.lane.b32.xlu0 %v1627, 44
        %v1635 = vpop.permute.xlu0 %1634
        %1636 = vrot.lane.b32.xlu0 %v1628, 44
        %v1637 = vpop.permute.xlu0 %1636
        %vm1638 = vcmask 359424
        %v1639 = vsel %vm1638, %v1633, %v1635
        %v1640 = vsel %vm1638, %v1635, %v1637
        %v1643 = vadd.f32 %v1610, %v1639
        %v1644 = vadd.f32 %v1611, %v1640
        %s1645 = sld [smem:[#allocation6 + $0x28]]
        %1646 = vrot.lane.b32.xlu0 %v481, 85
        %v1647 = vpop.permute.xlu0 %1646
        %1648 = vrot.lane.b32.xlu0 %v485, 85
        %v1649 = vpop.permute.xlu0 %1648
        %vm1650 = vcmask 695296
        %v1651 = vsel %vm1650, %v1647, %v1649
        %v1655 = vmul.f32 %v262, %v1647
        %v1656 = vmul.f32 %v258, %v1651
        %v1657 = vmul.f32 %v263, %v1649
        %v1658 = vstv %s1645
        %v1659 = vmul.f32 %v1658, %v1655
        %v1660 = vmul.f32 %v1658, %v1656
        %v1661 = vmul.f32 %v1658, %v1657
        %1665 = vrot.lane.b32.xlu0 %v1659, 43
        %v1666 = vpop.permute.xlu0 %1665
        %1667 = vrot.lane.b32.xlu0 %v1660, 43
        %v1668 = vpop.permute.xlu0 %1667
        %1669 = vrot.lane.b32.xlu0 %v1661, 43
        %v1670 = vpop.permute.xlu0 %1669
        %vm1671 = vcmask 351232
        %v1672 = vsel %vm1671, %v1666, %v1668
        %v1673 = vsel %vm1671, %v1668, %v1670
        %v1676 = vadd.f32 %v1643, %v1672
        %v1677 = vadd.f32 %v1644, %v1673
        %s1678 = sld [smem:[#allocation6 + $0x29]]
        %1679 = vrot.lane.b32.xlu0 %v523, 86
        %v1680 = vpop.permute.xlu0 %1679
        %1681 = vrot.lane.b32.xlu0 %v527, 86
        %v1682 = vpop.permute.xlu0 %1681
        %vm1683 = vcmask 703488
        %v1684 = vsel %vm1683, %v1680, %v1682
        %v1688 = vmul.f32 %v262, %v1680
        %v1689 = vmul.f32 %v258, %v1684
        %v1690 = vmul.f32 %v263, %v1682
        %v1691 = vstv %s1678
        %v1692 = vmul.f32 %v1691, %v1688
        %v1693 = vmul.f32 %v1691, %v1689
        %v1694 = vmul.f32 %v1691, %v1690
        %1698 = vrot.lane.b32.xlu0 %v1692, 42
        %v1699 = vpop.permute.xlu0 %1698
        %1700 = vrot.lane.b32.xlu0 %v1693, 42
        %v1701 = vpop.permute.xlu0 %1700
        %1702 = vrot.lane.b32.xlu0 %v1694, 42
        %v1703 = vpop.permute.xlu0 %1702
        %vm1704 = vcmask 343040
        %v1705 = vsel %vm1704, %v1699, %v1701
        %v1706 = vsel %vm1704, %v1701, %v1703
        %v1709 = vadd.f32 %v1676, %v1705
        %v1710 = vadd.f32 %v1677, %v1706
        %s1711 = sld [smem:[#allocation6 + $0x2a]]
        %1712 = vrot.lane.b32.xlu0 %v294, 96
        %v1713 = vpop.permute.xlu0 %1712
        %1714 = vrot.lane.b32.xlu0 %v298, 96
        %v1715 = vpop.permute.xlu0 %1714
        %v1716 = vsel %vm817, %v1713, %v1715
        %v1720 = vmul.f32 %v262, %v1713
        %v1721 = vmul.f32 %v258, %v1716
        %v1722 = vmul.f32 %v263, %v1715
        %v1723 = vstv %s1711
        %v1724 = vmul.f32 %v1723, %v1720
        %v1725 = vmul.f32 %v1723, %v1721
        %v1726 = vmul.f32 %v1723, %v1722
        %1730 = vrot.lane.b32.xlu0 %v1724, 32
        %v1731 = vpop.permute.xlu0 %1730
        %1732 = vrot.lane.b32.xlu0 %v1725, 32
        %v1733 = vpop.permute.xlu0 %1732
        %1734 = vrot.lane.b32.xlu0 %v1726, 32
        %v1735 = vpop.permute.xlu0 %1734
        %v1736 = vsel %vm796, %v1731, %v1733
        %v1737 = vsel %vm796, %v1733, %v1735
        %v1740 = vadd.f32 %v1709, %v1736
        %v1741 = vadd.f32 %v1710, %v1737
        %s1742 = sld [smem:[#allocation6 + $0x2b]]
        %1743 = vrot.lane.b32.xlu0 %v313, 97
        %v1744 = vpop.permute.xlu0 %1743
        %1745 = vrot.lane.b32.xlu0 %v317, 97
        %v1746 = vpop.permute.xlu0 %1745
        %vm1747 = vcmask 793600
        %v1748 = vsel %vm1747, %v1744, %v1746
        %v1752 = vmul.f32 %v262, %v1744
        %v1753 = vmul.f32 %v258, %v1748
        %v1754 = vmul.f32 %v263, %v1746
        %v1755 = vstv %s1742
        %v1756 = vmul.f32 %v1755, %v1752
        %v1757 = vmul.f32 %v1755, %v1753
        %v1758 = vmul.f32 %v1755, %v1754
        %1762 = vrot.lane.b32.xlu0 %v1756, 31
        %v1763 = vpop.permute.xlu0 %1762
        %1764 = vrot.lane.b32.xlu0 %v1757, 31
        %v1765 = vpop.permute.xlu0 %1764
        %1766 = vrot.lane.b32.xlu0 %v1758, 31
        %v1767 = vpop.permute.xlu0 %1766
        %vm1768 = vcmask 252928
        %v1769 = vsel %vm1768, %v1763, %v1765
        %v1770 = vsel %vm1768, %v1765, %v1767
        %v1773 = vadd.f32 %v1740, %v1769
        %v1774 = vadd.f32 %v1741, %v1770
        %s1775 = sld [smem:[#allocation6 + $0x2c]]
        %1776 = vrot.lane.b32.xlu0 %v355, 98
        %v1777 = vpop.permute.xlu0 %1776
        %1778 = vrot.lane.b32.xlu0 %v359, 98
        %v1779 = vpop.permute.xlu0 %1778
        %vm1780 = vcmask 801792
        %v1781 = vsel %vm1780, %v1777, %v1779
        %v1785 = vmul.f32 %v262, %v1777
        %v1786 = vmul.f32 %v258, %v1781
        %v1787 = vmul.f32 %v263, %v1779
        %v1788 = vstv %s1775
        %v1789 = vmul.f32 %v1788, %v1785
        %v1790 = vmul.f32 %v1788, %v1786
        %v1791 = vmul.f32 %v1788, %v1787
        %1795 = vrot.lane.b32.xlu0 %v1789, 30
        %v1796 = vpop.permute.xlu0 %1795
        %1797 = vrot.lane.b32.xlu0 %v1790, 30
        %v1798 = vpop.permute.xlu0 %1797
        %1799 = vrot.lane.b32.xlu0 %v1791, 30
        %v1800 = vpop.permute.xlu0 %1799
        %vm1801 = vcmask 244736
        %v1802 = vsel %vm1801, %v1796, %v1798
        %v1803 = vsel %vm1801, %v1798, %v1800
        %v1806 = vadd.f32 %v1773, %v1802
        %v1807 = vadd.f32 %v1774, %v1803
        %s1808 = sld [smem:[#allocation6 + $0x2d]]
        %1809 = vrot.lane.b32.xlu0 %v397, 99
        %v1810 = vpop.permute.xlu0 %1809
        %1811 = vrot.lane.b32.xlu0 %v401, 99
        %v1812 = vpop.permute.xlu0 %1811
        %vm1813 = vcmask 809984
        %v1814 = vsel %vm1813, %v1810, %v1812
        %v1818 = vmul.f32 %v262, %v1810
        %v1819 = vmul.f32 %v258, %v1814
        %v1820 = vmul.f32 %v263, %v1812
        %v1821 = vstv %s1808
        %v1822 = vmul.f32 %v1821, %v1818
        %v1823 = vmul.f32 %v1821, %v1819
        %v1824 = vmul.f32 %v1821, %v1820
        %1828 = vrot.lane.b32.xlu0 %v1822, 29
        %v1829 = vpop.permute.xlu0 %1828
        %1830 = vrot.lane.b32.xlu0 %v1823, 29
        %v1831 = vpop.permute.xlu0 %1830
        %1832 = vrot.lane.b32.xlu0 %v1824, 29
        %v1833 = vpop.permute.xlu0 %1832
        %vm1834 = vcmask 236544
        %v1835 = vsel %vm1834, %v1829, %v1831
        %v1836 = vsel %vm1834, %v1831, %v1833
        %v1839 = vadd.f32 %v1806, %v1835
        %v1840 = vadd.f32 %v1807, %v1836
        %s1841 = sld [smem:[#allocation6 + $0x2e]]
        %1842 = vrot.lane.b32.xlu0 %v439, 100
        %v1843 = vpop.permute.xlu0 %1842
        %1844 = vrot.lane.b32.xlu0 %v443, 100
        %v1845 = vpop.permute.xlu0 %1844
        %vm1846 = vcmask 818176
        %v1847 = vsel %vm1846, %v1843, %v1845
        %v1851 = vmul.f32 %v262, %v1843
        %v1852 = vmul.f32 %v258, %v1847
        %v1853 = vmul.f32 %v263, %v1845
        %v1854 = vstv %s1841
        %v1855 = vmul.f32 %v1854, %v1851
        %v1856 = vmul.f32 %v1854, %v1852
        %v1857 = vmul.f32 %v1854, %v1853
        %1861 = vrot.lane.b32.xlu0 %v1855, 28
        %v1862 = vpop.permute.xlu0 %1861
        %1863 = vrot.lane.b32.xlu0 %v1856, 28
        %v1864 = vpop.permute.xlu0 %1863
        %1865 = vrot.lane.b32.xlu0 %v1857, 28
        %v1866 = vpop.permute.xlu0 %1865
        %vm1867 = vcmask 228352
        %v1868 = vsel %vm1867, %v1862, %v1864
        %v1869 = vsel %vm1867, %v1864, %v1866
        %v1872 = vadd.f32 %v1839, %v1868
        %v1873 = vadd.f32 %v1840, %v1869
        %s1874 = sld [smem:[#allocation6 + $0x2f]]
        %1875 = vrot.lane.b32.xlu0 %v481, 101
        %v1876 = vpop.permute.xlu0 %1875
        %1877 = vrot.lane.b32.xlu0 %v485, 101
        %v1878 = vpop.permute.xlu0 %1877
        %vm1879 = vcmask 826368
        %v1880 = vsel %vm1879, %v1876, %v1878
        %v1884 = vmul.f32 %v262, %v1876
        %v1885 = vmul.f32 %v258, %v1880
        %v1886 = vmul.f32 %v263, %v1878
        %v1887 = vstv %s1874
        %v1888 = vmul.f32 %v1887, %v1884
        %v1889 = vmul.f32 %v1887, %v1885
        %v1890 = vmul.f32 %v1887, %v1886
        %1894 = vrot.lane.b32.xlu0 %v1888, 27
        %v1895 = vpop.permute.xlu0 %1894
        %1896 = vrot.lane.b32.xlu0 %v1889, 27
        %v1897 = vpop.permute.xlu0 %1896
        %1898 = vrot.lane.b32.xlu0 %v1890, 27
        %v1899 = vpop.permute.xlu0 %1898
        %vm1900 = vcmask 220160
        %v1901 = vsel %vm1900, %v1895, %v1897
        %v1902 = vsel %vm1900, %v1897, %v1899
        %v1905 = vadd.f32 %v1872, %v1901
        %v1906 = vadd.f32 %v1873, %v1902
        %s1907 = sld [smem:[#allocation6 + $0x30]]
        %1908 = vrot.lane.b32.xlu0 %v523, 102
        %v1909 = vpop.permute.xlu0 %1908
        %1910 = vrot.lane.b32.xlu0 %v527, 102
        %v1911 = vpop.permute.xlu0 %1910
        %vm1912 = vcmask 834560
        %v1913 = vsel %vm1912, %v1909, %v1911
        %v1917 = vmul.f32 %v262, %v1909
        %v1918 = vmul.f32 %v258, %v1913
        %v1919 = vmul.f32 %v263, %v1911
        %v1920 = vstv %s1907
        %v1921 = vmul.f32 %v1920, %v1917
        %v1922 = vmul.f32 %v1920, %v1918
        %v1923 = vmul.f32 %v1920, %v1919
        %1927 = vrot.lane.b32.xlu0 %v1921, 26
        %v1928 = vpop.permute.xlu0 %1927
        %1929 = vrot.lane.b32.xlu0 %v1922, 26
        %v1930 = vpop.permute.xlu0 %1929
        %1931 = vrot.lane.b32.xlu0 %v1923, 26
        %v1932 = vpop.permute.xlu0 %1931
        %vm1933 = vcmask 211968
        %v1934 = vsel %vm1933, %v1928, %v1930
        %v1935 = vsel %vm1933, %v1930, %v1932
        %v1938 = vadd.f32 %v1905, %v1934
        %v1939 = vadd.f32 %v1906, %v1935
        %s1940 = sld [smem:[#allocation6 + $0x31]]
        %v1941 = vmul.f32 %v274, %v294
        %v1942 = vmul.f32 %v270, %v298
        %v1943 = vstv %s1940
        %v1944 = vmul.f32 %v1943, %v1941
        %v1945 = vmul.f32 %v1943, %v1942
        %v1946 = vadd.f32 %v1938, %v1944
        %v1947 = vadd.f32 %v1939, %v1945
        %s1948 = sld [smem:[#allocation6 + $0x32]]
        %v1949 = vmul.f32 %v274, %v319
        %v1950 = vmul.f32 %v270, %v323
        %v1951 = vmul.f32 %v275, %v321
        %v1952 = vstv %s1948
        %v1953 = vmul.f32 %v1952, %v1949
        %v1954 = vmul.f32 %v1952, %v1950
        %v1955 = vmul.f32 %v1952, %v1951
        %1959 = vrot.lane.b32.xlu0 %v1953, 127
        %v1960 = vpop.permute.xlu0 %1959
        %1961 = vrot.lane.b32.xlu0 %v1954, 127
        %v1962 = vpop.permute.xlu0 %1961
        %1963 = vrot.lane.b32.xlu0 %v1955, 127
        %v1964 = vpop.permute.xlu0 %1963
        %v1965 = vsel %vm343, %v1960, %v1962
        %v1966 = vsel %vm343, %v1962, %v1964
        %v1969 = vadd.f32 %v1946, %v1965
        %v1970 = vadd.f32 %v1947, %v1966
        %s1971 = sld [smem:[#allocation6 + $0x33]]
        %v1972 = vmul.f32 %v274, %v361
        %v1973 = vmul.f32 %v270, %v365
        %v1974 = vmul.f32 %v275, %v363
        %v1975 = vstv %s1971
        %v1976 = vmul.f32 %v1975, %v1972
        %v1977 = vmul.f32 %v1975, %v1973
        %v1978 = vmul.f32 %v1975, %v1974
        %1982 = vrot.lane.b32.xlu0 %v1976, 126
        %v1983 = vpop.permute.xlu0 %1982
        %1984 = vrot.lane.b32.xlu0 %v1977, 126
        %v1985 = vpop.permute.xlu0 %1984
        %1986 = vrot.lane.b32.xlu0 %v1978, 126
        %v1987 = vpop.permute.xlu0 %1986
        %v1988 = vsel %vm385, %v1983, %v1985
        %v1989 = vsel %vm385, %v1985, %v1987
        %v1992 = vadd.f32 %v1969, %v1988
        %v1993 = vadd.f32 %v1970, %v1989
        %s1994 = sld [smem:[#allocation6 + $0x34]]
        %v1995 = vmul.f32 %v274, %v403
        %v1996 = vmul.f32 %v270, %v407
        %v1997 = vmul.f32 %v275, %v405
        %v1998 = vstv %s1994
        %v1999 = vmul.f32 %v1998, %v1995
        %v2000 = vmul.f32 %v1998, %v1996
        %v2001 = vmul.f32 %v1998, %v1997
        %2005 = vrot.lane.b32.xlu0 %v1999, 125
        %v2006 = vpop.permute.xlu0 %2005
        %2007 = vrot.lane.b32.xlu0 %v2000, 125
        %v2008 = vpop.permute.xlu0 %2007
        %2009 = vrot.lane.b32.xlu0 %v2001, 125
        %v2010 = vpop.permute.xlu0 %2009
        %v2011 = vsel %vm427, %v2006, %v2008
        %v2012 = vsel %vm427, %v2008, %v2010
        %v2015 = vadd.f32 %v1992, %v2011
        %v2016 = vadd.f32 %v1993, %v2012
        %s2017 = sld [smem:[#allocation6 + $0x35]]
        %v2018 = vmul.f32 %v274, %v445
        %v2019 = vmul.f32 %v270, %v449
        %v2020 = vmul.f32 %v275, %v447
        %v2021 = vstv %s2017
        %v2022 = vmul.f32 %v2021, %v2018
        %v2023 = vmul.f32 %v2021, %v2019
        %v2024 = vmul.f32 %v2021, %v2020
        %2028 = vrot.lane.b32.xlu0 %v2022, 124
        %v2029 = vpop.permute.xlu0 %2028
        %2030 = vrot.lane.b32.xlu0 %v2023, 124
        %v2031 = vpop.permute.xlu0 %2030
        %2032 = vrot.lane.b32.xlu0 %v2024, 124
        %v2033 = vpop.permute.xlu0 %2032
        %v2034 = vsel %vm469, %v2029, %v2031
        %v2035 = vsel %vm469, %v2031, %v2033
        %v2038 = vadd.f32 %v2015, %v2034
        %v2039 = vadd.f32 %v2016, %v2035
        %s2040 = sld [smem:[#allocation6 + $0x36]]
        %v2041 = vmul.f32 %v274, %v487
        %v2042 = vmul.f32 %v270, %v491
        %v2043 = vmul.f32 %v275, %v489
        %v2044 = vstv %s2040
        %v2045 = vmul.f32 %v2044, %v2041
        %v2046 = vmul.f32 %v2044, %v2042
        %v2047 = vmul.f32 %v2044, %v2043
        %2051 = vrot.lane.b32.xlu0 %v2045, 123
        %v2052 = vpop.permute.xlu0 %2051
        %2053 = vrot.lane.b32.xlu0 %v2046, 123
        %v2054 = vpop.permute.xlu0 %2053
        %2055 = vrot.lane.b32.xlu0 %v2047, 123
        %v2056 = vpop.permute.xlu0 %2055
        %v2057 = vsel %vm511, %v2052, %v2054
        %v2058 = vsel %vm511, %v2054, %v2056
        %v2061 = vadd.f32 %v2038, %v2057
        %v2062 = vadd.f32 %v2039, %v2058
        %s2063 = sld [smem:[#allocation6 + $0x37]]
        %v2064 = vmul.f32 %v274, %v529
        %v2065 = vmul.f32 %v270, %v533
        %v2066 = vmul.f32 %v275, %v531
        %v2067 = vstv %s2063
        %v2068 = vmul.f32 %v2067, %v2064
        %v2069 = vmul.f32 %v2067, %v2065
        %v2070 = vmul.f32 %v2067, %v2066
        %2074 = vrot.lane.b32.xlu0 %v2068, 122
        %v2075 = vpop.permute.xlu0 %2074
        %2076 = vrot.lane.b32.xlu0 %v2069, 122
        %v2077 = vpop.permute.xlu0 %2076
        %2078 = vrot.lane.b32.xlu0 %v2070, 122
        %v2079 = vpop.permute.xlu0 %2078
        %v2080 = vsel %vm553, %v2075, %v2077
        %v2081 = vsel %vm553, %v2077, %v2079
        %v2084 = vadd.f32 %v2061, %v2080
        %v2085 = vadd.f32 %v2062, %v2081
        %s2086 = sld [smem:[#allocation6 + $0x38]]
        %v2087 = vmul.f32 %v274, %v562
        %v2088 = vmul.f32 %v270, %v566
        %v2089 = vmul.f32 %v275, %v564
        %v2090 = vstv %s2086
        %v2091 = vmul.f32 %v2090, %v2087
        %v2092 = vmul.f32 %v2090, %v2088
        %v2093 = vmul.f32 %v2090, %v2089
        %2097 = vrot.lane.b32.xlu0 %v2091, 112
        %v2098 = vpop.permute.xlu0 %2097
        %2099 = vrot.lane.b32.xlu0 %v2092, 112
        %v2100 = vpop.permute.xlu0 %2099
        %2101 = vrot.lane.b32.xlu0 %v2093, 112
        %v2102 = vpop.permute.xlu0 %2101
        %v2103 = vsel %vm586, %v2098, %v2100
        %v2104 = vsel %vm586, %v2100, %v2102
        %v2107 = vadd.f32 %v2084, %v2103
        %v2108 = vadd.f32 %v2085, %v2104
        %s2109 = sld [smem:[#allocation6 + $0x39]]
        %v2110 = vmul.f32 %v274, %v595
        %v2111 = vmul.f32 %v270, %v599
        %v2112 = vmul.f32 %v275, %v597
        %v2113 = vstv %s2109
        %v2114 = vmul.f32 %v2113, %v2110
        %v2115 = vmul.f32 %v2113, %v2111
        %v2116 = vmul.f32 %v2113, %v2112
        %2120 = vrot.lane.b32.xlu0 %v2114, 111
        %v2121 = vpop.permute.xlu0 %2120
        %2122 = vrot.lane.b32.xlu0 %v2115, 111
        %v2123 = vpop.permute.xlu0 %2122
        %2124 = vrot.lane.b32.xlu0 %v2116, 111
        %v2125 = vpop.permute.xlu0 %2124
        %v2126 = vsel %vm619, %v2121, %v2123
        %v2127 = vsel %vm619, %v2123, %v2125
        %v2130 = vadd.f32 %v2107, %v2126
        %v2131 = vadd.f32 %v2108, %v2127
        %s2132 = sld [smem:[#allocation6 + $0x3a]]
        %v2133 = vmul.f32 %v274, %v628
        %v2134 = vmul.f32 %v270, %v632
        %v2135 = vmul.f32 %v275, %v630
        %v2136 = vstv %s2132
        %v2137 = vmul.f32 %v2136, %v2133
        %v2138 = vmul.f32 %v2136, %v2134
        %v2139 = vmul.f32 %v2136, %v2135
        %2143 = vrot.lane.b32.xlu0 %v2137, 110
        %v2144 = vpop.permute.xlu0 %2143
        %2145 = vrot.lane.b32.xlu0 %v2138, 110
        %v2146 = vpop.permute.xlu0 %2145
        %2147 = vrot.lane.b32.xlu0 %v2139, 110
        %v2148 = vpop.permute.xlu0 %2147
        %v2149 = vsel %vm652, %v2144, %v2146
        %v2150 = vsel %vm652, %v2146, %v2148
        %v2153 = vadd.f32 %v2130, %v2149
        %v2154 = vadd.f32 %v2131, %v2150
        %s2155 = sld [smem:[#allocation6 + $0x3b]]
        %v2156 = vmul.f32 %v274, %v661
        %v2157 = vmul.f32 %v270, %v665
        %v2158 = vmul.f32 %v275, %v663
        %v2159 = vstv %s2155
        %v2160 = vmul.f32 %v2159, %v2156
        %v2161 = vmul.f32 %v2159, %v2157
        %v2162 = vmul.f32 %v2159, %v2158
        %2166 = vrot.lane.b32.xlu0 %v2160, 109
        %v2167 = vpop.permute.xlu0 %2166
        %2168 = vrot.lane.b32.xlu0 %v2161, 109
        %v2169 = vpop.permute.xlu0 %2168
        %2170 = vrot.lane.b32.xlu0 %v2162, 109
        %v2171 = vpop.permute.xlu0 %2170
        %v2172 = vsel %vm685, %v2167, %v2169
        %v2173 = vsel %vm685, %v2169, %v2171
        %v2176 = vadd.f32 %v2153, %v2172
        %v2177 = vadd.f32 %v2154, %v2173
        %s2178 = sld [smem:[#allocation6 + $0x3c]]
        %v2179 = vmul.f32 %v274, %v694
        %v2180 = vmul.f32 %v270, %v698
        %v2181 = vmul.f32 %v275, %v696
        %v2182 = vstv %s2178
        %v2183 = vmul.f32 %v2182, %v2179
        %v2184 = vmul.f32 %v2182, %v2180
        %v2185 = vmul.f32 %v2182, %v2181
        %2189 = vrot.lane.b32.xlu0 %v2183, 108
        %v2190 = vpop.permute.xlu0 %2189
        %2191 = vrot.lane.b32.xlu0 %v2184, 108
        %v2192 = vpop.permute.xlu0 %2191
        %2193 = vrot.lane.b32.xlu0 %v2185, 108
        %v2194 = vpop.permute.xlu0 %2193
        %v2195 = vsel %vm718, %v2190, %v2192
        %v2196 = vsel %vm718, %v2192, %v2194
        %v2199 = vadd.f32 %v2176, %v2195
        %v2200 = vadd.f32 %v2177, %v2196
        %s2201 = sld [smem:[#allocation6 + $0x3d]]
        %v2202 = vmul.f32 %v274, %v727
        %v2203 = vmul.f32 %v270, %v731
        %v2204 = vmul.f32 %v275, %v729
        %v2205 = vstv %s2201
        %v2206 = vmul.f32 %v2205, %v2202
        %v2207 = vmul.f32 %v2205, %v2203
        %v2208 = vmul.f32 %v2205, %v2204
        %2212 = vrot.lane.b32.xlu0 %v2206, 107
        %v2213 = vpop.permute.xlu0 %2212
        %2214 = vrot.lane.b32.xlu0 %v2207, 107
        %v2215 = vpop.permute.xlu0 %2214
        %2216 = vrot.lane.b32.xlu0 %v2208, 107
        %v2217 = vpop.permute.xlu0 %2216
        %v2218 = vsel %vm751, %v2213, %v2215
        %v2219 = vsel %vm751, %v2215, %v2217
        %v2222 = vadd.f32 %v2199, %v2218
        %v2223 = vadd.f32 %v2200, %v2219
        %s2224 = sld [smem:[#allocation6 + $0x3e]]
        %v2225 = vmul.f32 %v274, %v760
        %v2226 = vmul.f32 %v270, %v764
        %v2227 = vmul.f32 %v275, %v762
        %v2228 = vstv %s2224
        %v2229 = vmul.f32 %v2228, %v2225
        %v2230 = vmul.f32 %v2228, %v2226
        %v2231 = vmul.f32 %v2228, %v2227
        %2235 = vrot.lane.b32.xlu0 %v2229, 106
        %v2236 = vpop.permute.xlu0 %2235
        %2237 = vrot.lane.b32.xlu0 %v2230, 106
        %v2238 = vpop.permute.xlu0 %2237
        %2239 = vrot.lane.b32.xlu0 %v2231, 106
        %v2240 = vpop.permute.xlu0 %2239
        %v2241 = vsel %vm784, %v2236, %v2238
        %v2242 = vsel %vm784, %v2238, %v2240
        %v2245 = vadd.f32 %v2222, %v2241
        %v2246 = vadd.f32 %v2223, %v2242
        %s2247 = sld [smem:[#allocation6 + $0x3f]]
        %v2248 = vmul.f32 %v274, %v793
        %v2249 = vmul.f32 %v270, %v797
        %v2250 = vmul.f32 %v275, %v795
        %v2251 = vstv %s2247
        %v2252 = vmul.f32 %v2251, %v2248
        %v2253 = vmul.f32 %v2251, %v2249
        %v2254 = vmul.f32 %v2251, %v2250
        %2258 = vrot.lane.b32.xlu0 %v2252, 96
        %v2259 = vpop.permute.xlu0 %2258
        %2260 = vrot.lane.b32.xlu0 %v2253, 96
        %v2261 = vpop.permute.xlu0 %2260
        %2262 = vrot.lane.b32.xlu0 %v2254, 96
        %v2263 = vpop.permute.xlu0 %2262
        %v2264 = vsel %vm817, %v2259, %v2261
        %v2265 = vsel %vm817, %v2261, %v2263
        %v2268 = vadd.f32 %v2245, %v2264
        %v2269 = vadd.f32 %v2246, %v2265
        %s2270 = sld [smem:[#allocation6 + $0x40]]
        %v2271 = vmul.f32 %v274, %v826
        %v2272 = vmul.f32 %v270, %v830
        %v2273 = vmul.f32 %v275, %v828
        %v2274 = vstv %s2270
        %v2275 = vmul.f32 %v2274, %v2271
        %v2276 = vmul.f32 %v2274, %v2272
        %v2277 = vmul.f32 %v2274, %v2273
        %2281 = vrot.lane.b32.xlu0 %v2275, 95
        %v2282 = vpop.permute.xlu0 %2281
        %2283 = vrot.lane.b32.xlu0 %v2276, 95
        %v2284 = vpop.permute.xlu0 %2283
        %2285 = vrot.lane.b32.xlu0 %v2277, 95
        %v2286 = vpop.permute.xlu0 %2285
        %v2287 = vsel %vm850, %v2282, %v2284
        %v2288 = vsel %vm850, %v2284, %v2286
        %v2291 = vadd.f32 %v2268, %v2287
        %v2292 = vadd.f32 %v2269, %v2288
        %s2293 = sld [smem:[#allocation6 + $0x41]]
        %v2294 = vmul.f32 %v274, %v859
        %v2295 = vmul.f32 %v270, %v863
        %v2296 = vmul.f32 %v275, %v861
        %v2297 = vstv %s2293
        %v2298 = vmul.f32 %v2297, %v2294
        %v2299 = vmul.f32 %v2297, %v2295
        %v2300 = vmul.f32 %v2297, %v2296
        %2304 = vrot.lane.b32.xlu0 %v2298, 94
        %v2305 = vpop.permute.xlu0 %2304
        %2306 = vrot.lane.b32.xlu0 %v2299, 94
        %v2307 = vpop.permute.xlu0 %2306
        %2308 = vrot.lane.b32.xlu0 %v2300, 94
        %v2309 = vpop.permute.xlu0 %2308
        %v2310 = vsel %vm883, %v2305, %v2307
        %v2311 = vsel %vm883, %v2307, %v2309
        %v2314 = vadd.f32 %v2291, %v2310
        %v2315 = vadd.f32 %v2292, %v2311
        %s2316 = sld [smem:[#allocation6 + $0x42]]
        %v2317 = vmul.f32 %v274, %v892
        %v2318 = vmul.f32 %v270, %v896
        %v2319 = vmul.f32 %v275, %v894
        %v2320 = vstv %s2316
        %v2321 = vmul.f32 %v2320, %v2317
        %v2322 = vmul.f32 %v2320, %v2318
        %v2323 = vmul.f32 %v2320, %v2319
        %2327 = vrot.lane.b32.xlu0 %v2321, 93
        %v2328 = vpop.permute.xlu0 %2327
        %2329 = vrot.lane.b32.xlu0 %v2322, 93
        %v2330 = vpop.permute.xlu0 %2329
        %2331 = vrot.lane.b32.xlu0 %v2323, 93
        %v2332 = vpop.permute.xlu0 %2331
        %v2333 = vsel %vm916, %v2328, %v2330
        %v2334 = vsel %vm916, %v2330, %v2332
        %v2337 = vadd.f32 %v2314, %v2333
        %v2338 = vadd.f32 %v2315, %v2334
        %s2339 = sld [smem:[#allocation6 + $0x43]]
        %v2340 = vmul.f32 %v274, %v925
        %v2341 = vmul.f32 %v270, %v929
        %v2342 = vmul.f32 %v275, %v927
        %v2343 = vstv %s2339
        %v2344 = vmul.f32 %v2343, %v2340
        %v2345 = vmul.f32 %v2343, %v2341
        %v2346 = vmul.f32 %v2343, %v2342
        %2350 = vrot.lane.b32.xlu0 %v2344, 92
        %v2351 = vpop.permute.xlu0 %2350
        %2352 = vrot.lane.b32.xlu0 %v2345, 92
        %v2353 = vpop.permute.xlu0 %2352
        %2354 = vrot.lane.b32.xlu0 %v2346, 92
        %v2355 = vpop.permute.xlu0 %2354
        %v2356 = vsel %vm949, %v2351, %v2353
        %v2357 = vsel %vm949, %v2353, %v2355
        %v2360 = vadd.f32 %v2337, %v2356
        %v2361 = vadd.f32 %v2338, %v2357
        %s2362 = sld [smem:[#allocation6 + $0x44]]
        %v2363 = vmul.f32 %v274, %v958
        %v2364 = vmul.f32 %v270, %v962
        %v2365 = vmul.f32 %v275, %v960
        %v2366 = vstv %s2362
        %v2367 = vmul.f32 %v2366, %v2363
        %v2368 = vmul.f32 %v2366, %v2364
        %v2369 = vmul.f32 %v2366, %v2365
        %2373 = vrot.lane.b32.xlu0 %v2367, 91
        %v2374 = vpop.permute.xlu0 %2373
        %2375 = vrot.lane.b32.xlu0 %v2368, 91
        %v2376 = vpop.permute.xlu0 %2375
        %2377 = vrot.lane.b32.xlu0 %v2369, 91
        %v2378 = vpop.permute.xlu0 %2377
        %v2379 = vsel %vm982, %v2374, %v2376
        %v2380 = vsel %vm982, %v2376, %v2378
        %v2383 = vadd.f32 %v2360, %v2379
        %v2384 = vadd.f32 %v2361, %v2380
        %s2385 = sld [smem:[#allocation6 + $0x45]]
        %v2386 = vmul.f32 %v274, %v991
        %v2387 = vmul.f32 %v270, %v995
        %v2388 = vmul.f32 %v275, %v993
        %v2389 = vstv %s2385
        %v2390 = vmul.f32 %v2389, %v2386
        %v2391 = vmul.f32 %v2389, %v2387
        %v2392 = vmul.f32 %v2389, %v2388
        %2396 = vrot.lane.b32.xlu0 %v2390, 90
        %v2397 = vpop.permute.xlu0 %2396
        %2398 = vrot.lane.b32.xlu0 %v2391, 90
        %v2399 = vpop.permute.xlu0 %2398
        %2400 = vrot.lane.b32.xlu0 %v2392, 90
        %v2401 = vpop.permute.xlu0 %2400
        %v2402 = vsel %vm1015, %v2397, %v2399
        %v2403 = vsel %vm1015, %v2399, %v2401
        %v2406 = vadd.f32 %v2383, %v2402
        %v2407 = vadd.f32 %v2384, %v2403
        %s2408 = sld [smem:[#allocation6 + $0x46]]
        %v2409 = vmul.f32 %v274, %v1024
        %v2410 = vmul.f32 %v270, %v1028
        %v2411 = vmul.f32 %v275, %v1026
        %v2412 = vstv %s2408
        %v2413 = vmul.f32 %v2412, %v2409
        %v2414 = vmul.f32 %v2412, %v2410
        %v2415 = vmul.f32 %v2412, %v2411
        %2419 = vrot.lane.b32.xlu0 %v2413, 80
        %v2420 = vpop.permute.xlu0 %2419
        %2421 = vrot.lane.b32.xlu0 %v2414, 80
        %v2422 = vpop.permute.xlu0 %2421
        %2423 = vrot.lane.b32.xlu0 %v2415, 80
        %v2424 = vpop.permute.xlu0 %2423
        %v2425 = vsel %vm1048, %v2420, %v2422
        %v2426 = vsel %vm1048, %v2422, %v2424
        %v2429 = vadd.f32 %v2406, %v2425
        %v2430 = vadd.f32 %v2407, %v2426
        %s2431 = sld [smem:[#allocation6 + $0x47]]
        %v2432 = vmul.f32 %v274, %v1057
        %v2433 = vmul.f32 %v270, %v1061
        %v2434 = vmul.f32 %v275, %v1059
        %v2435 = vstv %s2431
        %v2436 = vmul.f32 %v2435, %v2432
        %v2437 = vmul.f32 %v2435, %v2433
        %v2438 = vmul.f32 %v2435, %v2434
        %2442 = vrot.lane.b32.xlu0 %v2436, 79
        %v2443 = vpop.permute.xlu0 %2442
        %2444 = vrot.lane.b32.xlu0 %v2437, 79
        %v2445 = vpop.permute.xlu0 %2444
        %2446 = vrot.lane.b32.xlu0 %v2438, 79
        %v2447 = vpop.permute.xlu0 %2446
        %v2448 = vsel %vm1081, %v2443, %v2445
        %v2449 = vsel %vm1081, %v2445, %v2447
        %v2452 = vadd.f32 %v2429, %v2448
        %v2453 = vadd.f32 %v2430, %v2449
        %s2454 = sld [smem:[#allocation6 + $0x48]]
        %v2455 = vmul.f32 %v274, %v1090
        %v2456 = vmul.f32 %v270, %v1094
        %v2457 = vmul.f32 %v275, %v1092
        %v2458 = vstv %s2454
        %v2459 = vmul.f32 %v2458, %v2455
        %v2460 = vmul.f32 %v2458, %v2456
        %v2461 = vmul.f32 %v2458, %v2457
        %2465 = vrot.lane.b32.xlu0 %v2459, 78
        %v2466 = vpop.permute.xlu0 %2465
        %2467 = vrot.lane.b32.xlu0 %v2460, 78
        %v2468 = vpop.permute.xlu0 %2467
        %2469 = vrot.lane.b32.xlu0 %v2461, 78
        %v2470 = vpop.permute.xlu0 %2469
        %v2471 = vsel %vm1114, %v2466, %v2468
        %v2472 = vsel %vm1114, %v2468, %v2470
        %v2475 = vadd.f32 %v2452, %v2471
        %v2476 = vadd.f32 %v2453, %v2472
        %s2477 = sld [smem:[#allocation6 + $0x49]]
        %v2478 = vmul.f32 %v274, %v1123
        %v2479 = vmul.f32 %v270, %v1126
        %v2480 = vmul.f32 %v275, %v1125
        %v2481 = vstv %s2477
        %v2482 = vmul.f32 %v2481, %v2478
        %v2483 = vmul.f32 %v2481, %v2479
        %v2484 = vmul.f32 %v2481, %v2480
        %2488 = vrot.lane.b32.xlu0 %v2482, 77
        %v2489 = vpop.permute.xlu0 %2488
        %2490 = vrot.lane.b32.xlu0 %v2483, 77
        %v2491 = vpop.permute.xlu0 %2490
        %2492 = vrot.lane.b32.xlu0 %v2484, 77
        %v2493 = vpop.permute.xlu0 %2492
        %v2494 = vsel %vm1146, %v2489, %v2491
        %v2495 = vsel %vm1146, %v2491, %v2493
        %v2498 = vadd.f32 %v2475, %v2494
        %v2499 = vadd.f32 %v2476, %v2495
        %s2500 = sld [smem:[#allocation6 + $0x4a]]
        %v2501 = vmul.f32 %v274, %v1155
        %v2502 = vmul.f32 %v270, %v1159
        %v2503 = vmul.f32 %v275, %v1157
        %v2504 = vstv %s2500
        %v2505 = vmul.f32 %v2504, %v2501
        %v2506 = vmul.f32 %v2504, %v2502
        %v2507 = vmul.f32 %v2504, %v2503
        %2511 = vrot.lane.b32.xlu0 %v2505, 76
        %v2512 = vpop.permute.xlu0 %2511
        %2513 = vrot.lane.b32.xlu0 %v2506, 76
        %v2514 = vpop.permute.xlu0 %2513
        %2515 = vrot.lane.b32.xlu0 %v2507, 76
        %v2516 = vpop.permute.xlu0 %2515
        %v2517 = vsel %vm1179, %v2512, %v2514
        %v2518 = vsel %vm1179, %v2514, %v2516
        %v2521 = vadd.f32 %v2498, %v2517
        %v2522 = vadd.f32 %v2499, %v2518
        %s2523 = sld [smem:[#allocation6 + $0x4b]]
        %v2524 = vmul.f32 %v274, %v1188
        %v2525 = vmul.f32 %v270, %v1192
        %v2526 = vmul.f32 %v275, %v1190
        %v2527 = vstv %s2523
        %v2528 = vmul.f32 %v2527, %v2524
        %v2529 = vmul.f32 %v2527, %v2525
        %v2530 = vmul.f32 %v2527, %v2526
        %2534 = vrot.lane.b32.xlu0 %v2528, 75
        %v2535 = vpop.permute.xlu0 %2534
        %2536 = vrot.lane.b32.xlu0 %v2529, 75
        %v2537 = vpop.permute.xlu0 %2536
        %2538 = vrot.lane.b32.xlu0 %v2530, 75
        %v2539 = vpop.permute.xlu0 %2538
        %v2540 = vsel %vm1212, %v2535, %v2537
        %v2541 = vsel %vm1212, %v2537, %v2539
        %v2544 = vadd.f32 %v2521, %v2540
        %v2545 = vadd.f32 %v2522, %v2541
        %s2546 = sld [smem:[#allocation6 + $0x4c]]
        %v2547 = vmul.f32 %v274, %v1221
        %v2548 = vmul.f32 %v270, %v1225
        %v2549 = vmul.f32 %v275, %v1223
        %v2550 = vstv %s2546
        %v2551 = vmul.f32 %v2550, %v2547
        %v2552 = vmul.f32 %v2550, %v2548
        %v2553 = vmul.f32 %v2550, %v2549
        %2557 = vrot.lane.b32.xlu0 %v2551, 74
        %v2558 = vpop.permute.xlu0 %2557
        %2559 = vrot.lane.b32.xlu0 %v2552, 74
        %v2560 = vpop.permute.xlu0 %2559
        %2561 = vrot.lane.b32.xlu0 %v2553, 74
        %v2562 = vpop.permute.xlu0 %2561
        %v2563 = vsel %vm1245, %v2558, %v2560
        %v2564 = vsel %vm1245, %v2560, %v2562
        %v2567 = vadd.f32 %v2544, %v2563
        %v2568 = vadd.f32 %v2545, %v2564
        %s2569 = sld [smem:[#allocation6 + $0x4d]]
        %v2570 = vmul.f32 %v274, %v1254
        %v2571 = vmul.f32 %v270, %v1258
        %v2572 = vmul.f32 %v275, %v1256
        %v2573 = vstv %s2569
        %v2574 = vmul.f32 %v2573, %v2570
        %v2575 = vmul.f32 %v2573, %v2571
        %v2576 = vmul.f32 %v2573, %v2572
        %2580 = vrot.lane.b32.xlu0 %v2574, 64
        %v2581 = vpop.permute.xlu0 %2580
        %2582 = vrot.lane.b32.xlu0 %v2575, 64
        %v2583 = vpop.permute.xlu0 %2582
        %2584 = vrot.lane.b32.xlu0 %v2576, 64
        %v2585 = vpop.permute.xlu0 %2584
        %v2586 = vsel %vm1257, %v2581, %v2583
        %v2587 = vsel %vm1257, %v2583, %v2585
        %v2590 = vadd.f32 %v2567, %v2586
        %v2591 = vadd.f32 %v2568, %v2587
        %s2592 = sld [smem:[#allocation6 + $0x4e]]
        %v2593 = vmul.f32 %v274, %v1286
        %v2594 = vmul.f32 %v270, %v1290
        %v2595 = vmul.f32 %v275, %v1288
        %v2596 = vstv %s2592
        %v2597 = vmul.f32 %v2596, %v2593
        %v2598 = vmul.f32 %v2596, %v2594
        %v2599 = vmul.f32 %v2596, %v2595
        %2603 = vrot.lane.b32.xlu0 %v2597, 63
        %v2604 = vpop.permute.xlu0 %2603
        %2605 = vrot.lane.b32.xlu0 %v2598, 63
        %v2606 = vpop.permute.xlu0 %2605
        %2607 = vrot.lane.b32.xlu0 %v2599, 63
        %v2608 = vpop.permute.xlu0 %2607
        %v2609 = vsel %vm1310, %v2604, %v2606
        %v2610 = vsel %vm1310, %v2606, %v2608
        %v2613 = vadd.f32 %v2590, %v2609
        %v2614 = vadd.f32 %v2591, %v2610
        %s2615 = sld [smem:[#allocation6 + $0x4f]]
        %v2616 = vmul.f32 %v274, %v1319
        %v2617 = vmul.f32 %v270, %v1323
        %v2618 = vmul.f32 %v275, %v1321
        %v2619 = vstv %s2615
        %v2620 = vmul.f32 %v2619, %v2616
        %v2621 = vmul.f32 %v2619, %v2617
        %v2622 = vmul.f32 %v2619, %v2618
        %2626 = vrot.lane.b32.xlu0 %v2620, 62
        %v2627 = vpop.permute.xlu0 %2626
        %2628 = vrot.lane.b32.xlu0 %v2621, 62
        %v2629 = vpop.permute.xlu0 %2628
        %2630 = vrot.lane.b32.xlu0 %v2622, 62
        %v2631 = vpop.permute.xlu0 %2630
        %v2632 = vsel %vm1343, %v2627, %v2629
        %v2633 = vsel %vm1343, %v2629, %v2631
        %v2636 = vadd.f32 %v2613, %v2632
        %v2637 = vadd.f32 %v2614, %v2633
        %s2638 = sld [smem:[#allocation6 + $0x50]]
        %v2639 = vmul.f32 %v274, %v1352
        %v2640 = vmul.f32 %v270, %v1356
        %v2641 = vmul.f32 %v275, %v1354
        %v2642 = vstv %s2638
        %v2643 = vmul.f32 %v2642, %v2639
        %v2644 = vmul.f32 %v2642, %v2640
        %v2645 = vmul.f32 %v2642, %v2641
        %2649 = vrot.lane.b32.xlu0 %v2643, 61
        %v2650 = vpop.permute.xlu0 %2649
        %2651 = vrot.lane.b32.xlu0 %v2644, 61
        %v2652 = vpop.permute.xlu0 %2651
        %2653 = vrot.lane.b32.xlu0 %v2645, 61
        %v2654 = vpop.permute.xlu0 %2653
        %v2655 = vsel %vm1376, %v2650, %v2652
        %v2656 = vsel %vm1376, %v2652, %v2654
        %v2659 = vadd.f32 %v2636, %v2655
        %v2660 = vadd.f32 %v2637, %v2656
        %s2661 = sld [smem:[#allocation6 + $0x51]]
        %v2662 = vmul.f32 %v274, %v1385
        %v2663 = vmul.f32 %v270, %v1389
        %v2664 = vmul.f32 %v275, %v1387
        %v2665 = vstv %s2661
        %v2666 = vmul.f32 %v2665, %v2662
        %v2667 = vmul.f32 %v2665, %v2663
        %v2668 = vmul.f32 %v2665, %v2664
        %2672 = vrot.lane.b32.xlu0 %v2666, 60
        %v2673 = vpop.permute.xlu0 %2672
        %2674 = vrot.lane.b32.xlu0 %v2667, 60
        %v2675 = vpop.permute.xlu0 %2674
        %2676 = vrot.lane.b32.xlu0 %v2668, 60
        %v2677 = vpop.permute.xlu0 %2676
        %v2678 = vsel %vm1409, %v2673, %v2675
        %v2679 = vsel %vm1409, %v2675, %v2677
        %v2682 = vadd.f32 %v2659, %v2678
        %v2683 = vadd.f32 %v2660, %v2679
        %s2684 = sld [smem:[#allocation6 + $0x52]]
        %v2685 = vmul.f32 %v274, %v1418
        %v2686 = vmul.f32 %v270, %v1422
        %v2687 = vmul.f32 %v275, %v1420
        %v2688 = vstv %s2684
        %v2689 = vmul.f32 %v2688, %v2685
        %v2690 = vmul.f32 %v2688, %v2686
        %v2691 = vmul.f32 %v2688, %v2687
        %2695 = vrot.lane.b32.xlu0 %v2689, 59
        %v2696 = vpop.permute.xlu0 %2695
        %2697 = vrot.lane.b32.xlu0 %v2690, 59
        %v2698 = vpop.permute.xlu0 %2697
        %2699 = vrot.lane.b32.xlu0 %v2691, 59
        %v2700 = vpop.permute.xlu0 %2699
        %v2701 = vsel %vm1442, %v2696, %v2698
        %v2702 = vsel %vm1442, %v2698, %v2700
        %v2705 = vadd.f32 %v2682, %v2701
        %v2706 = vadd.f32 %v2683, %v2702
        %s2707 = sld [smem:[#allocation6 + $0x53]]
        %v2708 = vmul.f32 %v274, %v1451
        %v2709 = vmul.f32 %v270, %v1455
        %v2710 = vmul.f32 %v275, %v1453
        %v2711 = vstv %s2707
        %v2712 = vmul.f32 %v2711, %v2708
        %v2713 = vmul.f32 %v2711, %v2709
        %v2714 = vmul.f32 %v2711, %v2710
        %2718 = vrot.lane.b32.xlu0 %v2712, 58
        %v2719 = vpop.permute.xlu0 %2718
        %2720 = vrot.lane.b32.xlu0 %v2713, 58
        %v2721 = vpop.permute.xlu0 %2720
        %2722 = vrot.lane.b32.xlu0 %v2714, 58
        %v2723 = vpop.permute.xlu0 %2722
        %v2724 = vsel %vm1475, %v2719, %v2721
        %v2725 = vsel %vm1475, %v2721, %v2723
        %v2728 = vadd.f32 %v2705, %v2724
        %v2729 = vadd.f32 %v2706, %v2725
        %s2730 = sld [smem:[#allocation6 + $0x54]]
        %v2731 = vmul.f32 %v274, %v1484
        %v2732 = vmul.f32 %v270, %v1487
        %v2733 = vmul.f32 %v275, %v1486
        %v2734 = vstv %s2730
        %v2735 = vmul.f32 %v2734, %v2731
        %v2736 = vmul.f32 %v2734, %v2732
        %v2737 = vmul.f32 %v2734, %v2733
        %2741 = vrot.lane.b32.xlu0 %v2735, 48
        %v2742 = vpop.permute.xlu0 %2741
        %2743 = vrot.lane.b32.xlu0 %v2736, 48
        %v2744 = vpop.permute.xlu0 %2743
        %2745 = vrot.lane.b32.xlu0 %v2737, 48
        %v2746 = vpop.permute.xlu0 %2745
        %v2747 = vsel %vm1027, %v2742, %v2744
        %v2748 = vsel %vm1027, %v2744, %v2746
        %v2751 = vadd.f32 %v2728, %v2747
        %v2752 = vadd.f32 %v2729, %v2748
        %s2753 = sld [smem:[#allocation6 + $0x55]]
        %v2754 = vmul.f32 %v274, %v1515
        %v2755 = vmul.f32 %v270, %v1519
        %v2756 = vmul.f32 %v275, %v1517
        %v2757 = vstv %s2753
        %v2758 = vmul.f32 %v2757, %v2754
        %v2759 = vmul.f32 %v2757, %v2755
        %v2760 = vmul.f32 %v2757, %v2756
        %2764 = vrot.lane.b32.xlu0 %v2758, 47
        %v2765 = vpop.permute.xlu0 %2764
        %2766 = vrot.lane.b32.xlu0 %v2759, 47
        %v2767 = vpop.permute.xlu0 %2766
        %2768 = vrot.lane.b32.xlu0 %v2760, 47
        %v2769 = vpop.permute.xlu0 %2768
        %v2770 = vsel %vm1539, %v2765, %v2767
        %v2771 = vsel %vm1539, %v2767, %v2769
        %v2774 = vadd.f32 %v2751, %v2770
        %v2775 = vadd.f32 %v2752, %v2771
        %s2776 = sld [smem:[#allocation6 + $0x56]]
        %v2777 = vmul.f32 %v274, %v1548
        %v2778 = vmul.f32 %v270, %v1552
        %v2779 = vmul.f32 %v275, %v1550
        %v2780 = vstv %s2776
        %v2781 = vmul.f32 %v2780, %v2777
        %v2782 = vmul.f32 %v2780, %v2778
        %v2783 = vmul.f32 %v2780, %v2779
        %2787 = vrot.lane.b32.xlu0 %v2781, 46
        %v2788 = vpop.permute.xlu0 %2787
        %2789 = vrot.lane.b32.xlu0 %v2782, 46
        %v2790 = vpop.permute.xlu0 %2789
        %2791 = vrot.lane.b32.xlu0 %v2783, 46
        %v2792 = vpop.permute.xlu0 %2791
        %v2793 = vsel %vm1572, %v2788, %v2790
        %v2794 = vsel %vm1572, %v2790, %v2792
        %v2797 = vadd.f32 %v2774, %v2793
        %v2798 = vadd.f32 %v2775, %v2794
        %s2799 = sld [smem:[#allocation6 + $0x57]]
        %v2800 = vmul.f32 %v274, %v1581
        %v2801 = vmul.f32 %v270, %v1585
        %v2802 = vmul.f32 %v275, %v1583
        %v2803 = vstv %s2799
        %v2804 = vmul.f32 %v2803, %v2800
        %v2805 = vmul.f32 %v2803, %v2801
        %v2806 = vmul.f32 %v2803, %v2802
        %2810 = vrot.lane.b32.xlu0 %v2804, 45
        %v2811 = vpop.permute.xlu0 %2810
        %2812 = vrot.lane.b32.xlu0 %v2805, 45
        %v2813 = vpop.permute.xlu0 %2812
        %2814 = vrot.lane.b32.xlu0 %v2806, 45
        %v2815 = vpop.permute.xlu0 %2814
        %v2816 = vsel %vm1605, %v2811, %v2813
        %v2817 = vsel %vm1605, %v2813, %v2815
        %v2820 = vadd.f32 %v2797, %v2816
        %v2821 = vadd.f32 %v2798, %v2817
        %s2822 = sld [smem:[#allocation6 + $0x58]]
        %v2823 = vmul.f32 %v274, %v1614
        %v2824 = vmul.f32 %v270, %v1618
        %v2825 = vmul.f32 %v275, %v1616
        %v2826 = vstv %s2822
        %v2827 = vmul.f32 %v2826, %v2823
        %v2828 = vmul.f32 %v2826, %v2824
        %v2829 = vmul.f32 %v2826, %v2825
        %2833 = vrot.lane.b32.xlu0 %v2827, 44
        %v2834 = vpop.permute.xlu0 %2833
        %2835 = vrot.lane.b32.xlu0 %v2828, 44
        %v2836 = vpop.permute.xlu0 %2835
        %2837 = vrot.lane.b32.xlu0 %v2829, 44
        %v2838 = vpop.permute.xlu0 %2837
        %v2839 = vsel %vm1638, %v2834, %v2836
        %v2840 = vsel %vm1638, %v2836, %v2838
        %v2843 = vadd.f32 %v2820, %v2839
        %v2844 = vadd.f32 %v2821, %v2840
        %s2845 = sld [smem:[#allocation6 + $0x59]]
        %v2846 = vmul.f32 %v274, %v1647
        %v2847 = vmul.f32 %v270, %v1651
        %v2848 = vmul.f32 %v275, %v1649
        %v2849 = vstv %s2845
        %v2850 = vmul.f32 %v2849, %v2846
        %v2851 = vmul.f32 %v2849, %v2847
        %v2852 = vmul.f32 %v2849, %v2848
        %2856 = vrot.lane.b32.xlu0 %v2850, 43
        %v2857 = vpop.permute.xlu0 %2856
        %2858 = vrot.lane.b32.xlu0 %v2851, 43
        %v2859 = vpop.permute.xlu0 %2858
        %2860 = vrot.lane.b32.xlu0 %v2852, 43
        %v2861 = vpop.permute.xlu0 %2860
        %v2862 = vsel %vm1671, %v2857, %v2859
        %v2863 = vsel %vm1671, %v2859, %v2861
        %v2866 = vadd.f32 %v2843, %v2862
        %v2867 = vadd.f32 %v2844, %v2863
        %s2868 = sld [smem:[#allocation6 + $0x5a]]
        %v2869 = vmul.f32 %v274, %v1680
        %v2870 = vmul.f32 %v270, %v1684
        %v2871 = vmul.f32 %v275, %v1682
        %v2872 = vstv %s2868
        %v2873 = vmul.f32 %v2872, %v2869
        %v2874 = vmul.f32 %v2872, %v2870
        %v2875 = vmul.f32 %v2872, %v2871
        %2879 = vrot.lane.b32.xlu0 %v2873, 42
        %v2880 = vpop.permute.xlu0 %2879
        %2881 = vrot.lane.b32.xlu0 %v2874, 42
        %v2882 = vpop.permute.xlu0 %2881
        %2883 = vrot.lane.b32.xlu0 %v2875, 42
        %v2884 = vpop.permute.xlu0 %2883
        %v2885 = vsel %vm1704, %v2880, %v2882
        %v2886 = vsel %vm1704, %v2882, %v2884
        %v2889 = vadd.f32 %v2866, %v2885
        %v2890 = vadd.f32 %v2867, %v2886
        %s2891 = sld [smem:[#allocation6 + $0x5b]]
        %v2892 = vmul.f32 %v274, %v1713
        %v2893 = vmul.f32 %v270, %v1716
        %v2894 = vmul.f32 %v275, %v1715
        %v2895 = vstv %s2891
        %v2896 = vmul.f32 %v2895, %v2892
        %v2897 = vmul.f32 %v2895, %v2893
        %v2898 = vmul.f32 %v2895, %v2894
        %2902 = vrot.lane.b32.xlu0 %v2896, 32
        %v2903 = vpop.permute.xlu0 %2902
        %2904 = vrot.lane.b32.xlu0 %v2897, 32
        %v2905 = vpop.permute.xlu0 %2904
        %2906 = vrot.lane.b32.xlu0 %v2898, 32
        %v2907 = vpop.permute.xlu0 %2906
        %v2908 = vsel %vm796, %v2903, %v2905
        %v2909 = vsel %vm796, %v2905, %v2907
        %v2912 = vadd.f32 %v2889, %v2908
        %v2913 = vadd.f32 %v2890, %v2909
        %s2914 = sld [smem:[#allocation6 + $0x5c]]
        %v2915 = vmul.f32 %v274, %v1744
        %v2916 = vmul.f32 %v270, %v1748
        %v2917 = vmul.f32 %v275, %v1746
        %v2918 = vstv %s2914
        %v2919 = vmul.f32 %v2918, %v2915
        %v2920 = vmul.f32 %v2918, %v2916
        %v2921 = vmul.f32 %v2918, %v2917
        %2925 = vrot.lane.b32.xlu0 %v2919, 31
        %v2926 = vpop.permute.xlu0 %2925
        %2927 = vrot.lane.b32.xlu0 %v2920, 31
        %v2928 = vpop.permute.xlu0 %2927
        %2929 = vrot.lane.b32.xlu0 %v2921, 31
        %v2930 = vpop.permute.xlu0 %2929
        %v2931 = vsel %vm1768, %v2926, %v2928
        %v2932 = vsel %vm1768, %v2928, %v2930
        %v2935 = vadd.f32 %v2912, %v2931
        %v2936 = vadd.f32 %v2913, %v2932
        %s2937 = sld [smem:[#allocation6 + $0x5d]]
        %v2938 = vmul.f32 %v274, %v1777
        %v2939 = vmul.f32 %v270, %v1781
        %v2940 = vmul.f32 %v275, %v1779
        %v2941 = vstv %s2937
        %v2942 = vmul.f32 %v2941, %v2938
        %v2943 = vmul.f32 %v2941, %v2939
        %v2944 = vmul.f32 %v2941, %v2940
        %2948 = vrot.lane.b32.xlu0 %v2942, 30
        %v2949 = vpop.permute.xlu0 %2948
        %2950 = vrot.lane.b32.xlu0 %v2943, 30
        %v2951 = vpop.permute.xlu0 %2950
        %2952 = vrot.lane.b32.xlu0 %v2944, 30
        %v2953 = vpop.permute.xlu0 %2952
        %v2954 = vsel %vm1801, %v2949, %v2951
        %v2955 = vsel %vm1801, %v2951, %v2953
        %v2958 = vadd.f32 %v2935, %v2954
        %v2959 = vadd.f32 %v2936, %v2955
        %s2960 = sld [smem:[#allocation6 + $0x5e]]
        %v2961 = vmul.f32 %v274, %v1810
        %v2962 = vmul.f32 %v270, %v1814
        %v2963 = vmul.f32 %v275, %v1812
        %v2964 = vstv %s2960
        %v2965 = vmul.f32 %v2964, %v2961
        %v2966 = vmul.f32 %v2964, %v2962
        %v2967 = vmul.f32 %v2964, %v2963
        %2971 = vrot.lane.b32.xlu0 %v2965, 29
        %v2972 = vpop.permute.xlu0 %2971
        %2973 = vrot.lane.b32.xlu0 %v2966, 29
        %v2974 = vpop.permute.xlu0 %2973
        %2975 = vrot.lane.b32.xlu0 %v2967, 29
        %v2976 = vpop.permute.xlu0 %2975
        %v2977 = vsel %vm1834, %v2972, %v2974
        %v2978 = vsel %vm1834, %v2974, %v2976
        %v2981 = vadd.f32 %v2958, %v2977
        %v2982 = vadd.f32 %v2959, %v2978
        %s2983 = sld [smem:[#allocation6 + $0x5f]]
        %v2984 = vmul.f32 %v274, %v1843
        %v2985 = vmul.f32 %v270, %v1847
        %v2986 = vmul.f32 %v275, %v1845
        %v2987 = vstv %s2983
        %v2988 = vmul.f32 %v2987, %v2984
        %v2989 = vmul.f32 %v2987, %v2985
        %v2990 = vmul.f32 %v2987, %v2986
        %2994 = vrot.lane.b32.xlu0 %v2988, 28
        %v2995 = vpop.permute.xlu0 %2994
        %2996 = vrot.lane.b32.xlu0 %v2989, 28
        %v2997 = vpop.permute.xlu0 %2996
        %2998 = vrot.lane.b32.xlu0 %v2990, 28
        %v2999 = vpop.permute.xlu0 %2998
        %v3000 = vsel %vm1867, %v2995, %v2997
        %v3001 = vsel %vm1867, %v2997, %v2999
        %v3004 = vadd.f32 %v2981, %v3000
        %v3005 = vadd.f32 %v2982, %v3001
        %s3006 = sld [smem:[#allocation6 + $0x60]]
        %v3007 = vmul.f32 %v274, %v1876
        %v3008 = vmul.f32 %v270, %v1880
        %v3009 = vmul.f32 %v275, %v1878
        %v3010 = vstv %s3006
        %v3011 = vmul.f32 %v3010, %v3007
        %v3012 = vmul.f32 %v3010, %v3008
        %v3013 = vmul.f32 %v3010, %v3009
        %3017 = vrot.lane.b32.xlu0 %v3011, 27
        %v3018 = vpop.permute.xlu0 %3017
        %3019 = vrot.lane.b32.xlu0 %v3012, 27
        %v3020 = vpop.permute.xlu0 %3019
        %3021 = vrot.lane.b32.xlu0 %v3013, 27
        %v3022 = vpop.permute.xlu0 %3021
        %v3023 = vsel %vm1900, %v3018, %v3020
        %v3024 = vsel %vm1900, %v3020, %v3022
        %v3027 = vadd.f32 %v3004, %v3023
        %v3028 = vadd.f32 %v3005, %v3024
        %s3029 = sld [smem:[#allocation6 + $0x61]]
        %v3030 = vmul.f32 %v274, %v1909
        %v3031 = vmul.f32 %v270, %v1913
        %v3032 = vmul.f32 %v275, %v1911
        %v3033 = vstv %s3029
        %v3034 = vmul.f32 %v3033, %v3030
        %v3035 = vmul.f32 %v3033, %v3031
        %v3036 = vmul.f32 %v3033, %v3032
        %3040 = vrot.lane.b32.xlu0 %v3034, 26
        %v3041 = vpop.permute.xlu0 %3040
        %3042 = vrot.lane.b32.xlu0 %v3035, 26
        %v3043 = vpop.permute.xlu0 %3042
        %3044 = vrot.lane.b32.xlu0 %v3036, 26
        %v3045 = vpop.permute.xlu0 %3044
        %v3046 = vsel %vm1933, %v3041, %v3043
        %v3047 = vsel %vm1933, %v3043, %v3045
        %v3050 = vadd.f32 %v3027, %v3046
        %v3051 = vadd.f32 %v3028, %v3047
        %v3052 = vxor.u32 %v3050, 2147483648
        %v3053 = vxor.u32 %v3051, 2147483648
        %v3054 = vmul.f32 %v3052, 1.442695
        %v3055 = vpow.pop %v3054
        %v3056 = vmul.f32 %v3053, 1.442695
        %v3057 = vpow.pop %v3056
        %v3058 = vadd.f32 %v3055, 1.0
        %v3059 = vadd.f32 %v3057, 1.0
        %v3060 = vrcp.pop %v3058
        %v3061 = vmul.f32 1.0, %v3060
        %v3062 = vrcp.pop %v3059
        %v3063 = vmul.f32 1.0, %v3062
        %v3064 = vlaneseq
        %v3065 = vshrl.u32 %v3064, 7
        %v3066 = vsub.s32 0, %v3065
        %v3067 = vrot.slane %v3061, %v3066
        %v3068 = vlaneseq
        %v3069 = vshrl.u32 %v3068, 7
        %v3070 = vsub.s32 0, %v3069
        %v3071 = vrot.slane %v3063, %v3070
        %v3074 = vcombine.low %v3067, %v3071
        %v3076 = vmul.f32 %v214, %v3074
        %3077 = vst [vmem:[%s213] sm:$0xff] %v3076
        %s3078 = sand.u32 %s98, 1
        %s3079 = scalar_lea.sflag [#allocation4], %s3078
        %s3080 = sand.u32 %s98, 1
        %s3081 = smul.addr %s3080, 8
        %s3082 = scalar_lea.vmem [#allocation9], %s3081
        // Predicated region
        $region45: #{tpu_custom_call.1} parent=31 // pred_check
          %p3083 = pneg %p108
        $region46: #{tpu_custom_call.1} parent=31 // pred_check_branch
          %3085 = sbr.rel (%p3083) target = $region48
        $region47: #{tpu_custom_call.1} parent=31 // pred_region
          %s3087 = ssub.s32 128, 128
          %3088 = vsyncadd %s3079, %s3087
          %s3089 = smul.addr %s22, 2
          %s3090 = smul.addr %s3089, 64
          %s3091 = scalar_lea.hbm %s3, %s3090
          %s3093 = sshll.u32 %s3082, 4
          %s3094 = int_to_ptr.vmem [resolvable:$true] %s3093
          %3096 = dma.vmem_to_hbm [thread:$0]  %s3094, 128, %s3091, %s3079
        $region48: #{tpu_custom_call.1} parent=31 // pred_fallthru
          _
      $region32: #{tpu_custom_call.1} parent=5 // pred_fallthru
        _
      %p3097 = scmp.le.s32.totalorder 2, %s17
      // Predicated region
      $region49: #{tpu_custom_call.1} parent=5 // pred_check
        %p3098 = pneg %p3097
      $region50: #{tpu_custom_call.1} parent=5 // pred_check_branch
        %3100 = sbr.rel (%p3098) target = $region52
      $region51: #{tpu_custom_call.1} parent=5 // pred_region
        %s3101 = ssub.s32 %s17, 2
        // Predicated region
        $region53: #{tpu_custom_call.1} parent=51 // pred_check
          %p3102 = pneg %p114
        $region54: #{tpu_custom_call.1} parent=51 // pred_check_branch
          %3104 = sbr.rel (%p3102) target = $region56
        $region55: #{tpu_custom_call.1} parent=51 // pred_region
          %s3105 = sand.u32 %s99, 1
          %s3106 = scalar_lea.sflag [#allocation4], %s3105
          %s3107 = sand.u32 %s99, 1
          %s3108 = smul.addr %s3107, 8
          %s3109 = scalar_lea.vmem [#allocation9], %s3108
          %3110 = dma.done %s3106, 128
        $region56: #{tpu_custom_call.1} parent=51 // pred_fallthru
          _
      $region52: #{tpu_custom_call.1} parent=5 // pred_fallthru
        _
    $region6: #{tpu_custom_call.1} parent=1 // loop_footer
      %s21 = sadd.s32 1, %s17
    $region7: #{tpu_custom_call.1} parent=1 // loop_footer_branch
      %16 = sbr.rel target = $region3
    $region8: #{tpu_custom_call.1} parent=1 // loop_exit
      _
    %3111 = vsyncpa [#allocation3], 1
    %s3112 = scalar_lea.sflag [#allocation3], 1
    %3113 = vsyncpa %s3112, 1
    %3114 = vsyncpa [#allocation8], 1
    %3115 = vsyncpa [#allocation4], 1
    %s3116 = scalar_lea.sflag [#allocation4], 1
    %3117 = vsyncpa %s3116, 1
    %3118 = vsyncpa [#allocation5], 1
    %s3119 = scalar_lea.sflag [#allocation5], 1
    %3120 = vsyncpa %s3119, 1

</llo_original>
